<compile_context>
chip_gen: v7x
topology: tpu7x:2x2x1
jax: 0.10.0
libtpu: 0.0.40
codegen_flags: <defaults>
</compile_context>

<pallas_src>
import jax
import jax.numpy as jnp
from jax.experimental import pallas as pl
from jax.experimental.pallas import tpu as pltpu


def _make_resblock_kernel(has_skip):
    G = 8  # GroupNorm(num_groups=8)

    def kernel(x_ref, temb_ref, samp_ref, sampt_ref, lm_ref, rm_ref,
               mem1_ref, mem1t_ref, mem2_ref, mem2t_ref,
               g1_ref, b1_ref, w1_ref, cb1_ref,
               wt_ref, bt_ref,
               g2_ref, b2_ref, w2_ref, cb2_ref,
               *rest):
        if has_skip:
            ws_ref, bs_ref, o_ref = rest
        else:
            (o_ref,) = rest

        f32 = jnp.float32
        Nb, Cin, L = x_ref.shape
        Cout = o_ref.shape[1]
        rows = Nb * L

        samp = samp_ref[...]       # (rows, Nb) one-hot: row -> sample (f32)
        samp_t = sampt_ref[...]    # (Nb, rows)
        lmask = lm_ref[...]        # (rows, 1): 0 at the first row of every sample
        rmask = rm_ref[...]        # (rows, 1): 0 at the last row of every sample

        # ---- unpack the NCL block into a flat (Nb*L, Cin) slab (2-D XLU transposes) ----
        xs = [x_ref[s].astype(f32).T for s in range(Nb)]            # each (L, Cin)
        x = xs[0] if Nb == 1 else jnp.concatenate(xs, axis=0)       # (rows, Cin)

        def group_norm(h, mem, mem_t, gamma, beta, eps=1e-5):
            C = h.shape[1]
            n = f32(L * (C // G))
            # fused single-pass statistics: per-sample sum(h) and sum(h*h)
            s1 = jnp.dot(samp_t, h, preferred_element_type=f32)           # (Nb, C)
            s2 = jnp.dot(samp_t, h * h, preferred_element_type=f32)       # (Nb, C)
            ss = jnp.concatenate([s1, s2], axis=0)                        # (2Nb, C)
            gstats = jnp.dot(ss, mem, preferred_element_type=f32) / n     # (2Nb, G)
            back = jnp.dot(gstats, mem_t, preferred_element_type=f32)     # (2Nb, C)
            mean_c = back[:Nb]                                            # (Nb, C)
            var_c = jnp.maximum(back[Nb:] - mean_c * mean_c, 0.0)         # E[h^2]-mean^2
            scale_c = jax.lax.rsqrt(var_c + eps) * gamma                  # (Nb, C)
            shift_c = beta - mean_c * scale_c                             # (Nb, C)
            scale_r = jnp.dot(samp, scale_c, preferred_element_type=f32)  # (rows, C)
            shift_r = jnp.dot(samp, shift_c, preferred_element_type=f32)  # (rows, C)
            return h * scale_r + shift_r

        def silu(h):
            return h * (1.0 / (1.0 + jnp.exp(-h)))   # exp on EUP; exact divide (tolerance)

        def conv3(h, w_ref, bias):
            # h: (rows, Ci); w_ref: (3*Ci, Co) with w[k*Ci + ci, co] = torch_w[co, ci, k]
            Ci = h.shape[1]
            left = pltpu.roll(h, 1, axis=0) * lmask           # x[o-1], per-sample halo -> 0
            right = pltpu.roll(h, rows - 1, axis=0) * rmask   # x[o+1], per-sample halo -> 0
            acc = jnp.dot(left, w_ref[0:Ci, :].astype(jnp.float32),
                          preferred_element_type=jnp.float32)
            acc = acc + jnp.dot(h, w_ref[Ci:2 * Ci, :].astype(jnp.float32),
                                preferred_element_type=jnp.float32)
            acc = acc + jnp.dot(right, w_ref[2 * Ci:3 * Ci, :].astype(jnp.float32),
                                preferred_element_type=jnp.float32)
            return acc + bias

        # ---- branch 1: GN -> SiLU -> Conv1 ----
        h = group_norm(x, mem1_ref[...], mem1t_ref[...],
                       g1_ref[...].astype(f32), b1_ref[...].astype(f32))
        h = silu(h)
        h = conv3(h, w1_ref, cb1_ref[...].astype(f32))

        # ---- time-embedding projection; broadcast over length via one-hot matmul ----
        t = temb_ref[...].astype(f32).reshape(Nb, temb_ref.shape[-1])       # (Nb, T)
        tproj = jnp.dot(t, wt_ref[...].astype(f32),
                        preferred_element_type=f32) + bt_ref[...].astype(f32)  # (Nb, Cout)
        h = h + jnp.dot(samp, tproj, preferred_element_type=f32)

        # ---- branch 2: GN -> SiLU -> Dropout(identity) -> Conv2 ----
        # TODO(synk): nn.Dropout(p=0.1) treated as identity (eval/inference); training-mode
        # RNG masking (pltpu.prng_seed/prng_random_bits) not implemented.
        h = group_norm(h, mem2_ref[...], mem2t_ref[...],
                       g2_ref[...].astype(f32), b2_ref[...].astype(f32))
        h = silu(h)
        h = conv3(h, w2_ref, cb2_ref[...].astype(f32))

        # ---- skip connection ----
        if has_skip:
            y = h + jnp.dot(x, ws_ref[...].astype(f32),
                            preferred_element_type=f32) + bs_ref[...].astype(f32)
        else:
            y = h + x   # identity skip (Cin == Cout): no matmul, no weight buffer

        # ---- repack flat (rows, Cout) back into the NCL output block ----
        for s in range(Nb):
            o_ref[s] = y[s * L:(s + 1) * L, :].T.astype(o_ref.dtype)

    return kernel


def _pick_block_batch(N, L):
    """Largest divisor of N whose flattened block stays modest (amortize per-step
    overhead) while keeping >= 2 grid steps when N >= 2 (feed both TCs on v7x)."""
    max_rows = 256
    best = 1
    for d in range(1, N + 1):
        if N % d:
            continue
        if d > 1 and d * L > max_rows:
            continue
        if N >= 2 and N // d < 2:
            continue
        best = d
    return best


def resblock1d(x, t_emb, g1, b1, w1, cb1, wt, bt, g2, b2, w2, cb2,
               ws=None, bs=None, *, block_batch=None):
    """
    x: (N, Cin, L) f32, t_emb: (N, T) f32.
    PyTorch-layout params: w1 (Cout, Cin, 3), w2 (Cout, Cout, 3), wt (Cout, T) Linear,
    ws (Cout, Cin, 1) or None (identity skip, requires Cin == Cout).
    Returns (N, Cout, L).
    """
    N, Cin, L = x.shape
    T = t_emb.shape[1]
    Cout = w1.shape[0]
    G = 8
    assert Cin % G == 0 and Cout % G == 0, "GroupNorm(8) needs channels divisible by 8"
    has_skip = ws is not None
    if not has_skip:
        assert Cin == Cout, "identity skip requires in_channels == out_channels"

    Nb = block_batch if block_batch is not None else _pick_block_batch(N, L)
    assert N % Nb == 0
    rows = Nb * L
    f32 = jnp.float32

    # ---- one-time weight repack (PyTorch conv layout -> (K, N) matmul operands) ----
    w1p = jnp.transpose(w1, (2, 1, 0)).reshape(3 * Cin, Cout)          # (3*Cin, Cout)
    w2p = jnp.transpose(w2, (2, 1, 0)).reshape(3 * Cout, Cout)         # (3*Cout, Cout)
    wtp = jnp.transpose(wt)                                            # (T, Cout)
    temb3 = t_emb.reshape(N, 1, T)

    # ---- small constant tables (precomputed once, VMEM-resident across grid steps) ----
    ridx = jnp.arange(rows, dtype=jnp.int32)
    samp = (ridx[:, None] // L == jnp.arange(Nb, dtype=jnp.int32)[None, :]).astype(f32)
    samp_t = samp.T
    lmask = (ridx % L != 0).astype(f32)[:, None]        # zero at first row of each sample
    rmask = (ridx % L != L - 1).astype(f32)[:, None]    # zero at last row of each sample

    def memb(C):
        m = (jnp.arange(C, dtype=jnp.int32)[:, None] // (C // G)
             == jnp.arange(G, dtype=jnp.int32)[None, :]).astype(f32)   # (C, G)
        return m, m.T

    mem1, mem1t = memb(Cin)
    mem2, mem2t = memb(Cout)

    row = lambda v: v.reshape(1, -1)
    c2 = lambda n: (0, 0)

    in_specs = [
        pl.BlockSpec((Nb, Cin, L), lambda n: (n, 0, 0)),       # x (NCL block)
        pl.BlockSpec((Nb, 1, T), lambda n: (n, 0, 0)),         # t_emb
        pl.BlockSpec((rows, Nb), c2),                          # samp
        pl.BlockSpec((Nb, rows), c2),                          # samp_t
        pl.BlockSpec((rows, 1), c2),                           # lmask
        pl.BlockSpec((rows, 1), c2),                           # rmask
        pl.BlockSpec((Cin, G), c2),                            # mem1
        pl.BlockSpec((G, Cin), c2),                            # mem1t
        pl.BlockSpec((Cout, G), c2),                           # mem2
        pl.BlockSpec((G, Cout), c2),                           # mem2t
        pl.BlockSpec((1, Cin), c2),                            # norm1 gamma
        pl.BlockSpec((1, Cin), c2),                            # norm1 beta
        pl.BlockSpec((3 * Cin, Cout), c2),                     # conv1 weight
        pl.BlockSpec((1, Cout), c2),                           # conv1 bias
        pl.BlockSpec((T, Cout), c2),                           # time proj weight
        pl.BlockSpec((1, Cout), c2),                           # time proj bias
        pl.BlockSpec((1, Cout), c2),                           # norm2 gamma
        pl.BlockSpec((1, Cout), c2),                           # norm2 beta
        pl.BlockSpec((3 * Cout, Cout), c2),                    # conv2 weight
        pl.BlockSpec((1, Cout), c2),                           # conv2 bias
    ]
    args = [x, temb3, samp, samp_t, lmask, rmask, mem1, mem1t, mem2, mem2t,
            row(g1), row(b1), w1p, row(cb1), wtp, row(bt),
            row(g2), row(b2), w2p, row(cb2)]
    if has_skip:
        in_specs += [pl.BlockSpec((Cin, Cout), c2),            # skip 1x1 weight
                     pl.BlockSpec((1, Cout), c2)]              # skip bias
        args += [jnp.transpose(ws[:, :, 0]), row(bs)]

    return pl.pallas_call(
        _make_resblock_kernel(has_skip),
        out_shape=jax.ShapeDtypeStruct((N, Cout, L), x.dtype),
        grid_spec=pltpu.PrefetchScalarGridSpec(
            num_scalar_prefetch=0,
            grid=(N // Nb,),                                   # Nb samples per grid step
            in_specs=in_specs,
            out_specs=pl.BlockSpec((Nb, Cout, L), lambda n: (n, 0, 0)),
        ),
        compiler_params=pltpu.CompilerParams(
            dimension_semantics=("parallel",),                 # shard batch across TCs
            vmem_limit_bytes=48 * 1024 * 1024,                 # safe on v7x (64 MiB phys)
        ),
    )(*args)


# ----------------------------- pure-JAX reference ------------------------------------
def _ref_resblock1d(x, t_emb, g1, b1, w1, cb1, wt, bt, g2, b2, w2, cb2, ws, bs):
    def gn(h, gamma, beta, G=8, eps=1e-5):
        n, c, l = h.shape
        hg = h.reshape(n, G, c // G, l)
        mean = hg.mean(axis=(2, 3), keepdims=True)
        var = ((hg - mean) ** 2).mean(axis=(2, 3), keepdims=True)
        hn = ((hg - mean) / jnp.sqrt(var + eps)).reshape(n, c, l)
        return hn * gamma[None, :, None] + beta[None, :, None]

    def conv(h, w, b_, pad):
        y = jax.lax.conv_general_dilated(
            h, w, window_strides=(1,), padding=((pad, pad),),
            dimension_numbers=("NCH", "OIH", "NCH"))
        return y + b_[None, :, None]

    def silu(h):
        return h * jax.nn.sigmoid(h)

    h = conv(silu(gn(x, g1, b1)), w1, cb1, 1)
    h = h + (t_emb @ wt.T + bt)[:, :, None]
    h = conv(silu(gn(h, g2, b2)), w2, cb2, 1)
    skip = conv(x, ws, bs, 0) if ws is not None else x
    return skip + h


if __name__ == "__main__":
    key = jax.random.PRNGKey(0)
    ks = jax.random.split(key, 20)

    # ---------------- case 1: Cin != Cout (1x1 conv skip) ----------------
    N, Cin, Cout, L, T = 2, 32, 64, 16, 32
    x = jax.random.normal(ks[0], (N, Cin, L), jnp.float32)
    t_emb = jax.random.normal(ks[1], (N, T), jnp.float32)
    g1 = 1.0 + 0.1 * jax.random.normal(ks[2], (Cin,), jnp.float32)
    b1 = 0.1 * jax.random.normal(ks[3], (Cin,), jnp.float32)
    g2 = 1.0 + 0.1 * jax.random.normal(ks[4], (Cout,), jnp.float32)
    b2 = 0.1 * jax.random.normal(ks[5], (Cout,), jnp.float32)
    bnd1 = 1.0 / (Cin * 3) ** 0.5
    w1 = jax.random.uniform(ks[6], (Cout, Cin, 3), jnp.float32, -bnd1, bnd1)
    cb1 = jax.random.uniform(ks[7], (Cout,), jnp.float32, -bnd1, bnd1)
    bndt = 1.0 / T ** 0.5
    wt = jax.random.uniform(ks[8], (Cout, T), jnp.float32, -bndt, bndt)
    bt = jax.random.uniform(ks[9], (Cout,), jnp.float32, -bndt, bndt)
    bnd2 = 1.0 / (Cout * 3) ** 0.5
    w2 = jax.random.uniform(ks[10], (Cout, Cout, 3), jnp.float32, -bnd2, bnd2)
    cb2 = jax.random.uniform(ks[11], (Cout,), jnp.float32, -bnd2, bnd2)
    bnds = 1.0 / Cin ** 0.5
    ws = jax.random.uniform(ks[12], (Cout, Cin, 1), jnp.float32, -bnds, bnds)
    bs = jax.random.uniform(ks[13], (Cout,), jnp.float32, -bnds, bnds)

    y = resblock1d(x, t_emb, g1, b1, w1, cb1, wt, bt, g2, b2, w2, cb2, ws, bs)
    y = jax.block_until_ready(y)
    ref = _ref_resblock1d(x, t_emb, g1, b1, w1, cb1, wt, bt, g2, b2, w2, cb2, ws, bs)
    assert y.shape == (N, Cout, L), y.shape
    err1 = float(jnp.max(jnp.abs(y - ref)))
    assert jnp.allclose(y, ref, atol=5e-4, rtol=5e-4), err1

    # ---------------- case 2: Cin == Cout (identity skip), Nb=2 batching ----------------
    N2, C2 = 4, 32
    x2 = jax.random.normal(ks[14], (N2, C2, L), jnp.float32)
    t2 = jax.random.normal(ks[15], (N2, T), jnp.float32)
    g1b = 1.0 + 0.1 * jax.random.normal(ks[16], (C2,), jnp.float32)
    b1b = 0.1 * jax.random.normal(ks[17], (C2,), jnp.float32)
    bndc = 1.0 / (C2 * 3) ** 0.5
    w1b = jax.random.uniform(ks[18], (C2, C2, 3), jnp.float32, -bndc, bndc)
    cb1b = jax.random.uniform(ks[19], (C2,), jnp.float32, -bndc, bndc)
    wtb = jax.random.uniform(ks[8], (C2, T), jnp.float32, -bndt, bndt)
    btb = jax.random.uniform(ks[9], (C2,), jnp.float32, -bndt, bndt)
    w2b = jax.random.uniform(ks[10], (C2, C2, 3), jnp.float32, -bndc, bndc)
    cb2b = jax.random.uniform(ks[11], (C2,), jnp.float32, -bndc, bndc)
    g2b = 1.0 + 0.1 * jax.random.normal(ks[4], (C2,), jnp.float32)
    b2b = 0.1 * jax.random.normal(ks[5], (C2,), jnp.float32)

    y2 = resblock1d(x2, t2, g1b, b1b, w1b, cb1b, wtb, btb, g2b, b2b, w2b, cb2b,
                    ws=None, bs=None)
    y2 = jax.block_until_ready(y2)
    ref2 = _ref_resblock1d(x2, t2, g1b, b1b, w1b, cb1b, wtb, btb, g2b, b2b, w2b, cb2b,
                           None, None)
    assert y2.shape == (N2, C2, L), y2.shape
    err2 = float(jnp.max(jnp.abs(y2 - ref2)))
    assert jnp.allclose(y2, ref2, atol=5e-4, rtol=5e-4), err2

    print("KERNEL_OK")
</pallas_src>

<mosaic_0001>
module attributes {stable_mosaic.version = 11 : i64} {
  func.func @kernel(%arg0: i32, %arg1: memref<1x32x16xf32, #tpu.memory_space<vmem>>, %arg2: memref<1x1x32xf32, #tpu.memory_space<vmem>>, %arg3: memref<16x1xf32, #tpu.memory_space<vmem>>, %arg4: memref<1x16xf32, #tpu.memory_space<vmem>>, %arg5: memref<16x1xf32, #tpu.memory_space<vmem>>, %arg6: memref<16x1xf32, #tpu.memory_space<vmem>>, %arg7: memref<32x8xf32, #tpu.memory_space<vmem>>, %arg8: memref<8x32xf32, #tpu.memory_space<vmem>>, %arg9: memref<64x8xf32, #tpu.memory_space<vmem>>, %arg10: memref<8x64xf32, #tpu.memory_space<vmem>>, %arg11: memref<1x32xf32, #tpu.memory_space<vmem>>, %arg12: memref<1x32xf32, #tpu.memory_space<vmem>>, %arg13: memref<96x64xf32, #tpu.memory_space<vmem>>, %arg14: memref<1x64xf32, #tpu.memory_space<vmem>>, %arg15: memref<32x64xf32, #tpu.memory_space<vmem>>, %arg16: memref<1x64xf32, #tpu.memory_space<vmem>>, %arg17: memref<1x64xf32, #tpu.memory_space<vmem>>, %arg18: memref<1x64xf32, #tpu.memory_space<vmem>>, %arg19: memref<192x64xf32, #tpu.memory_space<vmem>>, %arg20: memref<1x64xf32, #tpu.memory_space<vmem>>, %arg21: memref<32x64xf32, #tpu.memory_space<vmem>>, %arg22: memref<1x64xf32, #tpu.memory_space<vmem>>, %arg23: memref<1x64x16xf32, #tpu.memory_space<vmem>>) attributes {dimension_semantics = [#tpu.dimension_semantics<parallel>], iteration_bounds = array<i64: 2>, scalar_prefetch = 0 : i64, scratch_operands = 0 : i64, tpu.core_type = #tpu.core_type<tc>, window_params = [{transform_indices = @transform_0, window_bounds = array<i64: 1, 32, 16>}, {transform_indices = @transform_1, window_bounds = array<i64: 1, 1, 32>}, {pipeline_mode = #tpu.pipeline_mode<synchronous>, transform_indices = @transform_2, window_bounds = array<i64: 16, 1>}, {pipeline_mode = #tpu.pipeline_mode<synchronous>, transform_indices = @transform_3, window_bounds = array<i64: 1, 16>}, {pipeline_mode = #tpu.pipeline_mode<synchronous>, transform_indices = @transform_4, window_bounds = array<i64: 16, 1>}, {pipeline_mode = #tpu.pipeline_mode<synchronous>, transform_indices = @transform_5, window_bounds = array<i64: 16, 1>}, {pipeline_mode = #tpu.pipeline_mode<synchronous>, transform_indices = @transform_6, window_bounds = array<i64: 32, 8>}, {pipeline_mode = #tpu.pipeline_mode<synchronous>, transform_indices = @transform_7, window_bounds = array<i64: 8, 32>}, {pipeline_mode = #tpu.pipeline_mode<synchronous>, transform_indices = @transform_8, window_bounds = array<i64: 64, 8>}, {pipeline_mode = #tpu.pipeline_mode<synchronous>, transform_indices = @transform_9, window_bounds = array<i64: 8, 64>}, {pipeline_mode = #tpu.pipeline_mode<synchronous>, transform_indices = @transform_10, window_bounds = array<i64: 1, 32>}, {pipeline_mode = #tpu.pipeline_mode<synchronous>, transform_indices = @transform_11, window_bounds = array<i64: 1, 32>}, {pipeline_mode = #tpu.pipeline_mode<synchronous>, transform_indices = @transform_12, window_bounds = array<i64: 96, 64>}, {pipeline_mode = #tpu.pipeline_mode<synchronous>, transform_indices = @transform_13, window_bounds = array<i64: 1, 64>}, {pipeline_mode = #tpu.pipeline_mode<synchronous>, transform_indices = @transform_14, window_bounds = array<i64: 32, 64>}, {pipeline_mode = #tpu.pipeline_mode<synchronous>, transform_indices = @transform_15, window_bounds = array<i64: 1, 64>}, {pipeline_mode = #tpu.pipeline_mode<synchronous>, transform_indices = @transform_16, window_bounds = array<i64: 1, 64>}, {pipeline_mode = #tpu.pipeline_mode<synchronous>, transform_indices = @transform_17, window_bounds = array<i64: 1, 64>}, {pipeline_mode = #tpu.pipeline_mode<synchronous>, transform_indices = @transform_18, window_bounds = array<i64: 192, 64>}, {pipeline_mode = #tpu.pipeline_mode<synchronous>, transform_indices = @transform_19, window_bounds = array<i64: 1, 64>}, {pipeline_mode = #tpu.pipeline_mode<synchronous>, transform_indices = @transform_20, window_bounds = array<i64: 32, 64>}, {pipeline_mode = #tpu.pipeline_mode<synchronous>, transform_indices = @transform_21, window_bounds = array<i64: 1, 64>}, {transform_indices = @transform_22, window_bounds = array<i64: 1, 64, 16>}]} {
    %c0 = arith.constant 0 : index
    %c0_0 = arith.constant 0 : index
    %0 = vector.load %arg3[%c0, %c0_0] : memref<16x1xf32, #tpu.memory_space<vmem>>, vector<16x1xf32>
    %c0_1 = arith.constant 0 : index
    %c0_2 = arith.constant 0 : index
    %1 = vector.load %arg4[%c0_1, %c0_2] : memref<1x16xf32, #tpu.memory_space<vmem>>, vector<1x16xf32>
    %c0_3 = arith.constant 0 : index
    %c0_4 = arith.constant 0 : index
    %2 = vector.load %arg5[%c0_3, %c0_4] : memref<16x1xf32, #tpu.memory_space<vmem>>, vector<16x1xf32>
    %c0_5 = arith.constant 0 : index
    %c0_6 = arith.constant 0 : index
    %3 = vector.load %arg6[%c0_5, %c0_6] : memref<16x1xf32, #tpu.memory_space<vmem>>, vector<16x1xf32>
    %c0_7 = arith.constant 0 : index
    %c0_8 = arith.constant 0 : index
    %c0_9 = arith.constant 0 : index
    %4 = vector.load %arg1[%c0_7, %c0_8, %c0_9] : memref<1x32x16xf32, #tpu.memory_space<vmem>>, vector<1x32x16xf32>
    %5 = vector.shape_cast %4 : vector<1x32x16xf32> to vector<32x16xf32>
    %6 = tpu.transpose %5, [1, 0] : vector<32x16xf32> -> vector<16x32xf32>
    %c0_10 = arith.constant 0 : index
    %c0_11 = arith.constant 0 : index
    %7 = vector.load %arg7[%c0_10, %c0_11] : memref<32x8xf32, #tpu.memory_space<vmem>>, vector<32x8xf32>
    %c0_12 = arith.constant 0 : index
    %c0_13 = arith.constant 0 : index
    %8 = vector.load %arg8[%c0_12, %c0_13] : memref<8x32xf32, #tpu.memory_space<vmem>>, vector<8x32xf32>
    %c0_14 = arith.constant 0 : index
    %c0_15 = arith.constant 0 : index
    %9 = vector.load %arg11[%c0_14, %c0_15] : memref<1x32xf32, #tpu.memory_space<vmem>>, vector<1x32xf32>
    %c0_16 = arith.constant 0 : index
    %c0_17 = arith.constant 0 : index
    %10 = vector.load %arg12[%c0_16, %c0_17] : memref<1x32xf32, #tpu.memory_space<vmem>>, vector<1x32xf32>
    %cst = arith.constant dense<0.000000e+00> : vector<1x32xf32>
    %11 = tpu.matmul %1, %6, %cst {dimension_numbers = #tpu.dot_dimension_numbers<[1], [0], [0], [1], [0, 0, 1, 1], [], []>} : vector<1x16xf32>, vector<16x32xf32>, vector<1x32xf32> -> vector<1x32xf32>
    %12 = arith.mulf %6, %6 : vector<16x32xf32>
    %cst_18 = arith.constant dense<0.000000e+00> : vector<1x32xf32>
    %13 = tpu.matmul %1, %12, %cst_18 {dimension_numbers = #tpu.dot_dimension_numbers<[1], [0], [0], [1], [0, 0, 1, 1], [], []>} : vector<1x16xf32>, vector<16x32xf32>, vector<1x32xf32> -> vector<1x32xf32>
    %14 = tpu.concatenate %11, %13 in 0 : vector<1x32xf32>, vector<1x32xf32> -> vector<2x32xf32>
    %cst_19 = arith.constant dense<0.000000e+00> : vector<2x8xf32>
    %15 = tpu.matmul %14, %7, %cst_19 {dimension_numbers = #tpu.dot_dimension_numbers<[1], [0], [0], [1], [0, 0, 1, 1], [], []>} : vector<2x32xf32>, vector<32x8xf32>, vector<2x8xf32> -> vector<2x8xf32>
    %cst_20 = arith.constant 6.400000e+01 : f32
    %16 = vector.broadcast %cst_20 : f32 to vector<2x8xf32>
    %17 = arith.divf %15, %16 : vector<2x8xf32>
    %cst_21 = arith.constant dense<0.000000e+00> : vector<2x32xf32>
    %18 = tpu.matmul %17, %8, %cst_21 {dimension_numbers = #tpu.dot_dimension_numbers<[1], [0], [0], [1], [0, 0, 1, 1], [], []>} : vector<2x8xf32>, vector<8x32xf32>, vector<2x32xf32> -> vector<2x32xf32>
    %19 = vector.extract_strided_slice %18 {offsets = [0, 0], sizes = [1, 32], strides = [1, 1]} : vector<2x32xf32> to vector<1x32xf32>
    %20 = vector.extract_strided_slice %18 {offsets = [1, 0], sizes = [1, 32], strides = [1, 1]} : vector<2x32xf32> to vector<1x32xf32>
    %21 = arith.mulf %19, %19 : vector<1x32xf32>
    %22 = arith.subf %20, %21 : vector<1x32xf32>
    %cst_22 = arith.constant 0.000000e+00 : f32
    %23 = vector.broadcast %cst_22 : f32 to vector<1x32xf32>
    %24 = arith.maximumf %22, %23 : vector<1x32xf32>
    %cst_23 = arith.constant 9.99999974E-6 : f32
    %25 = vector.broadcast %cst_23 : f32 to vector<1x32xf32>
    %26 = arith.addf %24, %25 : vector<1x32xf32>
    %27 = math.rsqrt %26 : vector<1x32xf32>
    %28 = arith.mulf %27, %9 : vector<1x32xf32>
    %29 = arith.mulf %19, %28 : vector<1x32xf32>
    %30 = arith.subf %10, %29 : vector<1x32xf32>
    %cst_24 = arith.constant dense<0.000000e+00> : vector<16x32xf32>
    %31 = tpu.matmul %0, %28, %cst_24 {dimension_numbers = #tpu.dot_dimension_numbers<[1], [0], [0], [1], [0, 0, 1, 1], [], []>} : vector<16x1xf32>, vector<1x32xf32>, vector<16x32xf32> -> vector<16x32xf32>
    %cst_25 = arith.constant dense<0.000000e+00> : vector<16x32xf32>
    %32 = tpu.matmul %0, %30, %cst_25 {dimension_numbers = #tpu.dot_dimension_numbers<[1], [0], [0], [1], [0, 0, 1, 1], [], []>} : vector<16x1xf32>, vector<1x32xf32>, vector<16x32xf32> -> vector<16x32xf32>
    %33 = arith.mulf %6, %31 : vector<16x32xf32>
    %34 = arith.addf %33, %32 : vector<16x32xf32>
    %cst_26 = arith.constant 0.000000e+00 : f32
    %35 = vector.broadcast %cst_26 : f32 to vector<16x32xf32>
    %36 = arith.subf %35, %34 : vector<16x32xf32>
    %37 = math.exp %36 : vector<16x32xf32>
    %cst_27 = arith.constant 1.000000e+00 : f32
    %38 = vector.broadcast %cst_27 : f32 to vector<16x32xf32>
    %39 = arith.addf %38, %37 : vector<16x32xf32>
    %cst_28 = arith.constant 1.000000e+00 : f32
    %40 = vector.broadcast %cst_28 : f32 to vector<16x32xf32>
    %41 = arith.divf %40, %39 : vector<16x32xf32>
    %42 = arith.mulf %34, %41 : vector<16x32xf32>
    %c0_29 = arith.constant 0 : index
    %c0_30 = arith.constant 0 : index
    %43 = vector.load %arg14[%c0_29, %c0_30] : memref<1x64xf32, #tpu.memory_space<vmem>>, vector<1x64xf32>
    %c1_i32 = arith.constant 1 : i32
    %44 = tpu.dynamic_rotate %42 by %c1_i32 dim 0 : vector<16x32xf32>, i32 -> vector<16x32xf32>
    %45 = vector.broadcast %2 : vector<16x1xf32> to vector<16x32xf32>
    %46 = arith.mulf %44, %45 : vector<16x32xf32>
    %c15_i32 = arith.constant 15 : i32
    %47 = tpu.dynamic_rotate %42 by %c15_i32 dim 0 : vector<16x32xf32>, i32 -> vector<16x32xf32>
    %48 = vector.broadcast %3 : vector<16x1xf32> to vector<16x32xf32>
    %49 = arith.mulf %47, %48 : vector<16x32xf32>
    %c0_31 = arith.constant 0 : index
    %c0_32 = arith.constant 0 : index
    %50 = vector.load %arg13[%c0_31, %c0_32] : memref<96x64xf32, #tpu.memory_space<vmem>>, vector<32x64xf32>
    %cst_33 = arith.constant dense<0.000000e+00> : vector<16x64xf32>
    %51 = tpu.matmul %46, %50, %cst_33 {dimension_numbers = #tpu.dot_dimension_numbers<[1], [0], [0], [1], [0, 0, 1, 1], [], []>} : vector<16x32xf32>, vector<32x64xf32>, vector<16x64xf32> -> vector<16x64xf32>
    %c32 = arith.constant 32 : index
    %c0_34 = arith.constant 0 : index
    %52 = vector.load %arg13[%c32, %c0_34] : memref<96x64xf32, #tpu.memory_space<vmem>>, vector<32x64xf32>
    %cst_35 = arith.constant dense<0.000000e+00> : vector<16x64xf32>
    %53 = tpu.matmul %42, %52, %cst_35 {dimension_numbers = #tpu.dot_dimension_numbers<[1], [0], [0], [1], [0, 0, 1, 1], [], []>} : vector<16x32xf32>, vector<32x64xf32>, vector<16x64xf32> -> vector<16x64xf32>
    %54 = arith.addf %51, %53 : vector<16x64xf32>
    %c64 = arith.constant 64 : index
    %c0_36 = arith.constant 0 : index
    %55 = vector.load %arg13[%c64, %c0_36] : memref<96x64xf32, #tpu.memory_space<vmem>>, vector<32x64xf32>
    %cst_37 = arith.constant dense<0.000000e+00> : vector<16x64xf32>
    %56 = tpu.matmul %49, %55, %cst_37 {dimension_numbers = #tpu.dot_dimension_numbers<[1], [0], [0], [1], [0, 0, 1, 1], [], []>} : vector<16x32xf32>, vector<32x64xf32>, vector<16x64xf32> -> vector<16x64xf32>
    %57 = arith.addf %54, %56 : vector<16x64xf32>
    %58 = vector.broadcast %43 : vector<1x64xf32> to vector<16x64xf32>
    %59 = arith.addf %57, %58 : vector<16x64xf32>
    %c0_38 = arith.constant 0 : index
    %c0_39 = arith.constant 0 : index
    %c0_40 = arith.constant 0 : index
    %60 = vector.load %arg2[%c0_38, %c0_39, %c0_40] : memref<1x1x32xf32, #tpu.memory_space<vmem>>, vector<1x1x32xf32>
    %61 = vector.shape_cast %60 : vector<1x1x32xf32> to vector<1x32xf32>
    %c0_41 = arith.constant 0 : index
    %c0_42 = arith.constant 0 : index
    %62 = vector.load %arg15[%c0_41, %c0_42] : memref<32x64xf32, #tpu.memory_space<vmem>>, vector<32x64xf32>
    %cst_43 = arith.constant dense<0.000000e+00> : vector<1x64xf32>
    %63 = tpu.matmul %61, %62, %cst_43 {dimension_numbers = #tpu.dot_dimension_numbers<[1], [0], [0], [1], [0, 0, 1, 1], [], []>} : vector<1x32xf32>, vector<32x64xf32>, vector<1x64xf32> -> vector<1x64xf32>
    %c0_44 = arith.constant 0 : index
    %c0_45 = arith.constant 0 : index
    %64 = vector.load %arg16[%c0_44, %c0_45] : memref<1x64xf32, #tpu.memory_space<vmem>>, vector<1x64xf32>
    %65 = arith.addf %63, %64 : vector<1x64xf32>
    %cst_46 = arith.constant dense<0.000000e+00> : vector<16x64xf32>
    %66 = tpu.matmul %0, %65, %cst_46 {dimension_numbers = #tpu.dot_dimension_numbers<[1], [0], [0], [1], [0, 0, 1, 1], [], []>} : vector<16x1xf32>, vector<1x64xf32>, vector<16x64xf32> -> vector<16x64xf32>
    %67 = arith.addf %59, %66 : vector<16x64xf32>
    %c0_47 = arith.constant 0 : index
    %c0_48 = arith.constant 0 : index
    %68 = vector.load %arg9[%c0_47, %c0_48] : memref<64x8xf32, #tpu.memory_space<vmem>>, vector<64x8xf32>
    %c0_49 = arith.constant 0 : index
    %c0_50 = arith.constant 0 : index
    %69 = vector.load %arg10[%c0_49, %c0_50] : memref<8x64xf32, #tpu.memory_space<vmem>>, vector<8x64xf32>
    %c0_51 = arith.constant 0 : index
    %c0_52 = arith.constant 0 : index
    %70 = vector.load %arg17[%c0_51, %c0_52] : memref<1x64xf32, #tpu.memory_space<vmem>>, vector<1x64xf32>
    %c0_53 = arith.constant 0 : index
    %c0_54 = arith.constant 0 : index
    %71 = vector.load %arg18[%c0_53, %c0_54] : memref<1x64xf32, #tpu.memory_space<vmem>>, vector<1x64xf32>
    %cst_55 = arith.constant dense<0.000000e+00> : vector<1x64xf32>
    %72 = tpu.matmul %1, %67, %cst_55 {dimension_numbers = #tpu.dot_dimension_numbers<[1], [0], [0], [1], [0, 0, 1, 1], [], []>} : vector<1x16xf32>, vector<16x64xf32>, vector<1x64xf32> -> vector<1x64xf32>
    %73 = arith.mulf %67, %67 : vector<16x64xf32>
    %cst_56 = arith.constant dense<0.000000e+00> : vector<1x64xf32>
    %74 = tpu.matmul %1, %73, %cst_56 {dimension_numbers = #tpu.dot_dimension_numbers<[1], [0], [0], [1], [0, 0, 1, 1], [], []>} : vector<1x16xf32>, vector<16x64xf32>, vector<1x64xf32> -> vector<1x64xf32>
    %75 = tpu.concatenate %72, %74 in 0 : vector<1x64xf32>, vector<1x64xf32> -> vector<2x64xf32>
    %cst_57 = arith.constant dense<0.000000e+00> : vector<2x8xf32>
    %76 = tpu.matmul %75, %68, %cst_57 {dimension_numbers = #tpu.dot_dimension_numbers<[1], [0], [0], [1], [0, 0, 1, 1], [], []>} : vector<2x64xf32>, vector<64x8xf32>, vector<2x8xf32> -> vector<2x8xf32>
    %cst_58 = arith.constant 1.280000e+02 : f32
    %77 = vector.broadcast %cst_58 : f32 to vector<2x8xf32>
    %78 = arith.divf %76, %77 : vector<2x8xf32>
    %cst_59 = arith.constant dense<0.000000e+00> : vector<2x64xf32>
    %79 = tpu.matmul %78, %69, %cst_59 {dimension_numbers = #tpu.dot_dimension_numbers<[1], [0], [0], [1], [0, 0, 1, 1], [], []>} : vector<2x8xf32>, vector<8x64xf32>, vector<2x64xf32> -> vector<2x64xf32>
    %80 = vector.extract_strided_slice %79 {offsets = [0, 0], sizes = [1, 64], strides = [1, 1]} : vector<2x64xf32> to vector<1x64xf32>
    %81 = vector.extract_strided_slice %79 {offsets = [1, 0], sizes = [1, 64], strides = [1, 1]} : vector<2x64xf32> to vector<1x64xf32>
    %82 = arith.mulf %80, %80 : vector<1x64xf32>
    %83 = arith.subf %81, %82 : vector<1x64xf32>
    %cst_60 = arith.constant 0.000000e+00 : f32
    %84 = vector.broadcast %cst_60 : f32 to vector<1x64xf32>
    %85 = arith.maximumf %83, %84 : vector<1x64xf32>
    %cst_61 = arith.constant 9.99999974E-6 : f32
    %86 = vector.broadcast %cst_61 : f32 to vector<1x64xf32>
    %87 = arith.addf %85, %86 : vector<1x64xf32>
    %88 = math.rsqrt %87 : vector<1x64xf32>
    %89 = arith.mulf %88, %70 : vector<1x64xf32>
    %90 = arith.mulf %80, %89 : vector<1x64xf32>
    %91 = arith.subf %71, %90 : vector<1x64xf32>
    %cst_62 = arith.constant dense<0.000000e+00> : vector<16x64xf32>
    %92 = tpu.matmul %0, %89, %cst_62 {dimension_numbers = #tpu.dot_dimension_numbers<[1], [0], [0], [1], [0, 0, 1, 1], [], []>} : vector<16x1xf32>, vector<1x64xf32>, vector<16x64xf32> -> vector<16x64xf32>
    %cst_63 = arith.constant dense<0.000000e+00> : vector<16x64xf32>
    %93 = tpu.matmul %0, %91, %cst_63 {dimension_numbers = #tpu.dot_dimension_numbers<[1], [0], [0], [1], [0, 0, 1, 1], [], []>} : vector<16x1xf32>, vector<1x64xf32>, vector<16x64xf32> -> vector<16x64xf32>
    %94 = arith.mulf %67, %92 : vector<16x64xf32>
    %95 = arith.addf %94, %93 : vector<16x64xf32>
    %cst_64 = arith.constant 0.000000e+00 : f32
    %96 = vector.broadcast %cst_64 : f32 to vector<16x64xf32>
    %97 = arith.subf %96, %95 : vector<16x64xf32>
    %98 = math.exp %97 : vector<16x64xf32>
    %cst_65 = arith.constant 1.000000e+00 : f32
    %99 = vector.broadcast %cst_65 : f32 to vector<16x64xf32>
    %100 = arith.addf %99, %98 : vector<16x64xf32>
    %cst_66 = arith.constant 1.000000e+00 : f32
    %101 = vector.broadcast %cst_66 : f32 to vector<16x64xf32>
    %102 = arith.divf %101, %100 : vector<16x64xf32>
    %103 = arith.mulf %95, %102 : vector<16x64xf32>
    %c0_67 = arith.constant 0 : index
    %c0_68 = arith.constant 0 : index
    %104 = vector.load %arg20[%c0_67, %c0_68] : memref<1x64xf32, #tpu.memory_space<vmem>>, vector<1x64xf32>
    %c1_i32_69 = arith.constant 1 : i32
    %105 = tpu.dynamic_rotate %103 by %c1_i32_69 dim 0 : vector<16x64xf32>, i32 -> vector<16x64xf32>
    %106 = vector.broadcast %2 : vector<16x1xf32> to vector<16x64xf32>
    %107 = arith.mulf %105, %106 : vector<16x64xf32>
    %c15_i32_70 = arith.constant 15 : i32
    %108 = tpu.dynamic_rotate %103 by %c15_i32_70 dim 0 : vector<16x64xf32>, i32 -> vector<16x64xf32>
    %109 = vector.broadcast %3 : vector<16x1xf32> to vector<16x64xf32>
    %110 = arith.mulf %108, %109 : vector<16x64xf32>
    %c0_71 = arith.constant 0 : index
    %c0_72 = arith.constant 0 : index
    %111 = vector.load %arg19[%c0_71, %c0_72] : memref<192x64xf32, #tpu.memory_space<vmem>>, vector<64x64xf32>
    %cst_73 = arith.constant dense<0.000000e+00> : vector<16x64xf32>
    %112 = tpu.matmul %107, %111, %cst_73 {dimension_numbers = #tpu.dot_dimension_numbers<[1], [0], [0], [1], [0, 0, 1, 1], [], []>} : vector<16x64xf32>, vector<64x64xf32>, vector<16x64xf32> -> vector<16x64xf32>
    %c64_74 = arith.constant 64 : index
    %c0_75 = arith.constant 0 : index
    %113 = vector.load %arg19[%c64_74, %c0_75] : memref<192x64xf32, #tpu.memory_space<vmem>>, vector<64x64xf32>
    %cst_76 = arith.constant dense<0.000000e+00> : vector<16x64xf32>
    %114 = tpu.matmul %103, %113, %cst_76 {dimension_numbers = #tpu.dot_dimension_numbers<[1], [0], [0], [1], [0, 0, 1, 1], [], []>} : vector<16x64xf32>, vector<64x64xf32>, vector<16x64xf32> -> vector<16x64xf32>
    %115 = arith.addf %112, %114 : vector<16x64xf32>
    %c128 = arith.constant 128 : index
    %c0_77 = arith.constant 0 : index
    %116 = vector.load %arg19[%c128, %c0_77] : memref<192x64xf32, #tpu.memory_space<vmem>>, vector<64x64xf32>
    %cst_78 = arith.constant dense<0.000000e+00> : vector<16x64xf32>
    %117 = tpu.matmul %110, %116, %cst_78 {dimension_numbers = #tpu.dot_dimension_numbers<[1], [0], [0], [1], [0, 0, 1, 1], [], []>} : vector<16x64xf32>, vector<64x64xf32>, vector<16x64xf32> -> vector<16x64xf32>
    %118 = arith.addf %115, %117 : vector<16x64xf32>
    %119 = vector.broadcast %104 : vector<1x64xf32> to vector<16x64xf32>
    %120 = arith.addf %118, %119 : vector<16x64xf32>
    %c0_79 = arith.constant 0 : index
    %c0_80 = arith.constant 0 : index
    %121 = vector.load %arg21[%c0_79, %c0_80] : memref<32x64xf32, #tpu.memory_space<vmem>>, vector<32x64xf32>
    %cst_81 = arith.constant dense<0.000000e+00> : vector<16x64xf32>
    %122 = tpu.matmul %6, %121, %cst_81 {dimension_numbers = #tpu.dot_dimension_numbers<[1], [0], [0], [1], [0, 0, 1, 1], [], []>} : vector<16x32xf32>, vector<32x64xf32>, vector<16x64xf32> -> vector<16x64xf32>
    %123 = arith.addf %120, %122 : vector<16x64xf32>
    %c0_82 = arith.constant 0 : index
    %c0_83 = arith.constant 0 : index
    %124 = vector.load %arg22[%c0_82, %c0_83] : memref<1x64xf32, #tpu.memory_space<vmem>>, vector<1x64xf32>
    %125 = vector.broadcast %124 : vector<1x64xf32> to vector<16x64xf32>
    %126 = arith.addf %123, %125 : vector<16x64xf32>
    %127 = tpu.transpose %126, [1, 0] : vector<16x64xf32> -> vector<64x16xf32>
    %c0_84 = arith.constant 0 : index
    %c0_85 = arith.constant 0 : index
    %c0_86 = arith.constant 0 : index
    %128 = vector.load %arg23[%c0_84, %c0_85, %c0_86] : memref<1x64x16xf32, #tpu.memory_space<vmem>>, vector<1x64x16xf32>
    %129 = vector.shape_cast %128 : vector<1x64x16xf32> to vector<64x16xf32>
    %130 = vector.shape_cast %127 : vector<64x16xf32> to vector<1x64x16xf32>
    tpu.vector_store %arg23[%c0_84, %c0_85, %c0_86], %130 {strides = array<i32>} : memref<1x64x16xf32, #tpu.memory_space<vmem>>, vector<1x64x16xf32>,
    return
  }
  func.func @transform_0(%arg0: i32) -> (i32, i32, i32) {
    %c0_i32 = arith.constant 0 : i32
    %c0_i32_0 = arith.constant 0 : i32
    %c0_i32_1 = arith.constant 0 : i32
    return %arg0, %c0_i32, %c0_i32_0 : i32, i32, i32
  }
  func.func @transform_1(%arg0: i32) -> (i32, i32, i32) {
    %c0_i32 = arith.constant 0 : i32
    %c0_i32_0 = arith.constant 0 : i32
    %c0_i32_1 = arith.constant 0 : i32
    return %arg0, %c0_i32, %c0_i32_0 : i32, i32, i32
  }
  func.func @transform_2(%arg0: i32) -> (i32, i32) {
    %c0_i32 = arith.constant 0 : i32
    %c0_i32_0 = arith.constant 0 : i32
    %c0_i32_1 = arith.constant 0 : i32
    return %c0_i32, %c0_i32_0 : i32, i32
  }
  func.func @transform_3(%arg0: i32) -> (i32, i32) {
    %c0_i32 = arith.constant 0 : i32
    %c0_i32_0 = arith.constant 0 : i32
    %c0_i32_1 = arith.constant 0 : i32
    return %c0_i32, %c0_i32_0 : i32, i32
  }
  func.func @transform_4(%arg0: i32) -> (i32, i32) {
    %c0_i32 = arith.constant 0 : i32
    %c0_i32_0 = arith.constant 0 : i32
    %c0_i32_1 = arith.constant 0 : i32
    return %c0_i32, %c0_i32_0 : i32, i32
  }
  func.func @transform_5(%arg0: i32) -> (i32, i32) {
    %c0_i32 = arith.constant 0 : i32
    %c0_i32_0 = arith.constant 0 : i32
    %c0_i32_1 = arith.constant 0 : i32
    return %c0_i32, %c0_i32_0 : i32, i32
  }
  func.func @transform_6(%arg0: i32) -> (i32, i32) {
    %c0_i32 = arith.constant 0 : i32
    %c0_i32_0 = arith.constant 0 : i32
    %c0_i32_1 = arith.constant 0 : i32
    return %c0_i32, %c0_i32_0 : i32, i32
  }
  func.func @transform_7(%arg0: i32) -> (i32, i32) {
    %c0_i32 = arith.constant 0 : i32
    %c0_i32_0 = arith.constant 0 : i32
    %c0_i32_1 = arith.constant 0 : i32
    return %c0_i32, %c0_i32_0 : i32, i32
  }
  func.func @transform_8(%arg0: i32) -> (i32, i32) {
    %c0_i32 = arith.constant 0 : i32
    %c0_i32_0 = arith.constant 0 : i32
    %c0_i32_1 = arith.constant 0 : i32
    return %c0_i32, %c0_i32_0 : i32, i32
  }
  func.func @transform_9(%arg0: i32) -> (i32, i32) {
    %c0_i32 = arith.constant 0 : i32
    %c0_i32_0 = arith.constant 0 : i32
    %c0_i32_1 = arith.constant 0 : i32
    return %c0_i32, %c0_i32_0 : i32, i32
  }
  func.func @transform_10(%arg0: i32) -> (i32, i32) {
    %c0_i32 = arith.constant 0 : i32
    %c0_i32_0 = arith.constant 0 : i32
    %c0_i32_1 = arith.constant 0 : i32
    return %c0_i32, %c0_i32_0 : i32, i32
  }
  func.func @transform_11(%arg0: i32) -> (i32, i32) {
    %c0_i32 = arith.constant 0 : i32
    %c0_i32_0 = arith.constant 0 : i32
    %c0_i32_1 = arith.constant 0 : i32
    return %c0_i32, %c0_i32_0 : i32, i32
  }
  func.func @transform_12(%arg0: i32) -> (i32, i32) {
    %c0_i32 = arith.constant 0 : i32
    %c0_i32_0 = arith.constant 0 : i32
    %c0_i32_1 = arith.constant 0 : i32
    return %c0_i32, %c0_i32_0 : i32, i32
  }
  func.func @transform_13(%arg0: i32) -> (i32, i32) {
    %c0_i32 = arith.constant 0 : i32
    %c0_i32_0 = arith.constant 0 : i32
    %c0_i32_1 = arith.constant 0 : i32
    return %c0_i32, %c0_i32_0 : i32, i32
  }
  func.func @transform_14(%arg0: i32) -> (i32, i32) {
    %c0_i32 = arith.constant 0 : i32
    %c0_i32_0 = arith.constant 0 : i32
    %c0_i32_1 = arith.constant 0 : i32
    return %c0_i32, %c0_i32_0 : i32, i32
  }
  func.func @transform_15(%arg0: i32) -> (i32, i32) {
    %c0_i32 = arith.constant 0 : i32
    %c0_i32_0 = arith.constant 0 : i32
    %c0_i32_1 = arith.constant 0 : i32
    return %c0_i32, %c0_i32_0 : i32, i32
  }
  func.func @transform_16(%arg0: i32) -> (i32, i32) {
    %c0_i32 = arith.constant 0 : i32
    %c0_i32_0 = arith.constant 0 : i32
    %c0_i32_1 = arith.constant 0 : i32
    return %c0_i32, %c0_i32_0 : i32, i32
  }
  func.func @transform_17(%arg0: i32) -> (i32, i32) {
    %c0_i32 = arith.constant 0 : i32
    %c0_i32_0 = arith.constant 0 : i32
    %c0_i32_1 = arith.constant 0 : i32
    return %c0_i32, %c0_i32_0 : i32, i32
  }
  func.func @transform_18(%arg0: i32) -> (i32, i32) {
    %c0_i32 = arith.constant 0 : i32
    %c0_i32_0 = arith.constant 0 : i32
    %c0_i32_1 = arith.constant 0 : i32
    return %c0_i32, %c0_i32_0 : i32, i32
  }
  func.func @transform_19(%arg0: i32) -> (i32, i32) {
    %c0_i32 = arith.constant 0 : i32
    %c0_i32_0 = arith.constant 0 : i32
    %c0_i32_1 = arith.constant 0 : i32
    return %c0_i32, %c0_i32_0 : i32, i32
  }
  func.func @transform_20(%arg0: i32) -> (i32, i32) {
    %c0_i32 = arith.constant 0 : i32
    %c0_i32_0 = arith.constant 0 : i32
    %c0_i32_1 = arith.constant 0 : i32
    return %c0_i32, %c0_i32_0 : i32, i32
  }
  func.func @transform_21(%arg0: i32) -> (i32, i32) {
    %c0_i32 = arith.constant 0 : i32
    %c0_i32_0 = arith.constant 0 : i32
    %c0_i32_1 = arith.constant 0 : i32
    return %c0_i32, %c0_i32_0 : i32, i32
  }
  func.func @transform_22(%arg0: i32) -> (i32, i32, i32) {
    %c0_i32 = arith.constant 0 : i32
    %c0_i32_0 = arith.constant 0 : i32
    %c0_i32_1 = arith.constant 0 : i32
    return %arg0, %c0_i32, %c0_i32_0 : i32, i32, i32
  }
}

</mosaic_0001>

<llo_original>
// kernel: tpu_custom_call.1
$region0: #{tpu_custom_call.1}
  #allocation0 [shape = 'u32[]', space=smem, size = 0x4, offset = 0x4, fixed_abs, tag = 'smem constant byte address 0x4 - core index']
  #allocation1 [shape = 'u32[144,128]{1,0:T(1,128)}', space=vmem, size = 0x12000, scoped, tag = 'internal scratch']
  %s0 = inlined_call_operand.vmem [shape: f32[2,32,16], index: 0, kind: input, shape index: {}]
  %s1 = inlined_call_operand.vmem [shape: f32[2,1,32], index: 1, kind: input, shape index: {}]
  %s2 = inlined_call_operand.vmem [shape: f32[16,1], index: 2, kind: input, shape index: {}]
  %s3 = inlined_call_operand.vmem [shape: f32[1,16], index: 3, kind: input, shape index: {}]
  %s4 = inlined_call_operand.vmem [shape: f32[16,1], index: 4, kind: input, shape index: {}]
  %s5 = inlined_call_operand.vmem [shape: f32[16,1], index: 5, kind: input, shape index: {}]
  %s6 = inlined_call_operand.vmem [shape: f32[32,8], index: 6, kind: input, shape index: {}]
  %s7 = inlined_call_operand.vmem [shape: f32[8,32], index: 7, kind: input, shape index: {}]
  %s8 = inlined_call_operand.vmem [shape: f32[64,8], index: 8, kind: input, shape index: {}]
  %s9 = inlined_call_operand.vmem [shape: f32[8,64], index: 9, kind: input, shape index: {}]
  %s10 = inlined_call_operand.vmem [shape: f32[1,32], index: 10, kind: input, shape index: {}]
  %s11 = inlined_call_operand.vmem [shape: f32[1,32], index: 11, kind: input, shape index: {}]
  %s12 = inlined_call_operand.vmem [shape: f32[96,64], index: 12, kind: input, shape index: {}]
  %s13 = inlined_call_operand.vmem [shape: f32[1,64], index: 13, kind: input, shape index: {}]
  %s14 = inlined_call_operand.vmem [shape: f32[32,64], index: 14, kind: input, shape index: {}]
  %s15 = inlined_call_operand.vmem [shape: f32[1,64], index: 15, kind: input, shape index: {}]
  %s16 = inlined_call_operand.vmem [shape: f32[1,64], index: 16, kind: input, shape index: {}]
  %s17 = inlined_call_operand.vmem [shape: f32[1,64], index: 17, kind: input, shape index: {}]
  %s18 = inlined_call_operand.vmem [shape: f32[192,64], index: 18, kind: input, shape index: {}]
  %s19 = inlined_call_operand.vmem [shape: f32[1,64], index: 19, kind: input, shape index: {}]
  %s20 = inlined_call_operand.vmem [shape: f32[32,64], index: 20, kind: input, shape index: {}]
  %s21 = inlined_call_operand.vmem [shape: f32[1,64], index: 21, kind: input, shape index: {}]
  %s22 = inlined_call_operand.vmem [shape: f32[2,64,16], index: 22, kind: output, shape index: {}]
  %s23 = sld [smem:[#allocation0]]
  $region121: #{tpu_custom_call.1} parent=0
    _
  %s25 = ssub.s32 1, %s23
  %s26 = scalar_select 0, %s25, %s23
  loop: start=0, step=1, limit=4
  $region2: #{tpu_custom_call.1} parent=0 // loop_pre_header
    _
  $region3: #{tpu_custom_call.1} parent=0 // loop_header
    %s28 = sphi 0, %s32
    %p29 = scmp.ge.s32.totalorder %s28, 4
    %s38 = sphi 0, %s40
    %s41 = sphi 0, %s38
    %s42 = sphi 0, %s41
    %s58 = sphi 0, %s42
    %s64 = sphi 0, %s66
    %s67 = sphi 0, %s64
    %s68 = sphi 0, %s67
    %s84 = sphi 0, %s68
    %s88 = sphi 0, %s88
    %s90 = sphi 0, %s88
    %s91 = sphi 0, %s90
    %s105 = sphi 0, %s91
    %s109 = sphi 0, %s109
    %s111 = sphi 0, %s109
    %s112 = sphi 0, %s111
    %s126 = sphi 0, %s112
    %s130 = sphi 0, %s130
    %s132 = sphi 0, %s130
    %s133 = sphi 0, %s132
    %s147 = sphi 0, %s133
    %s151 = sphi 0, %s151
    %s153 = sphi 0, %s151
    %s154 = sphi 0, %s153
    %s168 = sphi 0, %s154
    %s172 = sphi 0, %s172
    %s174 = sphi 0, %s172
    %s175 = sphi 0, %s174
    %s189 = sphi 0, %s175
    %s193 = sphi 0, %s193
    %s195 = sphi 0, %s193
    %s196 = sphi 0, %s195
    %s210 = sphi 0, %s196
    %s214 = sphi 0, %s214
    %s216 = sphi 0, %s214
    %s217 = sphi 0, %s216
    %s231 = sphi 0, %s217
    %s235 = sphi 0, %s235
    %s237 = sphi 0, %s235
    %s238 = sphi 0, %s237
    %s252 = sphi 0, %s238
    %s256 = sphi 0, %s256
    %s258 = sphi 0, %s256
    %s259 = sphi 0, %s258
    %s273 = sphi 0, %s259
    %s277 = sphi 0, %s277
    %s279 = sphi 0, %s277
    %s280 = sphi 0, %s279
    %s294 = sphi 0, %s280
    %s298 = sphi 0, %s298
    %s300 = sphi 0, %s298
    %s301 = sphi 0, %s300
    %s315 = sphi 0, %s301
    %s319 = sphi 0, %s319
    %s321 = sphi 0, %s319
    %s322 = sphi 0, %s321
    %s336 = sphi 0, %s322
    %s340 = sphi 0, %s340
    %s342 = sphi 0, %s340
    %s343 = sphi 0, %s342
    %s357 = sphi 0, %s343
    %s361 = sphi 0, %s361
    %s363 = sphi 0, %s361
    %s364 = sphi 0, %s363
    %s378 = sphi 0, %s364
    %s382 = sphi 0, %s382
    %s384 = sphi 0, %s382
    %s385 = sphi 0, %s384
    %s399 = sphi 0, %s385
    %s403 = sphi 0, %s403
    %s405 = sphi 0, %s403
    %s406 = sphi 0, %s405
    %s420 = sphi 0, %s406
    %s424 = sphi 0, %s424
    %s426 = sphi 0, %s424
    %s427 = sphi 0, %s426
    %s441 = sphi 0, %s427
    %s445 = sphi 0, %s445
    %s447 = sphi 0, %s445
    %s448 = sphi 0, %s447
    %s462 = sphi 0, %s448
    %s466 = sphi 0, %s466
    %s468 = sphi 0, %s466
    %s469 = sphi 0, %s468
    %s483 = sphi 0, %s469
    %s487 = sphi 0, %s487
    %s489 = sphi 0, %s487
    %s490 = sphi 0, %s489
    %s504 = sphi 0, %s490
    %s510 = sphi 0, %s512
    %s513 = sphi 0, %s510
    %s514 = sphi 0, %s513
    %s530 = sphi 0, %s514
  $region4: #{tpu_custom_call.1} parent=0 // loop_header_branch
    %31 = sbr.rel (%p29) target = $region8
  $region5: #{tpu_custom_call.1} parent=0 // loop_body
    %s33 = ssub.s32 %s28, 1
    %s34 = ssub.s32 %s28, 2
    %s35 = sadd.s32 %s28, 1
    %s36 = ssub.s32 %s28, %s35
    %p37 = scmp.eq.s32.totalorder %s36, 0
    %s39 = sadd.s32 %s38, 1
    %s40 = scalar_select %p37, %s38, %s39
    %p43 = pneg %p37
    %p44 = scmp.eq.s32.totalorder %s28, 1
    %p45 = por %p43, %p44
    %p46 = scmp.ne.s32.totalorder %s38, %s41
    %p47 = scmp.eq.s32.totalorder %s28, 0
    %p48 = por %p46, %p47
    %p49 = scmp.ne.s32.totalorder %s38, %s41
    %p50 = scmp.eq.s32.totalorder %s33, 1
    %p51 = por %p49, %p50
    %p52 = scmp.ne.s32.totalorder %s41, %s42
    %p53 = scmp.eq.s32.totalorder %s33, 0
    %p54 = por %p52, %p53
    %p55 = scmp.ne.s32.totalorder %s41, %s42
    %p56 = scmp.eq.s32.totalorder %s34, 1
    %p57 = por %p55, %p56
    %p59 = scmp.ne.s32.totalorder %s42, %s58
    %p60 = scmp.eq.s32.totalorder %s34, 0
    %p61 = por %p59, %p60
    %s62 = ssub.s32 %s28, %s35
    %p63 = scmp.eq.s32.totalorder %s62, 0
    %s65 = sadd.s32 %s64, 1
    %s66 = scalar_select %p63, %s64, %s65
    %p69 = pneg %p63
    %p70 = scmp.eq.s32.totalorder %s28, 1
    %p71 = por %p69, %p70
    %p72 = scmp.ne.s32.totalorder %s64, %s67
    %p73 = scmp.eq.s32.totalorder %s28, 0
    %p74 = por %p72, %p73
    %p75 = scmp.ne.s32.totalorder %s64, %s67
    %p76 = scmp.eq.s32.totalorder %s33, 1
    %p77 = por %p75, %p76
    %p78 = scmp.ne.s32.totalorder %s67, %s68
    %p79 = scmp.eq.s32.totalorder %s33, 0
    %p80 = por %p78, %p79
    %p81 = scmp.ne.s32.totalorder %s67, %s68
    %p82 = scmp.eq.s32.totalorder %s34, 1
    %p83 = por %p81, %p82
    %p85 = scmp.ne.s32.totalorder %s68, %s84
    %p86 = scmp.eq.s32.totalorder %s34, 0
    %p87 = por %p85, %p86
    %s89 = sadd.s32 %s88, 1
    %p92 = scmp.eq.s32.totalorder %s28, 1
    %p93 = scmp.ne.s32.totalorder %s88, %s90
    %p94 = scmp.eq.s32.totalorder %s28, 0
    %p95 = por %p93, %p94
    %p96 = scmp.ne.s32.totalorder %s88, %s90
    %p97 = scmp.eq.s32.totalorder %s33, 1
    %p98 = por %p96, %p97
    %p99 = scmp.ne.s32.totalorder %s90, %s91
    %p100 = scmp.eq.s32.totalorder %s33, 0
    %p101 = por %p99, %p100
    %p102 = scmp.ne.s32.totalorder %s90, %s91
    %p103 = scmp.eq.s32.totalorder %s34, 1
    %p104 = por %p102, %p103
    %p106 = scmp.ne.s32.totalorder %s91, %s105
    %p107 = scmp.eq.s32.totalorder %s34, 0
    %p108 = por %p106, %p107
    %s110 = sadd.s32 %s109, 1
    %p113 = scmp.eq.s32.totalorder %s28, 1
    %p114 = scmp.ne.s32.totalorder %s109, %s111
    %p115 = scmp.eq.s32.totalorder %s28, 0
    %p116 = por %p114, %p115
    %p117 = scmp.ne.s32.totalorder %s109, %s111
    %p118 = scmp.eq.s32.totalorder %s33, 1
    %p119 = por %p117, %p118
    %p120 = scmp.ne.s32.totalorder %s111, %s112
    %p121 = scmp.eq.s32.totalorder %s33, 0
    %p122 = por %p120, %p121
    %p123 = scmp.ne.s32.totalorder %s111, %s112
    %p124 = scmp.eq.s32.totalorder %s34, 1
    %p125 = por %p123, %p124
    %p127 = scmp.ne.s32.totalorder %s112, %s126
    %p128 = scmp.eq.s32.totalorder %s34, 0
    %p129 = por %p127, %p128
    %s131 = sadd.s32 %s130, 1
    %p134 = scmp.eq.s32.totalorder %s28, 1
    %p135 = scmp.ne.s32.totalorder %s130, %s132
    %p136 = scmp.eq.s32.totalorder %s28, 0
    %p137 = por %p135, %p136
    %p138 = scmp.ne.s32.totalorder %s130, %s132
    %p139 = scmp.eq.s32.totalorder %s33, 1
    %p140 = por %p138, %p139
    %p141 = scmp.ne.s32.totalorder %s132, %s133
    %p142 = scmp.eq.s32.totalorder %s33, 0
    %p143 = por %p141, %p142
    %p144 = scmp.ne.s32.totalorder %s132, %s133
    %p145 = scmp.eq.s32.totalorder %s34, 1
    %p146 = por %p144, %p145
    %p148 = scmp.ne.s32.totalorder %s133, %s147
    %p149 = scmp.eq.s32.totalorder %s34, 0
    %p150 = por %p148, %p149
    %s152 = sadd.s32 %s151, 1
    %p155 = scmp.eq.s32.totalorder %s28, 1
    %p156 = scmp.ne.s32.totalorder %s151, %s153
    %p157 = scmp.eq.s32.totalorder %s28, 0
    %p158 = por %p156, %p157
    %p159 = scmp.ne.s32.totalorder %s151, %s153
    %p160 = scmp.eq.s32.totalorder %s33, 1
    %p161 = por %p159, %p160
    %p162 = scmp.ne.s32.totalorder %s153, %s154
    %p163 = scmp.eq.s32.totalorder %s33, 0
    %p164 = por %p162, %p163
    %p165 = scmp.ne.s32.totalorder %s153, %s154
    %p166 = scmp.eq.s32.totalorder %s34, 1
    %p167 = por %p165, %p166
    %p169 = scmp.ne.s32.totalorder %s154, %s168
    %p170 = scmp.eq.s32.totalorder %s34, 0
    %p171 = por %p169, %p170
    %s173 = sadd.s32 %s172, 1
    %p176 = scmp.eq.s32.totalorder %s28, 1
    %p177 = scmp.ne.s32.totalorder %s172, %s174
    %p178 = scmp.eq.s32.totalorder %s28, 0
    %p179 = por %p177, %p178
    %p180 = scmp.ne.s32.totalorder %s172, %s174
    %p181 = scmp.eq.s32.totalorder %s33, 1
    %p182 = por %p180, %p181
    %p183 = scmp.ne.s32.totalorder %s174, %s175
    %p184 = scmp.eq.s32.totalorder %s33, 0
    %p185 = por %p183, %p184
    %p186 = scmp.ne.s32.totalorder %s174, %s175
    %p187 = scmp.eq.s32.totalorder %s34, 1
    %p188 = por %p186, %p187
    %p190 = scmp.ne.s32.totalorder %s175, %s189
    %p191 = scmp.eq.s32.totalorder %s34, 0
    %p192 = por %p190, %p191
    %s194 = sadd.s32 %s193, 1
    %p197 = scmp.eq.s32.totalorder %s28, 1
    %p198 = scmp.ne.s32.totalorder %s193, %s195
    %p199 = scmp.eq.s32.totalorder %s28, 0
    %p200 = por %p198, %p199
    %p201 = scmp.ne.s32.totalorder %s193, %s195
    %p202 = scmp.eq.s32.totalorder %s33, 1
    %p203 = por %p201, %p202
    %p204 = scmp.ne.s32.totalorder %s195, %s196
    %p205 = scmp.eq.s32.totalorder %s33, 0
    %p206 = por %p204, %p205
    %p207 = scmp.ne.s32.totalorder %s195, %s196
    %p208 = scmp.eq.s32.totalorder %s34, 1
    %p209 = por %p207, %p208
    %p211 = scmp.ne.s32.totalorder %s196, %s210
    %p212 = scmp.eq.s32.totalorder %s34, 0
    %p213 = por %p211, %p212
    %s215 = sadd.s32 %s214, 1
    %p218 = scmp.eq.s32.totalorder %s28, 1
    %p219 = scmp.ne.s32.totalorder %s214, %s216
    %p220 = scmp.eq.s32.totalorder %s28, 0
    %p221 = por %p219, %p220
    %p222 = scmp.ne.s32.totalorder %s214, %s216
    %p223 = scmp.eq.s32.totalorder %s33, 1
    %p224 = por %p222, %p223
    %p225 = scmp.ne.s32.totalorder %s216, %s217
    %p226 = scmp.eq.s32.totalorder %s33, 0
    %p227 = por %p225, %p226
    %p228 = scmp.ne.s32.totalorder %s216, %s217
    %p229 = scmp.eq.s32.totalorder %s34, 1
    %p230 = por %p228, %p229
    %p232 = scmp.ne.s32.totalorder %s217, %s231
    %p233 = scmp.eq.s32.totalorder %s34, 0
    %p234 = por %p232, %p233
    %s236 = sadd.s32 %s235, 1
    %p239 = scmp.eq.s32.totalorder %s28, 1
    %p240 = scmp.ne.s32.totalorder %s235, %s237
    %p241 = scmp.eq.s32.totalorder %s28, 0
    %p242 = por %p240, %p241
    %p243 = scmp.ne.s32.totalorder %s235, %s237
    %p244 = scmp.eq.s32.totalorder %s33, 1
    %p245 = por %p243, %p244
    %p246 = scmp.ne.s32.totalorder %s237, %s238
    %p247 = scmp.eq.s32.totalorder %s33, 0
    %p248 = por %p246, %p247
    %p249 = scmp.ne.s32.totalorder %s237, %s238
    %p250 = scmp.eq.s32.totalorder %s34, 1
    %p251 = por %p249, %p250
    %p253 = scmp.ne.s32.totalorder %s238, %s252
    %p254 = scmp.eq.s32.totalorder %s34, 0
    %p255 = por %p253, %p254
    %s257 = sadd.s32 %s256, 1
    %p260 = scmp.eq.s32.totalorder %s28, 1
    %p261 = scmp.ne.s32.totalorder %s256, %s258
    %p262 = scmp.eq.s32.totalorder %s28, 0
    %p263 = por %p261, %p262
    %p264 = scmp.ne.s32.totalorder %s256, %s258
    %p265 = scmp.eq.s32.totalorder %s33, 1
    %p266 = por %p264, %p265
    %p267 = scmp.ne.s32.totalorder %s258, %s259
    %p268 = scmp.eq.s32.totalorder %s33, 0
    %p269 = por %p267, %p268
    %p270 = scmp.ne.s32.totalorder %s258, %s259
    %p271 = scmp.eq.s32.totalorder %s34, 1
    %p272 = por %p270, %p271
    %p274 = scmp.ne.s32.totalorder %s259, %s273
    %p275 = scmp.eq.s32.totalorder %s34, 0
    %p276 = por %p274, %p275
    %s278 = sadd.s32 %s277, 1
    %p281 = scmp.eq.s32.totalorder %s28, 1
    %p282 = scmp.ne.s32.totalorder %s277, %s279
    %p283 = scmp.eq.s32.totalorder %s28, 0
    %p284 = por %p282, %p283
    %p285 = scmp.ne.s32.totalorder %s277, %s279
    %p286 = scmp.eq.s32.totalorder %s33, 1
    %p287 = por %p285, %p286
    %p288 = scmp.ne.s32.totalorder %s279, %s280
    %p289 = scmp.eq.s32.totalorder %s33, 0
    %p290 = por %p288, %p289
    %p291 = scmp.ne.s32.totalorder %s279, %s280
    %p292 = scmp.eq.s32.totalorder %s34, 1
    %p293 = por %p291, %p292
    %p295 = scmp.ne.s32.totalorder %s280, %s294
    %p296 = scmp.eq.s32.totalorder %s34, 0
    %p297 = por %p295, %p296
    %s299 = sadd.s32 %s298, 1
    %p302 = scmp.eq.s32.totalorder %s28, 1
    %p303 = scmp.ne.s32.totalorder %s298, %s300
    %p304 = scmp.eq.s32.totalorder %s28, 0
    %p305 = por %p303, %p304
    %p306 = scmp.ne.s32.totalorder %s298, %s300
    %p307 = scmp.eq.s32.totalorder %s33, 1
    %p308 = por %p306, %p307
    %p309 = scmp.ne.s32.totalorder %s300, %s301
    %p310 = scmp.eq.s32.totalorder %s33, 0
    %p311 = por %p309, %p310
    %p312 = scmp.ne.s32.totalorder %s300, %s301
    %p313 = scmp.eq.s32.totalorder %s34, 1
    %p314 = por %p312, %p313
    %p316 = scmp.ne.s32.totalorder %s301, %s315
    %p317 = scmp.eq.s32.totalorder %s34, 0
    %p318 = por %p316, %p317
    %s320 = sadd.s32 %s319, 1
    %p323 = scmp.eq.s32.totalorder %s28, 1
    %p324 = scmp.ne.s32.totalorder %s319, %s321
    %p325 = scmp.eq.s32.totalorder %s28, 0
    %p326 = por %p324, %p325
    %p327 = scmp.ne.s32.totalorder %s319, %s321
    %p328 = scmp.eq.s32.totalorder %s33, 1
    %p329 = por %p327, %p328
    %p330 = scmp.ne.s32.totalorder %s321, %s322
    %p331 = scmp.eq.s32.totalorder %s33, 0
    %p332 = por %p330, %p331
    %p333 = scmp.ne.s32.totalorder %s321, %s322
    %p334 = scmp.eq.s32.totalorder %s34, 1
    %p335 = por %p333, %p334
    %p337 = scmp.ne.s32.totalorder %s322, %s336
    %p338 = scmp.eq.s32.totalorder %s34, 0
    %p339 = por %p337, %p338
    %s341 = sadd.s32 %s340, 1
    %p344 = scmp.eq.s32.totalorder %s28, 1
    %p345 = scmp.ne.s32.totalorder %s340, %s342
    %p346 = scmp.eq.s32.totalorder %s28, 0
    %p347 = por %p345, %p346
    %p348 = scmp.ne.s32.totalorder %s340, %s342
    %p349 = scmp.eq.s32.totalorder %s33, 1
    %p350 = por %p348, %p349
    %p351 = scmp.ne.s32.totalorder %s342, %s343
    %p352 = scmp.eq.s32.totalorder %s33, 0
    %p353 = por %p351, %p352
    %p354 = scmp.ne.s32.totalorder %s342, %s343
    %p355 = scmp.eq.s32.totalorder %s34, 1
    %p356 = por %p354, %p355
    %p358 = scmp.ne.s32.totalorder %s343, %s357
    %p359 = scmp.eq.s32.totalorder %s34, 0
    %p360 = por %p358, %p359
    %s362 = sadd.s32 %s361, 1
    %p365 = scmp.eq.s32.totalorder %s28, 1
    %p366 = scmp.ne.s32.totalorder %s361, %s363
    %p367 = scmp.eq.s32.totalorder %s28, 0
    %p368 = por %p366, %p367
    %p369 = scmp.ne.s32.totalorder %s361, %s363
    %p370 = scmp.eq.s32.totalorder %s33, 1
    %p371 = por %p369, %p370
    %p372 = scmp.ne.s32.totalorder %s363, %s364
    %p373 = scmp.eq.s32.totalorder %s33, 0
    %p374 = por %p372, %p373
    %p375 = scmp.ne.s32.totalorder %s363, %s364
    %p376 = scmp.eq.s32.totalorder %s34, 1
    %p377 = por %p375, %p376
    %p379 = scmp.ne.s32.totalorder %s364, %s378
    %p380 = scmp.eq.s32.totalorder %s34, 0
    %p381 = por %p379, %p380
    %s383 = sadd.s32 %s382, 1
    %p386 = scmp.eq.s32.totalorder %s28, 1
    %p387 = scmp.ne.s32.totalorder %s382, %s384
    %p388 = scmp.eq.s32.totalorder %s28, 0
    %p389 = por %p387, %p388
    %p390 = scmp.ne.s32.totalorder %s382, %s384
    %p391 = scmp.eq.s32.totalorder %s33, 1
    %p392 = por %p390, %p391
    %p393 = scmp.ne.s32.totalorder %s384, %s385
    %p394 = scmp.eq.s32.totalorder %s33, 0
    %p395 = por %p393, %p394
    %p396 = scmp.ne.s32.totalorder %s384, %s385
    %p397 = scmp.eq.s32.totalorder %s34, 1
    %p398 = por %p396, %p397
    %p400 = scmp.ne.s32.totalorder %s385, %s399
    %p401 = scmp.eq.s32.totalorder %s34, 0
    %p402 = por %p400, %p401
    %s404 = sadd.s32 %s403, 1
    %p407 = scmp.eq.s32.totalorder %s28, 1
    %p408 = scmp.ne.s32.totalorder %s403, %s405
    %p409 = scmp.eq.s32.totalorder %s28, 0
    %p410 = por %p408, %p409
    %p411 = scmp.ne.s32.totalorder %s403, %s405
    %p412 = scmp.eq.s32.totalorder %s33, 1
    %p413 = por %p411, %p412
    %p414 = scmp.ne.s32.totalorder %s405, %s406
    %p415 = scmp.eq.s32.totalorder %s33, 0
    %p416 = por %p414, %p415
    %p417 = scmp.ne.s32.totalorder %s405, %s406
    %p418 = scmp.eq.s32.totalorder %s34, 1
    %p419 = por %p417, %p418
    %p421 = scmp.ne.s32.totalorder %s406, %s420
    %p422 = scmp.eq.s32.totalorder %s34, 0
    %p423 = por %p421, %p422
    %s425 = sadd.s32 %s424, 1
    %p428 = scmp.eq.s32.totalorder %s28, 1
    %p429 = scmp.ne.s32.totalorder %s424, %s426
    %p430 = scmp.eq.s32.totalorder %s28, 0
    %p431 = por %p429, %p430
    %p432 = scmp.ne.s32.totalorder %s424, %s426
    %p433 = scmp.eq.s32.totalorder %s33, 1
    %p434 = por %p432, %p433
    %p435 = scmp.ne.s32.totalorder %s426, %s427
    %p436 = scmp.eq.s32.totalorder %s33, 0
    %p437 = por %p435, %p436
    %p438 = scmp.ne.s32.totalorder %s426, %s427
    %p439 = scmp.eq.s32.totalorder %s34, 1
    %p440 = por %p438, %p439
    %p442 = scmp.ne.s32.totalorder %s427, %s441
    %p443 = scmp.eq.s32.totalorder %s34, 0
    %p444 = por %p442, %p443
    %s446 = sadd.s32 %s445, 1
    %p449 = scmp.eq.s32.totalorder %s28, 1
    %p450 = scmp.ne.s32.totalorder %s445, %s447
    %p451 = scmp.eq.s32.totalorder %s28, 0
    %p452 = por %p450, %p451
    %p453 = scmp.ne.s32.totalorder %s445, %s447
    %p454 = scmp.eq.s32.totalorder %s33, 1
    %p455 = por %p453, %p454
    %p456 = scmp.ne.s32.totalorder %s447, %s448
    %p457 = scmp.eq.s32.totalorder %s33, 0
    %p458 = por %p456, %p457
    %p459 = scmp.ne.s32.totalorder %s447, %s448
    %p460 = scmp.eq.s32.totalorder %s34, 1
    %p461 = por %p459, %p460
    %p463 = scmp.ne.s32.totalorder %s448, %s462
    %p464 = scmp.eq.s32.totalorder %s34, 0
    %p465 = por %p463, %p464
    %s467 = sadd.s32 %s466, 1
    %p470 = scmp.eq.s32.totalorder %s28, 1
    %p471 = scmp.ne.s32.totalorder %s466, %s468
    %p472 = scmp.eq.s32.totalorder %s28, 0
    %p473 = por %p471, %p472
    %p474 = scmp.ne.s32.totalorder %s466, %s468
    %p475 = scmp.eq.s32.totalorder %s33, 1
    %p476 = por %p474, %p475
    %p477 = scmp.ne.s32.totalorder %s468, %s469
    %p478 = scmp.eq.s32.totalorder %s33, 0
    %p479 = por %p477, %p478
    %p480 = scmp.ne.s32.totalorder %s468, %s469
    %p481 = scmp.eq.s32.totalorder %s34, 1
    %p482 = por %p480, %p481
    %p484 = scmp.ne.s32.totalorder %s469, %s483
    %p485 = scmp.eq.s32.totalorder %s34, 0
    %p486 = por %p484, %p485
    %s488 = sadd.s32 %s487, 1
    %p491 = scmp.eq.s32.totalorder %s28, 1
    %p492 = scmp.ne.s32.totalorder %s487, %s489
    %p493 = scmp.eq.s32.totalorder %s28, 0
    %p494 = por %p492, %p493
    %p495 = scmp.ne.s32.totalorder %s487, %s489
    %p496 = scmp.eq.s32.totalorder %s33, 1
    %p497 = por %p495, %p496
    %p498 = scmp.ne.s32.totalorder %s489, %s490
    %p499 = scmp.eq.s32.totalorder %s33, 0
    %p500 = por %p498, %p499
    %p501 = scmp.ne.s32.totalorder %s489, %s490
    %p502 = scmp.eq.s32.totalorder %s34, 1
    %p503 = por %p501, %p502
    %p505 = scmp.ne.s32.totalorder %s490, %s504
    %p506 = scmp.eq.s32.totalorder %s34, 0
    %p507 = por %p505, %p506
    %s508 = ssub.s32 %s28, %s35
    %p509 = scmp.eq.s32.totalorder %s508, 0
    %s511 = sadd.s32 %s510, 1
    %s512 = scalar_select %p509, %s510, %s511
    %p515 = pneg %p509
    %p516 = scmp.eq.s32.totalorder %s28, 1
    %p517 = por %p515, %p516
    %p518 = scmp.ne.s32.totalorder %s510, %s513
    %p519 = scmp.eq.s32.totalorder %s28, 0
    %p520 = por %p518, %p519
    %p521 = scmp.ne.s32.totalorder %s510, %s513
    %p522 = scmp.eq.s32.totalorder %s33, 1
    %p523 = por %p521, %p522
    %p524 = scmp.ne.s32.totalorder %s513, %s514
    %p525 = scmp.eq.s32.totalorder %s33, 0
    %p526 = por %p524, %p525
    %p527 = scmp.ne.s32.totalorder %s513, %s514
    %p528 = scmp.eq.s32.totalorder %s34, 1
    %p529 = por %p527, %p528
    %p531 = scmp.ne.s32.totalorder %s514, %s530
    %p532 = scmp.eq.s32.totalorder %s34, 0
    %p533 = por %p531, %p532
    %p534 = scmp.le.s32.totalorder 1, %s28
    %p535 = scmp.lt.s32.totalorder %s28, 3
    %p536 = pnand %p534, %p535
    %p537 = pneg %p536
    // Predicated region
    $region9: #{tpu_custom_call.1} parent=5 // pred_check
      _
    $region10: #{tpu_custom_call.1} parent=5 // pred_check_branch
      %539 = sbr.rel (%p536) target = $region12
    $region11: #{tpu_custom_call.1} parent=5 // pred_region
      %s540 = ssub.s32 %s28, 1
      // Predicated region
      $region13: #{tpu_custom_call.1} parent=11 // pred_check
        %p541 = pneg %p101
      $region14: #{tpu_custom_call.1} parent=11 // pred_check_branch
        %543 = sbr.rel (%p541) target = $region16
      $region15: #{tpu_custom_call.1} parent=11 // pred_region
        _
      $region16: #{tpu_custom_call.1} parent=11 // pred_fallthru
        _
      // Predicated region
      $region17: #{tpu_custom_call.1} parent=11 // pred_check
        %p544 = pneg %p122
      $region18: #{tpu_custom_call.1} parent=11 // pred_check_branch
        %546 = sbr.rel (%p544) target = $region20
      $region19: #{tpu_custom_call.1} parent=11 // pred_region
        _
      $region20: #{tpu_custom_call.1} parent=11 // pred_fallthru
        _
      // Predicated region
      $region21: #{tpu_custom_call.1} parent=11 // pred_check
        %p547 = pneg %p143
      $region22: #{tpu_custom_call.1} parent=11 // pred_check_branch
        %549 = sbr.rel (%p547) target = $region24
      $region23: #{tpu_custom_call.1} parent=11 // pred_region
        _
      $region24: #{tpu_custom_call.1} parent=11 // pred_fallthru
        _
      // Predicated region
      $region25: #{tpu_custom_call.1} parent=11 // pred_check
        %p550 = pneg %p164
      $region26: #{tpu_custom_call.1} parent=11 // pred_check_branch
        %552 = sbr.rel (%p550) target = $region28
      $region27: #{tpu_custom_call.1} parent=11 // pred_region
        _
      $region28: #{tpu_custom_call.1} parent=11 // pred_fallthru
        _
      // Predicated region
      $region29: #{tpu_custom_call.1} parent=11 // pred_check
        %p553 = pneg %p185
      $region30: #{tpu_custom_call.1} parent=11 // pred_check_branch
        %555 = sbr.rel (%p553) target = $region32
      $region31: #{tpu_custom_call.1} parent=11 // pred_region
        _
      $region32: #{tpu_custom_call.1} parent=11 // pred_fallthru
        _
      // Predicated region
      $region33: #{tpu_custom_call.1} parent=11 // pred_check
        %p556 = pneg %p206
      $region34: #{tpu_custom_call.1} parent=11 // pred_check_branch
        %558 = sbr.rel (%p556) target = $region36
      $region35: #{tpu_custom_call.1} parent=11 // pred_region
        _
      $region36: #{tpu_custom_call.1} parent=11 // pred_fallthru
        _
      // Predicated region
      $region37: #{tpu_custom_call.1} parent=11 // pred_check
        %p559 = pneg %p227
      $region38: #{tpu_custom_call.1} parent=11 // pred_check_branch
        %561 = sbr.rel (%p559) target = $region40
      $region39: #{tpu_custom_call.1} parent=11 // pred_region
        _
      $region40: #{tpu_custom_call.1} parent=11 // pred_fallthru
        _
      // Predicated region
      $region41: #{tpu_custom_call.1} parent=11 // pred_check
        %p562 = pneg %p248
      $region42: #{tpu_custom_call.1} parent=11 // pred_check_branch
        %564 = sbr.rel (%p562) target = $region44
      $region43: #{tpu_custom_call.1} parent=11 // pred_region
        _
      $region44: #{tpu_custom_call.1} parent=11 // pred_fallthru
        _
      // Predicated region
      $region45: #{tpu_custom_call.1} parent=11 // pred_check
        %p565 = pneg %p269
      $region46: #{tpu_custom_call.1} parent=11 // pred_check_branch
        %567 = sbr.rel (%p565) target = $region48
      $region47: #{tpu_custom_call.1} parent=11 // pred_region
        _
      $region48: #{tpu_custom_call.1} parent=11 // pred_fallthru
        _
      // Predicated region
      $region49: #{tpu_custom_call.1} parent=11 // pred_check
        %p568 = pneg %p290
      $region50: #{tpu_custom_call.1} parent=11 // pred_check_branch
        %570 = sbr.rel (%p568) target = $region52
      $region51: #{tpu_custom_call.1} parent=11 // pred_region
        _
      $region52: #{tpu_custom_call.1} parent=11 // pred_fallthru
        _
      // Predicated region
      $region53: #{tpu_custom_call.1} parent=11 // pred_check
        %p571 = pneg %p311
      $region54: #{tpu_custom_call.1} parent=11 // pred_check_branch
        %573 = sbr.rel (%p571) target = $region56
      $region55: #{tpu_custom_call.1} parent=11 // pred_region
        _
      $region56: #{tpu_custom_call.1} parent=11 // pred_fallthru
        _
      // Predicated region
      $region57: #{tpu_custom_call.1} parent=11 // pred_check
        %p574 = pneg %p332
      $region58: #{tpu_custom_call.1} parent=11 // pred_check_branch
        %576 = sbr.rel (%p574) target = $region60
      $region59: #{tpu_custom_call.1} parent=11 // pred_region
        _
      $region60: #{tpu_custom_call.1} parent=11 // pred_fallthru
        _
      // Predicated region
      $region61: #{tpu_custom_call.1} parent=11 // pred_check
        %p577 = pneg %p353
      $region62: #{tpu_custom_call.1} parent=11 // pred_check_branch
        %579 = sbr.rel (%p577) target = $region64
      $region63: #{tpu_custom_call.1} parent=11 // pred_region
        _
      $region64: #{tpu_custom_call.1} parent=11 // pred_fallthru
        _
      // Predicated region
      $region65: #{tpu_custom_call.1} parent=11 // pred_check
        %p580 = pneg %p374
      $region66: #{tpu_custom_call.1} parent=11 // pred_check_branch
        %582 = sbr.rel (%p580) target = $region68
      $region67: #{tpu_custom_call.1} parent=11 // pred_region
        _
      $region68: #{tpu_custom_call.1} parent=11 // pred_fallthru
        _
      // Predicated region
      $region69: #{tpu_custom_call.1} parent=11 // pred_check
        %p583 = pneg %p395
      $region70: #{tpu_custom_call.1} parent=11 // pred_check_branch
        %585 = sbr.rel (%p583) target = $region72
      $region71: #{tpu_custom_call.1} parent=11 // pred_region
        _
      $region72: #{tpu_custom_call.1} parent=11 // pred_fallthru
        _
      // Predicated region
      $region73: #{tpu_custom_call.1} parent=11 // pred_check
        %p586 = pneg %p416
      $region74: #{tpu_custom_call.1} parent=11 // pred_check_branch
        %588 = sbr.rel (%p586) target = $region76
      $region75: #{tpu_custom_call.1} parent=11 // pred_region
        _
      $region76: #{tpu_custom_call.1} parent=11 // pred_fallthru
        _
      // Predicated region
      $region77: #{tpu_custom_call.1} parent=11 // pred_check
        %p589 = pneg %p437
      $region78: #{tpu_custom_call.1} parent=11 // pred_check_branch
        %591 = sbr.rel (%p589) target = $region80
      $region79: #{tpu_custom_call.1} parent=11 // pred_region
        _
      $region80: #{tpu_custom_call.1} parent=11 // pred_fallthru
        _
      // Predicated region
      $region81: #{tpu_custom_call.1} parent=11 // pred_check
        %p592 = pneg %p458
      $region82: #{tpu_custom_call.1} parent=11 // pred_check_branch
        %594 = sbr.rel (%p592) target = $region84
      $region83: #{tpu_custom_call.1} parent=11 // pred_region
        _
      $region84: #{tpu_custom_call.1} parent=11 // pred_fallthru
        _
      // Predicated region
      $region85: #{tpu_custom_call.1} parent=11 // pred_check
        %p595 = pneg %p479
      $region86: #{tpu_custom_call.1} parent=11 // pred_check_branch
        %597 = sbr.rel (%p595) target = $region88
      $region87: #{tpu_custom_call.1} parent=11 // pred_region
        _
      $region88: #{tpu_custom_call.1} parent=11 // pred_fallthru
        _
      // Predicated region
      $region89: #{tpu_custom_call.1} parent=11 // pred_check
        %p598 = pneg %p500
      $region90: #{tpu_custom_call.1} parent=11 // pred_check_branch
        %600 = sbr.rel (%p598) target = $region92
      $region91: #{tpu_custom_call.1} parent=11 // pred_region
        _
      $region92: #{tpu_custom_call.1} parent=11 // pred_fallthru
        _
    $region12: #{tpu_custom_call.1} parent=5 // pred_fallthru
      _
    %p601 = scmp.lt.s32.totalorder %s28, 2
    // Predicated region
    $region93: #{tpu_custom_call.1} parent=5 // pred_check
      %p602 = pneg %p601
    $region94: #{tpu_custom_call.1} parent=5 // pred_check_branch
      %604 = sbr.rel (%p602) target = $region96
    $region95: #{tpu_custom_call.1} parent=5 // pred_region
      // Predicated region
      $region97: #{tpu_custom_call.1} parent=95 // pred_check
        %p605 = pneg %p48
      $region98: #{tpu_custom_call.1} parent=95 // pred_check_branch
        %607 = sbr.rel (%p605) target = $region100
      $region99: #{tpu_custom_call.1} parent=95 // pred_region
        %p608 = scmp.lt.s32.totalorder %s28, 1
        %s609 = scalar_select %p608, %s28, 1
        %s610 = smul.addr %s609, 4
        %s611 = smul.addr %s610, 8
        %s612 = scalar_lea.vmem %s0, %s611
      $region100: #{tpu_custom_call.1} parent=95 // pred_fallthru
        _
      // Predicated region
      $region101: #{tpu_custom_call.1} parent=95 // pred_check
        %p613 = pneg %p74
      $region102: #{tpu_custom_call.1} parent=95 // pred_check_branch
        %615 = sbr.rel (%p613) target = $region104
      $region103: #{tpu_custom_call.1} parent=95 // pred_region
        %p616 = scmp.lt.s32.totalorder %s28, 1
        %s617 = scalar_select %p616, %s28, 1
        %s618 = scalar_lea.vmem %s1, %s617
      $region104: #{tpu_custom_call.1} parent=95 // pred_fallthru
        _
    $region96: #{tpu_custom_call.1} parent=5 // pred_fallthru
      _
    %p619 = scmp.le.s32.totalorder 1, %s28
    %p620 = scmp.lt.s32.totalorder %s28, 3
    %p621 = pnand %p619, %p620
    %p622 = pneg %p621
    // Predicated region
    $region105: #{tpu_custom_call.1} parent=5 // pred_check
      _
    $region106: #{tpu_custom_call.1} parent=5 // pred_check_branch
      %624 = sbr.rel (%p621) target = $region108
    $region107: #{tpu_custom_call.1} parent=5 // pred_region
      %s625 = ssub.s32 %s28, 1
      %p626 = scmp.lt.s32.totalorder %s33, 1
      %s627 = scalar_select %p626, %s33, 1
      %s628 = smul.addr %s627, 4
      %s629 = smul.addr %s628, 8
      %s630 = scalar_lea.vmem %s0, %s629
      %p631 = pneg %p54
      %p632 = pneg %p51
      %p633 = scmp.lt.s32.totalorder %s33, 1
      %s634 = scalar_select %p633, %s33, 1
      %s635 = scalar_lea.vmem %s1, %s634
      %p636 = pneg %p80
      %p637 = pneg %p77
      %p638 = pneg %p101
      %p639 = pneg %p98
      %p640 = pneg %p122
      %p641 = pneg %p119
      %p642 = pneg %p143
      %p643 = pneg %p140
      %p644 = pneg %p164
      %p645 = pneg %p161
      %p646 = pneg %p185
      %p647 = pneg %p182
      %p648 = pneg %p206
      %p649 = pneg %p203
      %p650 = pneg %p227
      %p651 = pneg %p224
      %p652 = pneg %p248
      %p653 = pneg %p245
      %p654 = pneg %p269
      %p655 = pneg %p266
      %p656 = pneg %p290
      %p657 = pneg %p287
      %p658 = pneg %p311
      %p659 = pneg %p308
      %p660 = pneg %p332
      %p661 = pneg %p329
      %p662 = pneg %p353
      %p663 = pneg %p350
      %p664 = pneg %p374
      %p665 = pneg %p371
      %p666 = pneg %p395
      %p667 = pneg %p392
      %p668 = pneg %p416
      %p669 = pneg %p413
      %p670 = pneg %p437
      %p671 = pneg %p434
      %p672 = pneg %p458
      %p673 = pneg %p455
      %p674 = pneg %p479
      %p675 = pneg %p476
      %p676 = pneg %p500
      %p677 = pneg %p497
      %p678 = pneg %p526
      %p679 = pneg %p523
      %p680 = scmp.lt.s32.totalorder %s33, 1
      %s681 = scalar_select %p680, %s33, 1
      %s682 = smul.addr %s681, 8
      %s683 = smul.addr %s682, 8
      %s684 = scalar_lea.vmem %s22, %s683
      %p685 = scmp.lt.s32.totalorder %s33, 1
      %s686 = scalar_select %p685, %s33, 1
      %s687 = smul.addr %s686, 4
      %s688 = smul.addr %s687, 8
      %s689 = scalar_lea.vmem %s0, %s688
      %p690 = scmp.lt.s32.totalorder %s33, 1
      %s691 = scalar_select %p690, %s33, 1
      %s692 = scalar_lea.vmem %s1, %s691
      %p693 = scmp.lt.s32.totalorder %s33, 1
      %s694 = scalar_select %p693, %s33, 1
      %s695 = smul.addr %s694, 8
      %s696 = smul.addr %s695, 8
      %s697 = scalar_lea.vmem %s22, %s696
      %v698 = vld [vmem:[%s2] sm:$0xff]
      %v699 = vld [vmem:[%s2 + $0x8] sm:$0xff]
      %v700 = vld [vmem:[%s3] sm:$0x1]
      %v701 = vld [vmem:[%s4] sm:$0xff]
      %v702 = vld [vmem:[%s4 + $0x8] sm:$0xff]
      %v703 = vld [vmem:[%s5] sm:$0xff]
      %v704 = vld [vmem:[%s5 + $0x8] sm:$0xff]
      %v705 = vld [vmem:[%s689] sm:$0xff]
      %v706 = vld [vmem:[%s689 + $0x8] sm:$0xff]
      %v707 = vld [vmem:[%s689 + $0x10] sm:$0xff]
      %v708 = vld [vmem:[%s689 + $0x18] sm:$0xff]
      %709 = vxpose.xlu0.b32.start [1/16] %v705, 128
      %710 = vxpose.xlu0.b32.cont [2/16] %v706, 128
      %711 = vxpose.xlu0.b32.cont [3/16] %v707, 128
      %712 = vxpose.xlu0.b32.cont [4/16] %v708, 128
      %713 = vxpose.xlu0.b32.cont [5/16] 0.0, 128
      %714 = vxpose.xlu0.b32.cont [6/16] 0.0, 128
      %715 = vxpose.xlu0.b32.cont [7/16] 0.0, 128
      %716 = vxpose.xlu0.b32.cont [8/16] 0.0, 128
      %717 = vxpose.xlu0.b32.cont [9/16] 0.0, 128
      %718 = vxpose.xlu0.b32.cont [10/16] 0.0, 128
      %719 = vxpose.xlu0.b32.cont [11/16] 0.0, 128
      %720 = vxpose.xlu0.b32.cont [12/16] 0.0, 128
      %721 = vxpose.xlu0.b32.cont [13/16] 0.0, 128
      %722 = vxpose.xlu0.b32.cont [14/16] 0.0, 128
      %723 = vxpose.xlu0.b32.cont [15/16] 0.0, 128
      %724 = vxpose.xlu0.b32.end [16/16] 0.0, 128
      %v725 = vpop.trf.xlu0
      %v726 = vpop.trf.xlu0
      %v727 = vpop.trf.xlu0
      %v728 = vpop.trf.xlu0
      %v729 = vpop.trf.xlu0
      %v730 = vpop.trf.xlu0
      %v731 = vpop.trf.xlu0
      %v732 = vpop.trf.xlu0
      %v733 = vpop.trf.xlu0
      %v734 = vpop.trf.xlu0
      %v735 = vpop.trf.xlu0
      %v736 = vpop.trf.xlu0
      %v737 = vpop.trf.xlu0
      %v738 = vpop.trf.xlu0
      %v739 = vpop.trf.xlu0
      %v740 = vpop.trf.xlu0
      %v741 = vld [vmem:[%s6] sm:$0xff]
      %v742 = vld [vmem:[%s6 + $0x8] sm:$0xff]
      %v743 = vld [vmem:[%s6 + $0x10] sm:$0xff]
      %v744 = vld [vmem:[%s6 + $0x18] sm:$0xff]
      %v745 = vld [vmem:[%s7] sm:$0xff]
      %v746 = vld [vmem:[%s10] sm:$0x1]
      %v747 = vld [vmem:[%s11] sm:$0x1]
      %vm748 = vcmask 130048
      %v750 = vsel %vm748, %v700, 0
      %752 = vmatprep.subr.mxu0 0.0
      %753 = vmatpush1.msra.mxu0 %v725
      %754 = vmatprep.subr.mxu0 0.0
      %755 = vmatpush1.msra.mxu0 %v726
      %756 = vmatprep.subr.mxu0 0.0
      %757 = vmatpush1.msra.mxu0 0.0
      %758 = vmatprep.subr.mxu0 0.0
      %759 = vmatpush1.msra.mxu0 0.0
      %760 = vmatprep.subr.mxu0 0.0
      %761 = vmatpush1.msra.mxu0 0.0
      %762 = vmatprep.subr.mxu0 0.0
      %763 = vmatpush1.msra.mxu0 0.0
      %764 = vmatprep.subr.mxu0 0.0
      %765 = vmatpush1.msra.mxu0 0.0
      %766 = vmatprep.subr.mxu0 0.0
      %767 = vmatpush1.msra.mxu0 0.0
      %768 = vmatprep.subr.mxu0 0.0
      %769 = vmatpush1.msra.mxu0 0.0
      %770 = vmatprep.subr.mxu0 0.0
      %771 = vmatpush1.msra.mxu0 0.0
      %772 = vmatprep.subr.mxu0 0.0
      %773 = vmatpush1.msra.mxu0 0.0
      %774 = vmatprep.subr.mxu0 0.0
      %775 = vmatpush1.msra.mxu0 0.0
      %776 = vmatprep.subr.mxu0 0.0
      %777 = vmatpush1.msra.mxu0 0.0
      %778 = vmatprep.subr.mxu0 0.0
      %779 = vmatpush1.msra.mxu0 0.0
      %780 = vmatprep.subr.mxu0 0.0
      %781 = vmatpush1.msra.mxu0 0.0
      %782 = vmatprep.subr.mxu0 0.0
      %783 = vmatpush1.msra.mxu0 0.0
      %784 = vmatprep.subr.mxu0 0.0
      %785 = vmatpush1.msra.mxu0 0.0
      %786 = vmatprep.subr.mxu0 0.0
      %787 = vmatpush1.msra.mxu0 0.0
      %788 = vmatprep.subr.mxu0 0.0
      %789 = vmatpush1.msra.mxu0 0.0
      %790 = vmatprep.subr.mxu0 0.0
      %791 = vmatpush1.msra.mxu0 0.0
      %792 = vmatprep.subr.mxu0 0.0
      %793 = vmatpush1.msra.mxu0 0.0
      %794 = vmatprep.subr.mxu0 0.0
      %795 = vmatpush1.msra.mxu0 0.0
      %796 = vmatprep.subr.mxu0 0.0
      %797 = vmatpush1.msra.mxu0 0.0
      %798 = vmatprep.subr.mxu0 0.0
      %799 = vmatpush1.msra.mxu0 0.0
      %800 = vmatprep.subr.mxu0 0.0
      %801 = vmatpush1.msra.mxu0 0.0
      %802 = vmatprep.subr.mxu0 0.0
      %803 = vmatpush1.msra.mxu0 0.0
      %804 = vmatprep.subr.mxu0 0.0
      %805 = vmatpush1.msra.mxu0 0.0
      %806 = vmatprep.subr.mxu0 0.0
      %807 = vmatpush1.msra.mxu0 0.0
      %808 = vmatprep.subr.mxu0 0.0
      %809 = vmatpush1.msra.mxu0 0.0
      %810 = vmatprep.subr.mxu0 0.0
      %811 = vmatpush1.msra.mxu0 0.0
      %812 = vmatprep.subr.mxu0 0.0
      %813 = vmatpush1.msra.mxu0 0.0
      %814 = vmatprep.subr.mxu0 0.0
      %815 = vmatpush1.msra.mxu0 0.0
      %816 = vmatprep.mubr.f32.mxu0 0.0
      %817 = vmatmul.mubr.f32.gmra.mrb[0].mxu0 %v750
      %v818 = vpop.f32.mrb[0].mxu0
      %v819 = vadd.f32 0.0, %v818
      %v820 = vpop.f32.mrb[0].mxu0
      %821 = vdwg.mxu0
      %v822 = vmul.f32 %v725, %v725
      %v823 = vmul.f32 %v726, %v726
      %824 = vmatprep.subr.mxu0 0.0
      %825 = vmatpush1.msra.mxu0 %v822
      %826 = vmatprep.subr.mxu0 0.0
      %827 = vmatpush1.msra.mxu0 %v823
      %828 = vmatprep.subr.mxu0 0.0
      %829 = vmatpush1.msra.mxu0 0.0
      %830 = vmatprep.subr.mxu0 0.0
      %831 = vmatpush1.msra.mxu0 0.0
      %832 = vmatprep.subr.mxu0 0.0
      %833 = vmatpush1.msra.mxu0 0.0
      %834 = vmatprep.subr.mxu0 0.0
      %835 = vmatpush1.msra.mxu0 0.0
      %836 = vmatprep.subr.mxu0 0.0
      %837 = vmatpush1.msra.mxu0 0.0
      %838 = vmatprep.subr.mxu0 0.0
      %839 = vmatpush1.msra.mxu0 0.0
      %840 = vmatprep.subr.mxu0 0.0
      %841 = vmatpush1.msra.mxu0 0.0
      %842 = vmatprep.subr.mxu0 0.0
      %843 = vmatpush1.msra.mxu0 0.0
      %844 = vmatprep.subr.mxu0 0.0
      %845 = vmatpush1.msra.mxu0 0.0
      %846 = vmatprep.subr.mxu0 0.0
      %847 = vmatpush1.msra.mxu0 0.0
      %848 = vmatprep.subr.mxu0 0.0
      %849 = vmatpush1.msra.mxu0 0.0
      %850 = vmatprep.subr.mxu0 0.0
      %851 = vmatpush1.msra.mxu0 0.0
      %852 = vmatprep.subr.mxu0 0.0
      %853 = vmatpush1.msra.mxu0 0.0
      %854 = vmatprep.subr.mxu0 0.0
      %855 = vmatpush1.msra.mxu0 0.0
      %856 = vmatprep.subr.mxu0 0.0
      %857 = vmatpush1.msra.mxu0 0.0
      %858 = vmatprep.subr.mxu0 0.0
      %859 = vmatpush1.msra.mxu0 0.0
      %860 = vmatprep.subr.mxu0 0.0
      %861 = vmatpush1.msra.mxu0 0.0
      %862 = vmatprep.subr.mxu0 0.0
      %863 = vmatpush1.msra.mxu0 0.0
      %864 = vmatprep.subr.mxu0 0.0
      %865 = vmatpush1.msra.mxu0 0.0
      %866 = vmatprep.subr.mxu0 0.0
      %867 = vmatpush1.msra.mxu0 0.0
      %868 = vmatprep.subr.mxu0 0.0
      %869 = vmatpush1.msra.mxu0 0.0
      %870 = vmatprep.subr.mxu0 0.0
      %871 = vmatpush1.msra.mxu0 0.0
      %872 = vmatprep.subr.mxu0 0.0
      %873 = vmatpush1.msra.mxu0 0.0
      %874 = vmatprep.subr.mxu0 0.0
      %875 = vmatpush1.msra.mxu0 0.0
      %876 = vmatprep.subr.mxu0 0.0
      %877 = vmatpush1.msra.mxu0 0.0
      %878 = vmatprep.subr.mxu0 0.0
      %879 = vmatpush1.msra.mxu0 0.0
      %880 = vmatprep.subr.mxu0 0.0
      %881 = vmatpush1.msra.mxu0 0.0
      %882 = vmatprep.subr.mxu0 0.0
      %883 = vmatpush1.msra.mxu0 0.0
      %884 = vmatprep.subr.mxu0 0.0
      %885 = vmatpush1.msra.mxu0 0.0
      %886 = vmatprep.subr.mxu0 0.0
      %887 = vmatpush1.msra.mxu0 0.0
      %888 = vmatprep.mubr.f32.mxu0 0.0
      %889 = vmatmul.mubr.f32.gmra.mrb[0].mxu0 %v750
      %v890 = vpop.f32.mrb[0].mxu0
      %v891 = vadd.f32 0.0, %v890
      %v892 = vpop.f32.mrb[0].mxu0
      %893 = vdwg.mxu0
      %v895 = vrot.slane %v891, 7
      %vm897 = vcmask 1040384
      %v898 = vsel %vm897, %v819, %v895
      %vm899 = vcmask 261120
      %v901 = vsel %vm899, %v898, 0
      %903 = vmatprep.subr.mxu0 0.0
      %904 = vmatpush1.msra.mxu0 %v741
      %905 = vmatprep.subr.mxu0 0.0
      %906 = vmatpush1.msra.mxu0 %v742
      %907 = vmatprep.subr.mxu0 0.0
      %908 = vmatpush1.msra.mxu0 %v743
      %909 = vmatprep.subr.mxu0 0.0
      %910 = vmatpush1.msra.mxu0 %v744
      %911 = vmatprep.subr.mxu0 0.0
      %912 = vmatpush1.msra.mxu0 0.0
      %913 = vmatprep.subr.mxu0 0.0
      %914 = vmatpush1.msra.mxu0 0.0
      %915 = vmatprep.subr.mxu0 0.0
      %916 = vmatpush1.msra.mxu0 0.0
      %917 = vmatprep.subr.mxu0 0.0
      %918 = vmatpush1.msra.mxu0 0.0
      %919 = vmatprep.subr.mxu0 0.0
      %920 = vmatpush1.msra.mxu0 0.0
      %921 = vmatprep.subr.mxu0 0.0
      %922 = vmatpush1.msra.mxu0 0.0
      %923 = vmatprep.subr.mxu0 0.0
      %924 = vmatpush1.msra.mxu0 0.0
      %925 = vmatprep.subr.mxu0 0.0
      %926 = vmatpush1.msra.mxu0 0.0
      %927 = vmatprep.subr.mxu0 0.0
      %928 = vmatpush1.msra.mxu0 0.0
      %929 = vmatprep.subr.mxu0 0.0
      %930 = vmatpush1.msra.mxu0 0.0
      %931 = vmatprep.subr.mxu0 0.0
      %932 = vmatpush1.msra.mxu0 0.0
      %933 = vmatprep.subr.mxu0 0.0
      %934 = vmatpush1.msra.mxu0 0.0
      %935 = vmatprep.subr.mxu0 0.0
      %936 = vmatpush1.msra.mxu0 0.0
      %937 = vmatprep.subr.mxu0 0.0
      %938 = vmatpush1.msra.mxu0 0.0
      %939 = vmatprep.subr.mxu0 0.0
      %940 = vmatpush1.msra.mxu0 0.0
      %941 = vmatprep.subr.mxu0 0.0
      %942 = vmatpush1.msra.mxu0 0.0
      %943 = vmatprep.subr.mxu0 0.0
      %944 = vmatpush1.msra.mxu0 0.0
      %945 = vmatprep.subr.mxu0 0.0
      %946 = vmatpush1.msra.mxu0 0.0
      %947 = vmatprep.subr.mxu0 0.0
      %948 = vmatpush1.msra.mxu0 0.0
      %949 = vmatprep.subr.mxu0 0.0
      %950 = vmatpush1.msra.mxu0 0.0
      %951 = vmatprep.subr.mxu0 0.0
      %952 = vmatpush1.msra.mxu0 0.0
      %953 = vmatprep.subr.mxu0 0.0
      %954 = vmatpush1.msra.mxu0 0.0
      %955 = vmatprep.subr.mxu0 0.0
      %956 = vmatpush1.msra.mxu0 0.0
      %957 = vmatprep.subr.mxu0 0.0
      %958 = vmatpush1.msra.mxu0 0.0
      %959 = vmatprep.subr.mxu0 0.0
      %960 = vmatpush1.msra.mxu0 0.0
      %961 = vmatprep.subr.mxu0 0.0
      %962 = vmatpush1.msra.mxu0 0.0
      %963 = vmatprep.subr.mxu0 0.0
      %964 = vmatpush1.msra.mxu0 0.0
      %965 = vmatprep.subr.mxu0 0.0
      %966 = vmatpush1.msra.mxu0 0.0
      %967 = vmatprep.mubr.f32.mxu0 0.0
      %968 = vmatmul.mubr.f32.gmra.mrb[0].mxu0 %v901
      %v969 = vpop.f32.mrb[0].mxu0
      %v970 = vadd.f32 0.0, %v969
      %v971 = vpop.f32.mrb[0].mxu0
      %972 = vdwg.mxu0
      %v973 = vrcp.pop 64.0
      %v974 = vmul.f32 %v970, %v973
      %vm975 = vcmask 64512
      %v977 = vsel %vm975, %v974, 0
      %979 = vmatprep.subr.mxu0 0.0
      %980 = vmatpush1.msra.mxu0 %v745
      %981 = vmatprep.subr.mxu0 0.0
      %982 = vmatpush1.msra.mxu0 0.0
      %983 = vmatprep.subr.mxu0 0.0
      %984 = vmatpush1.msra.mxu0 0.0
      %985 = vmatprep.subr.mxu0 0.0
      %986 = vmatpush1.msra.mxu0 0.0
      %987 = vmatprep.subr.mxu0 0.0
      %988 = vmatpush1.msra.mxu0 0.0
      %989 = vmatprep.subr.mxu0 0.0
      %990 = vmatpush1.msra.mxu0 0.0
      %991 = vmatprep.subr.mxu0 0.0
      %992 = vmatpush1.msra.mxu0 0.0
      %993 = vmatprep.subr.mxu0 0.0
      %994 = vmatpush1.msra.mxu0 0.0
      %995 = vmatprep.subr.mxu0 0.0
      %996 = vmatpush1.msra.mxu0 0.0
      %997 = vmatprep.subr.mxu0 0.0
      %998 = vmatpush1.msra.mxu0 0.0
      %999 = vmatprep.subr.mxu0 0.0
      %1000 = vmatpush1.msra.mxu0 0.0
      %1001 = vmatprep.subr.mxu0 0.0
      %1002 = vmatpush1.msra.mxu0 0.0
      %1003 = vmatprep.subr.mxu0 0.0
      %1004 = vmatpush1.msra.mxu0 0.0
      %1005 = vmatprep.subr.mxu0 0.0
      %1006 = vmatpush1.msra.mxu0 0.0
      %1007 = vmatprep.subr.mxu0 0.0
      %1008 = vmatpush1.msra.mxu0 0.0
      %1009 = vmatprep.subr.mxu0 0.0
      %1010 = vmatpush1.msra.mxu0 0.0
      %1011 = vmatprep.subr.mxu0 0.0
      %1012 = vmatpush1.msra.mxu0 0.0
      %1013 = vmatprep.subr.mxu0 0.0
      %1014 = vmatpush1.msra.mxu0 0.0
      %1015 = vmatprep.subr.mxu0 0.0
      %1016 = vmatpush1.msra.mxu0 0.0
      %1017 = vmatprep.subr.mxu0 0.0
      %1018 = vmatpush1.msra.mxu0 0.0
      %1019 = vmatprep.subr.mxu0 0.0
      %1020 = vmatpush1.msra.mxu0 0.0
      %1021 = vmatprep.subr.mxu0 0.0
      %1022 = vmatpush1.msra.mxu0 0.0
      %1023 = vmatprep.subr.mxu0 0.0
      %1024 = vmatpush1.msra.mxu0 0.0
      %1025 = vmatprep.subr.mxu0 0.0
      %1026 = vmatpush1.msra.mxu0 0.0
      %1027 = vmatprep.subr.mxu0 0.0
      %1028 = vmatpush1.msra.mxu0 0.0
      %1029 = vmatprep.subr.mxu0 0.0
      %1030 = vmatpush1.msra.mxu0 0.0
      %1031 = vmatprep.subr.mxu0 0.0
      %1032 = vmatpush1.msra.mxu0 0.0
      %1033 = vmatprep.subr.mxu0 0.0
      %1034 = vmatpush1.msra.mxu0 0.0
      %1035 = vmatprep.subr.mxu0 0.0
      %1036 = vmatpush1.msra.mxu0 0.0
      %1037 = vmatprep.subr.mxu0 0.0
      %1038 = vmatpush1.msra.mxu0 0.0
      %1039 = vmatprep.subr.mxu0 0.0
      %1040 = vmatpush1.msra.mxu0 0.0
      %1041 = vmatprep.subr.mxu0 0.0
      %1042 = vmatpush1.msra.mxu0 0.0
      %1043 = vmatprep.mubr.f32.mxu0 0.0
      %1044 = vmatmul.mubr.f32.gmra.mrb[0].mxu0 %v977
      %v1045 = vpop.f32.mrb[0].mxu0
      %v1046 = vadd.f32 0.0, %v1045
      %v1047 = vpop.f32.mrb[0].mxu0
      %1048 = vdwg.mxu0
      %v1049 = vmul.f32 %v1046, %v1046
      %v1051 = vrot.slane %v1049, 7
      %v1053 = vsub.f32 %v1046, %v1051
      %v1054 = vmax.f32 %v1053, 0.0
      %v1055 = vadd.f32 %v1054, 1e-05
      %v1056 = vrsqrt.pop %v1055
      %v1058 = vlaneseq
      %v1059 = vshrl.u32 %v1058, 7
      %v1060 = vsub.s32 0, %v1059
      %v1061 = vrot.slane %v746, %v1060
      %v1063 = vmul.f32 %v1056, %v1061
      %v1065 = vrot.slane %v1063, 1
      %v1067 = vmul.f32 %v1046, %v1065
      %v1068 = vsub.f32 %v747, %v1067
      %vm1069 = vcmask 7168
      %v1071 = vsel %vm1069, %v698, 0
      %v1074 = vsel %vm1069, %v699, 0
      %v1076 = vsel %vm897, %v1065, 0
      %1078 = vmatprep.subr.mxu0 0.0
      %1079 = vmatpush1.msra.mxu0 %v1076
      %1080 = vmatprep.subr.mxu0 0.0
      %1081 = vmatpush1.msra.mxu0 0.0
      %1082 = vmatprep.subr.mxu0 0.0
      %1083 = vmatpush1.msra.mxu0 0.0
      %1084 = vmatprep.subr.mxu0 0.0
      %1085 = vmatpush1.msra.mxu0 0.0
      %1086 = vmatprep.subr.mxu0 0.0
      %1087 = vmatpush1.msra.mxu0 0.0
      %1088 = vmatprep.subr.mxu0 0.0
      %1089 = vmatpush1.msra.mxu0 0.0
      %1090 = vmatprep.subr.mxu0 0.0
      %1091 = vmatpush1.msra.mxu0 0.0
      %1092 = vmatprep.subr.mxu0 0.0
      %1093 = vmatpush1.msra.mxu0 0.0
      %1094 = vmatprep.subr.mxu0 0.0
      %1095 = vmatpush1.msra.mxu0 0.0
      %1096 = vmatprep.subr.mxu0 0.0
      %1097 = vmatpush1.msra.mxu0 0.0
      %1098 = vmatprep.subr.mxu0 0.0
      %1099 = vmatpush1.msra.mxu0 0.0
      %1100 = vmatprep.subr.mxu0 0.0
      %1101 = vmatpush1.msra.mxu0 0.0
      %1102 = vmatprep.subr.mxu0 0.0
      %1103 = vmatpush1.msra.mxu0 0.0
      %1104 = vmatprep.subr.mxu0 0.0
      %1105 = vmatpush1.msra.mxu0 0.0
      %1106 = vmatprep.subr.mxu0 0.0
      %1107 = vmatpush1.msra.mxu0 0.0
      %1108 = vmatprep.subr.mxu0 0.0
      %1109 = vmatpush1.msra.mxu0 0.0
      %1110 = vmatprep.subr.mxu0 0.0
      %1111 = vmatpush1.msra.mxu0 0.0
      %1112 = vmatprep.subr.mxu0 0.0
      %1113 = vmatpush1.msra.mxu0 0.0
      %1114 = vmatprep.subr.mxu0 0.0
      %1115 = vmatpush1.msra.mxu0 0.0
      %1116 = vmatprep.subr.mxu0 0.0
      %1117 = vmatpush1.msra.mxu0 0.0
      %1118 = vmatprep.subr.mxu0 0.0
      %1119 = vmatpush1.msra.mxu0 0.0
      %1120 = vmatprep.subr.mxu0 0.0
      %1121 = vmatpush1.msra.mxu0 0.0
      %1122 = vmatprep.subr.mxu0 0.0
      %1123 = vmatpush1.msra.mxu0 0.0
      %1124 = vmatprep.subr.mxu0 0.0
      %1125 = vmatpush1.msra.mxu0 0.0
      %1126 = vmatprep.subr.mxu0 0.0
      %1127 = vmatpush1.msra.mxu0 0.0
      %1128 = vmatprep.subr.mxu0 0.0
      %1129 = vmatpush1.msra.mxu0 0.0
      %1130 = vmatprep.subr.mxu0 0.0
      %1131 = vmatpush1.msra.mxu0 0.0
      %1132 = vmatprep.subr.mxu0 0.0
      %1133 = vmatpush1.msra.mxu0 0.0
      %1134 = vmatprep.subr.mxu0 0.0
      %1135 = vmatpush1.msra.mxu0 0.0
      %1136 = vmatprep.subr.mxu0 0.0
      %1137 = vmatpush1.msra.mxu0 0.0
      %1138 = vmatprep.subr.mxu0 0.0
      %1139 = vmatpush1.msra.mxu0 0.0
      %1140 = vmatprep.subr.mxu0 0.0
      %1141 = vmatpush1.msra.mxu0 0.0
      %1142 = vmatprep.mubr.f32.mxu0 0.0
      %1143 = vmatmul.mubr.f32.gmra.mrb[0].mxu0 %v1071
      %v1144 = vpop.f32.mrb[0].mxu0
      %v1145 = vadd.f32 0.0, %v1144
      %v1146 = vpop.f32.mrb[0].mxu0
      %1147 = vmatprep.mubr.f32.mxu0 0.0
      %1148 = vmatmul.mubr.f32.gmra.mrb[0].mxu0 %v1074
      %v1149 = vpop.f32.mrb[0].mxu0
      %v1150 = vadd.f32 0.0, %v1149
      %v1151 = vpop.f32.mrb[0].mxu0
      %1152 = vdwg.mxu0
      %v1154 = vsel %vm897, %v1068, 0
      %1156 = vmatprep.subr.mxu0 0.0
      %1157 = vmatpush1.msra.mxu0 %v1154
      %1158 = vmatprep.subr.mxu0 0.0
      %1159 = vmatpush1.msra.mxu0 0.0
      %1160 = vmatprep.subr.mxu0 0.0
      %1161 = vmatpush1.msra.mxu0 0.0
      %1162 = vmatprep.subr.mxu0 0.0
      %1163 = vmatpush1.msra.mxu0 0.0
      %1164 = vmatprep.subr.mxu0 0.0
      %1165 = vmatpush1.msra.mxu0 0.0
      %1166 = vmatprep.subr.mxu0 0.0
      %1167 = vmatpush1.msra.mxu0 0.0
      %1168 = vmatprep.subr.mxu0 0.0
      %1169 = vmatpush1.msra.mxu0 0.0
      %1170 = vmatprep.subr.mxu0 0.0
      %1171 = vmatpush1.msra.mxu0 0.0
      %1172 = vmatprep.subr.mxu0 0.0
      %1173 = vmatpush1.msra.mxu0 0.0
      %1174 = vmatprep.subr.mxu0 0.0
      %1175 = vmatpush1.msra.mxu0 0.0
      %1176 = vmatprep.subr.mxu0 0.0
      %1177 = vmatpush1.msra.mxu0 0.0
      %1178 = vmatprep.subr.mxu0 0.0
      %1179 = vmatpush1.msra.mxu0 0.0
      %1180 = vmatprep.subr.mxu0 0.0
      %1181 = vmatpush1.msra.mxu0 0.0
      %1182 = vmatprep.subr.mxu0 0.0
      %1183 = vmatpush1.msra.mxu0 0.0
      %1184 = vmatprep.subr.mxu0 0.0
      %1185 = vmatpush1.msra.mxu0 0.0
      %1186 = vmatprep.subr.mxu0 0.0
      %1187 = vmatpush1.msra.mxu0 0.0
      %1188 = vmatprep.subr.mxu0 0.0
      %1189 = vmatpush1.msra.mxu0 0.0
      %1190 = vmatprep.subr.mxu0 0.0
      %1191 = vmatpush1.msra.mxu0 0.0
      %1192 = vmatprep.subr.mxu0 0.0
      %1193 = vmatpush1.msra.mxu0 0.0
      %1194 = vmatprep.subr.mxu0 0.0
      %1195 = vmatpush1.msra.mxu0 0.0
      %1196 = vmatprep.subr.mxu0 0.0
      %1197 = vmatpush1.msra.mxu0 0.0
      %1198 = vmatprep.subr.mxu0 0.0
      %1199 = vmatpush1.msra.mxu0 0.0
      %1200 = vmatprep.subr.mxu0 0.0
      %1201 = vmatpush1.msra.mxu0 0.0
      %1202 = vmatprep.subr.mxu0 0.0
      %1203 = vmatpush1.msra.mxu0 0.0
      %1204 = vmatprep.subr.mxu0 0.0
      %1205 = vmatpush1.msra.mxu0 0.0
      %1206 = vmatprep.subr.mxu0 0.0
      %1207 = vmatpush1.msra.mxu0 0.0
      %1208 = vmatprep.subr.mxu0 0.0
      %1209 = vmatpush1.msra.mxu0 0.0
      %1210 = vmatprep.subr.mxu0 0.0
      %1211 = vmatpush1.msra.mxu0 0.0
      %1212 = vmatprep.subr.mxu0 0.0
      %1213 = vmatpush1.msra.mxu0 0.0
      %1214 = vmatprep.subr.mxu0 0.0
      %1215 = vmatpush1.msra.mxu0 0.0
      %1216 = vmatprep.subr.mxu0 0.0
      %1217 = vmatpush1.msra.mxu0 0.0
      %1218 = vmatprep.subr.mxu0 0.0
      %1219 = vmatpush1.msra.mxu0 0.0
      %1220 = vmatprep.mubr.f32.mxu0 0.0
      %1221 = vmatmul.mubr.f32.gmra.mrb[0].mxu0 %v1071
      %v1222 = vpop.f32.mrb[0].mxu0
      %v1223 = vadd.f32 0.0, %v1222
      %v1224 = vpop.f32.mrb[0].mxu0
      %1225 = vmatprep.mubr.f32.mxu0 0.0
      %1226 = vmatmul.mubr.f32.gmra.mrb[0].mxu0 %v1074
      %v1227 = vpop.f32.mrb[0].mxu0
      %v1228 = vadd.f32 0.0, %v1227
      %v1229 = vpop.f32.mrb[0].mxu0
      %1230 = vdwg.mxu0
      %v1231 = vmul.f32 %v725, %v1145
      %v1232 = vmul.f32 %v726, %v1150
      %v1233 = vadd.f32 %v1231, %v1223
      %v1234 = vadd.f32 %v1232, %v1228
      %v1235 = vsub.f32 0.0, %v1233
      %v1236 = vsub.f32 0.0, %v1234
      %v1237 = vmul.f32 %v1235, 1.442695
      %v1238 = vpow.pop %v1237
      %v1239 = vmul.f32 %v1236, 1.442695
      %v1240 = vpow.pop %v1239
      %v1241 = vadd.f32 %v1238, 1.0
      %v1242 = vadd.f32 %v1240, 1.0
      %v1243 = vrcp.pop %v1241
      %v1244 = vmul.f32 1.0, %v1243
      %v1245 = vrcp.pop %v1242
      %v1246 = vmul.f32 1.0, %v1245
      %v1247 = vmul.f32 %v1233, %v1244
      %v1248 = vmul.f32 %v1234, %v1246
      %v1249 = vld [vmem:[%s13] sm:$0x1]
      %v1250 = vrot.slane %v1247, 7
      %v1251 = vrot.slane %v1248, 7
      %v1252 = vlaneseq
      %v1253 = vshrl.u32 %v1252, 7
      %vm1254 = vcmp.lt.s32.totalorder %v1253, 1
      %v1255 = vsel %vm1254, %v1250, %v1251
      %v1256 = vsel %vm1254, %v1251, %v1250
      %1258 = vset.pattern.permute.xlu0 0
      %1259 = vperm.xlu0 %1258, %v701
      %v1260 = vpop.permute.xlu0 %1259
      %1263 = vset.pattern.permute.xlu0 0
      %1264 = vperm.xlu0 %1263, %v702
      %v1265 = vpop.permute.xlu0 %1264
      %v1267 = vmul.f32 %v1256, %v1260
      %v1268 = vmul.f32 %v1255, %v1265
      %v1269 = vrot.slane %v1247, 1
      %v1270 = vrot.slane %v1248, 1
      %vm1271 = vcmp.lt.s32.totalorder %v1253, 7
      %v1272 = vsel %vm1271, %v1269, %v1270
      %v1273 = vsel %vm1271, %v1270, %v1269
      %1275 = vset.pattern.permute.xlu0 0
      %1276 = vperm.xlu0 %1275, %v703
      %v1277 = vpop.permute.xlu0 %1276
      %1280 = vset.pattern.permute.xlu0 0
      %1281 = vperm.xlu0 %1280, %v704
      %v1282 = vpop.permute.xlu0 %1281
      %v1284 = vmul.f32 %v1272, %v1277
      %v1285 = vmul.f32 %v1273, %v1282
      %v1286 = vld [vmem:[%s12] sm:$0xff]
      %v1287 = vld [vmem:[%s12 + $0x8] sm:$0xff]
      %v1288 = vld [vmem:[%s12 + $0x10] sm:$0xff]
      %v1289 = vld [vmem:[%s12 + $0x18] sm:$0xff]
      %v1290 = vld [vmem:[%s12 + $0x20] sm:$0xff]
      %v1291 = vld [vmem:[%s12 + $0x28] sm:$0xff]
      %v1292 = vld [vmem:[%s12 + $0x30] sm:$0xff]
      %v1293 = vld [vmem:[%s12 + $0x38] sm:$0xff]
      %v1295 = vsel %vm899, %v1247, 0
      %v1298 = vsel %vm899, %v1248, 0
      %1300 = vmatprep.subr.mxu0 0.0
      %1301 = vmatpush1.msra.mxu0 %v1290
      %1302 = vmatprep.subr.mxu0 0.0
      %1303 = vmatpush1.msra.mxu0 %v1291
      %1304 = vmatprep.subr.mxu0 0.0
      %1305 = vmatpush1.msra.mxu0 %v1292
      %1306 = vmatprep.subr.mxu0 0.0
      %1307 = vmatpush1.msra.mxu0 %v1293
      %1308 = vmatprep.subr.mxu0 0.0
      %1309 = vmatpush1.msra.mxu0 0.0
      %1310 = vmatprep.subr.mxu0 0.0
      %1311 = vmatpush1.msra.mxu0 0.0
      %1312 = vmatprep.subr.mxu0 0.0
      %1313 = vmatpush1.msra.mxu0 0.0
      %1314 = vmatprep.subr.mxu0 0.0
      %1315 = vmatpush1.msra.mxu0 0.0
      %1316 = vmatprep.subr.mxu0 0.0
      %1317 = vmatpush1.msra.mxu0 0.0
      %1318 = vmatprep.subr.mxu0 0.0
      %1319 = vmatpush1.msra.mxu0 0.0
      %1320 = vmatprep.subr.mxu0 0.0
      %1321 = vmatpush1.msra.mxu0 0.0
      %1322 = vmatprep.subr.mxu0 0.0
      %1323 = vmatpush1.msra.mxu0 0.0
      %1324 = vmatprep.subr.mxu0 0.0
      %1325 = vmatpush1.msra.mxu0 0.0
      %1326 = vmatprep.subr.mxu0 0.0
      %1327 = vmatpush1.msra.mxu0 0.0
      %1328 = vmatprep.subr.mxu0 0.0
      %1329 = vmatpush1.msra.mxu0 0.0
      %1330 = vmatprep.subr.mxu0 0.0
      %1331 = vmatpush1.msra.mxu0 0.0
      %1332 = vmatprep.subr.mxu0 0.0
      %1333 = vmatpush1.msra.mxu0 0.0
      %1334 = vmatprep.subr.mxu0 0.0
      %1335 = vmatpush1.msra.mxu0 0.0
      %1336 = vmatprep.subr.mxu0 0.0
      %1337 = vmatpush1.msra.mxu0 0.0
      %1338 = vmatprep.subr.mxu0 0.0
      %1339 = vmatpush1.msra.mxu0 0.0
      %1340 = vmatprep.subr.mxu0 0.0
      %1341 = vmatpush1.msra.mxu0 0.0
      %1342 = vmatprep.subr.mxu0 0.0
      %1343 = vmatpush1.msra.mxu0 0.0
      %1344 = vmatprep.subr.mxu0 0.0
      %1345 = vmatpush1.msra.mxu0 0.0
      %1346 = vmatprep.subr.mxu0 0.0
      %1347 = vmatpush1.msra.mxu0 0.0
      %1348 = vmatprep.subr.mxu0 0.0
      %1349 = vmatpush1.msra.mxu0 0.0
      %1350 = vmatprep.subr.mxu0 0.0
      %1351 = vmatpush1.msra.mxu0 0.0
      %1352 = vmatprep.subr.mxu0 0.0
      %1353 = vmatpush1.msra.mxu0 0.0
      %1354 = vmatprep.subr.mxu0 0.0
      %1355 = vmatpush1.msra.mxu0 0.0
      %1356 = vmatprep.subr.mxu0 0.0
      %1357 = vmatpush1.msra.mxu0 0.0
      %1358 = vmatprep.subr.mxu0 0.0
      %1359 = vmatpush1.msra.mxu0 0.0
      %1360 = vmatprep.subr.mxu0 0.0
      %1361 = vmatpush1.msra.mxu0 0.0
      %1362 = vmatprep.subr.mxu0 0.0
      %1363 = vmatpush1.msra.mxu0 0.0
      %1364 = vmatprep.mubr.f32.mxu0 0.0
      %1365 = vmatmul.mubr.f32.gmra.mrb[0].mxu0 %v1295
      %v1366 = vpop.f32.mrb[0].mxu0
      %v1367 = vadd.f32 0.0, %v1366
      %v1368 = vpop.f32.mrb[0].mxu0
      %1369 = vmatprep.mubr.f32.mxu0 0.0
      %1370 = vmatmul.mubr.f32.gmra.mrb[0].mxu0 %v1298
      %v1371 = vpop.f32.mrb[0].mxu0
      %v1372 = vadd.f32 0.0, %v1371
      %v1373 = vpop.f32.mrb[0].mxu0
      %1374 = vdwg.mxu0
      %v1376 = vsel %vm899, %v1267, 0
      %v1379 = vsel %vm899, %v1268, 0
      %1381 = vmatprep.subr.mxu0 0.0
      %1382 = vmatpush1.msra.mxu0 %v1286
      %1383 = vmatprep.subr.mxu0 0.0
      %1384 = vmatpush1.msra.mxu0 %v1287
      %1385 = vmatprep.subr.mxu0 0.0
      %1386 = vmatpush1.msra.mxu0 %v1288
      %1387 = vmatprep.subr.mxu0 0.0
      %1388 = vmatpush1.msra.mxu0 %v1289
      %1389 = vmatprep.subr.mxu0 0.0
      %1390 = vmatpush1.msra.mxu0 0.0
      %1391 = vmatprep.subr.mxu0 0.0
      %1392 = vmatpush1.msra.mxu0 0.0
      %1393 = vmatprep.subr.mxu0 0.0
      %1394 = vmatpush1.msra.mxu0 0.0
      %1395 = vmatprep.subr.mxu0 0.0
      %1396 = vmatpush1.msra.mxu0 0.0
      %1397 = vmatprep.subr.mxu0 0.0
      %1398 = vmatpush1.msra.mxu0 0.0
      %1399 = vmatprep.subr.mxu0 0.0
      %1400 = vmatpush1.msra.mxu0 0.0
      %1401 = vmatprep.subr.mxu0 0.0
      %1402 = vmatpush1.msra.mxu0 0.0
      %1403 = vmatprep.subr.mxu0 0.0
      %1404 = vmatpush1.msra.mxu0 0.0
      %1405 = vmatprep.subr.mxu0 0.0
      %1406 = vmatpush1.msra.mxu0 0.0
      %1407 = vmatprep.subr.mxu0 0.0
      %1408 = vmatpush1.msra.mxu0 0.0
      %1409 = vmatprep.subr.mxu0 0.0
      %1410 = vmatpush1.msra.mxu0 0.0
      %1411 = vmatprep.subr.mxu0 0.0
      %1412 = vmatpush1.msra.mxu0 0.0
      %1413 = vmatprep.subr.mxu0 0.0
      %1414 = vmatpush1.msra.mxu0 0.0
      %1415 = vmatprep.subr.mxu0 0.0
      %1416 = vmatpush1.msra.mxu0 0.0
      %1417 = vmatprep.subr.mxu0 0.0
      %1418 = vmatpush1.msra.mxu0 0.0
      %1419 = vmatprep.subr.mxu0 0.0
      %1420 = vmatpush1.msra.mxu0 0.0
      %1421 = vmatprep.subr.mxu0 0.0
      %1422 = vmatpush1.msra.mxu0 0.0
      %1423 = vmatprep.subr.mxu0 0.0
      %1424 = vmatpush1.msra.mxu0 0.0
      %1425 = vmatprep.subr.mxu0 0.0
      %1426 = vmatpush1.msra.mxu0 0.0
      %1427 = vmatprep.subr.mxu0 0.0
      %1428 = vmatpush1.msra.mxu0 0.0
      %1429 = vmatprep.subr.mxu0 0.0
      %1430 = vmatpush1.msra.mxu0 0.0
      %1431 = vmatprep.subr.mxu0 0.0
      %1432 = vmatpush1.msra.mxu0 0.0
      %1433 = vmatprep.subr.mxu0 0.0
      %1434 = vmatpush1.msra.mxu0 0.0
      %1435 = vmatprep.subr.mxu0 0.0
      %1436 = vmatpush1.msra.mxu0 0.0
      %1437 = vmatprep.subr.mxu0 0.0
      %1438 = vmatpush1.msra.mxu0 0.0
      %1439 = vmatprep.subr.mxu0 0.0
      %1440 = vmatpush1.msra.mxu0 0.0
      %1441 = vmatprep.subr.mxu0 0.0
      %1442 = vmatpush1.msra.mxu0 0.0
      %1443 = vmatprep.subr.mxu0 0.0
      %1444 = vmatpush1.msra.mxu0 0.0
      %1445 = vmatprep.mubr.f32.mxu0 0.0
      %1446 = vmatmul.mubr.f32.gmra.mrb[0].mxu0 %v1376
      %v1447 = vpop.f32.mrb[0].mxu0
      %v1448 = vadd.f32 %v1367, %v1447
      %v1449 = vpop.f32.mrb[0].mxu0
      %1450 = vmatprep.mubr.f32.mxu0 0.0
      %1451 = vmatmul.mubr.f32.gmra.mrb[0].mxu0 %v1379
      %v1452 = vpop.f32.mrb[0].mxu0
      %v1453 = vadd.f32 %v1372, %v1452
      %v1454 = vpop.f32.mrb[0].mxu0
      %1455 = vdwg.mxu0
      %v1456 = vld [vmem:[%s12 + $0x40] sm:$0xff]
      %v1457 = vld [vmem:[%s12 + $0x48] sm:$0xff]
      %v1458 = vld [vmem:[%s12 + $0x50] sm:$0xff]
      %v1459 = vld [vmem:[%s12 + $0x58] sm:$0xff]
      %v1461 = vsel %vm899, %v1284, 0
      %v1464 = vsel %vm899, %v1285, 0
      %1466 = vmatprep.subr.mxu0 0.0
      %1467 = vmatpush1.msra.mxu0 %v1456
      %1468 = vmatprep.subr.mxu0 0.0
      %1469 = vmatpush1.msra.mxu0 %v1457
      %1470 = vmatprep.subr.mxu0 0.0
      %1471 = vmatpush1.msra.mxu0 %v1458
      %1472 = vmatprep.subr.mxu0 0.0
      %1473 = vmatpush1.msra.mxu0 %v1459
      %1474 = vmatprep.subr.mxu0 0.0
      %1475 = vmatpush1.msra.mxu0 0.0
      %1476 = vmatprep.subr.mxu0 0.0
      %1477 = vmatpush1.msra.mxu0 0.0
      %1478 = vmatprep.subr.mxu0 0.0
      %1479 = vmatpush1.msra.mxu0 0.0
      %1480 = vmatprep.subr.mxu0 0.0
      %1481 = vmatpush1.msra.mxu0 0.0
      %1482 = vmatprep.subr.mxu0 0.0
      %1483 = vmatpush1.msra.mxu0 0.0
      %1484 = vmatprep.subr.mxu0 0.0
      %1485 = vmatpush1.msra.mxu0 0.0
      %1486 = vmatprep.subr.mxu0 0.0
      %1487 = vmatpush1.msra.mxu0 0.0
      %1488 = vmatprep.subr.mxu0 0.0
      %1489 = vmatpush1.msra.mxu0 0.0
      %1490 = vmatprep.subr.mxu0 0.0
      %1491 = vmatpush1.msra.mxu0 0.0
      %1492 = vmatprep.subr.mxu0 0.0
      %1493 = vmatpush1.msra.mxu0 0.0
      %1494 = vmatprep.subr.mxu0 0.0
      %1495 = vmatpush1.msra.mxu0 0.0
      %1496 = vmatprep.subr.mxu0 0.0
      %1497 = vmatpush1.msra.mxu0 0.0
      %1498 = vmatprep.subr.mxu0 0.0
      %1499 = vmatpush1.msra.mxu0 0.0
      %1500 = vmatprep.subr.mxu0 0.0
      %1501 = vmatpush1.msra.mxu0 0.0
      %1502 = vmatprep.subr.mxu0 0.0
      %1503 = vmatpush1.msra.mxu0 0.0
      %1504 = vmatprep.subr.mxu0 0.0
      %1505 = vmatpush1.msra.mxu0 0.0
      %1506 = vmatprep.subr.mxu0 0.0
      %1507 = vmatpush1.msra.mxu0 0.0
      %1508 = vmatprep.subr.mxu0 0.0
      %1509 = vmatpush1.msra.mxu0 0.0
      %1510 = vmatprep.subr.mxu0 0.0
      %1511 = vmatpush1.msra.mxu0 0.0
      %1512 = vmatprep.subr.mxu0 0.0
      %1513 = vmatpush1.msra.mxu0 0.0
      %1514 = vmatprep.subr.mxu0 0.0
      %1515 = vmatpush1.msra.mxu0 0.0
      %1516 = vmatprep.subr.mxu0 0.0
      %1517 = vmatpush1.msra.mxu0 0.0
      %1518 = vmatprep.subr.mxu0 0.0
      %1519 = vmatpush1.msra.mxu0 0.0
      %1520 = vmatprep.subr.mxu0 0.0
      %1521 = vmatpush1.msra.mxu0 0.0
      %1522 = vmatprep.subr.mxu0 0.0
      %1523 = vmatpush1.msra.mxu0 0.0
      %1524 = vmatprep.subr.mxu0 0.0
      %1525 = vmatpush1.msra.mxu0 0.0
      %1526 = vmatprep.subr.mxu0 0.0
      %1527 = vmatpush1.msra.mxu0 0.0
      %1528 = vmatprep.subr.mxu0 0.0
      %1529 = vmatpush1.msra.mxu0 0.0
      %1530 = vmatprep.mubr.f32.mxu0 0.0
      %1531 = vmatmul.mubr.f32.gmra.mrb[0].mxu0 %v1461
      %v1532 = vpop.f32.mrb[0].mxu0
      %v1533 = vadd.f32 0.0, %v1532
      %v1534 = vpop.f32.mrb[0].mxu0
      %1535 = vmatprep.mubr.f32.mxu0 0.0
      %1536 = vmatmul.mubr.f32.gmra.mrb[0].mxu0 %v1464
      %v1537 = vpop.f32.mrb[0].mxu0
      %v1538 = vadd.f32 0.0, %v1537
      %v1539 = vpop.f32.mrb[0].mxu0
      %1540 = vdwg.mxu0
      %v1541 = vadd.f32 %v1448, %v1533
      %v1542 = vadd.f32 %v1453, %v1538
      %v1544 = vlaneseq
      %v1545 = vshrl.u32 %v1544, 7
      %v1546 = vsub.s32 0, %v1545
      %v1547 = vrot.slane %v1249, %v1546
      %v1549 = vadd.f32 %v1541, %v1547
      %v1550 = vadd.f32 %v1542, %v1547
      %v1551 = vld [vmem:[%s692] sm:$0x1]
      %v1552 = vld [vmem:[%s14] sm:$0xff]
      %v1553 = vld [vmem:[%s14 + $0x8] sm:$0xff]
      %v1554 = vld [vmem:[%s14 + $0x10] sm:$0xff]
      %v1555 = vld [vmem:[%s14 + $0x18] sm:$0xff]
      %v1556 = vld [vmem:[%s15] sm:$0x1]
      %v1558 = vsel %vm899, %v1551, 0
      %1560 = vmatprep.subr.mxu0 0.0
      %1561 = vmatpush1.msra.mxu0 %v1552
      %1562 = vmatprep.subr.mxu0 0.0
      %1563 = vmatpush1.msra.mxu0 %v1553
      %1564 = vmatprep.subr.mxu0 0.0
      %1565 = vmatpush1.msra.mxu0 %v1554
      %1566 = vmatprep.subr.mxu0 0.0
      %1567 = vmatpush1.msra.mxu0 %v1555
      %1568 = vmatprep.subr.mxu0 0.0
      %1569 = vmatpush1.msra.mxu0 0.0
      %1570 = vmatprep.subr.mxu0 0.0
      %1571 = vmatpush1.msra.mxu0 0.0
      %1572 = vmatprep.subr.mxu0 0.0
      %1573 = vmatpush1.msra.mxu0 0.0
      %1574 = vmatprep.subr.mxu0 0.0
      %1575 = vmatpush1.msra.mxu0 0.0
      %1576 = vmatprep.subr.mxu0 0.0
      %1577 = vmatpush1.msra.mxu0 0.0
      %1578 = vmatprep.subr.mxu0 0.0
      %1579 = vmatpush1.msra.mxu0 0.0
      %1580 = vmatprep.subr.mxu0 0.0
      %1581 = vmatpush1.msra.mxu0 0.0
      %1582 = vmatprep.subr.mxu0 0.0
      %1583 = vmatpush1.msra.mxu0 0.0
      %1584 = vmatprep.subr.mxu0 0.0
      %1585 = vmatpush1.msra.mxu0 0.0
      %1586 = vmatprep.subr.mxu0 0.0
      %1587 = vmatpush1.msra.mxu0 0.0
      %1588 = vmatprep.subr.mxu0 0.0
      %1589 = vmatpush1.msra.mxu0 0.0
      %1590 = vmatprep.subr.mxu0 0.0
      %1591 = vmatpush1.msra.mxu0 0.0
      %1592 = vmatprep.subr.mxu0 0.0
      %1593 = vmatpush1.msra.mxu0 0.0
      %1594 = vmatprep.subr.mxu0 0.0
      %1595 = vmatpush1.msra.mxu0 0.0
      %1596 = vmatprep.subr.mxu0 0.0
      %1597 = vmatpush1.msra.mxu0 0.0
      %1598 = vmatprep.subr.mxu0 0.0
      %1599 = vmatpush1.msra.mxu0 0.0
      %1600 = vmatprep.subr.mxu0 0.0
      %1601 = vmatpush1.msra.mxu0 0.0
      %1602 = vmatprep.subr.mxu0 0.0
      %1603 = vmatpush1.msra.mxu0 0.0
      %1604 = vmatprep.subr.mxu0 0.0
      %1605 = vmatpush1.msra.mxu0 0.0
      %1606 = vmatprep.subr.mxu0 0.0
      %1607 = vmatpush1.msra.mxu0 0.0
      %1608 = vmatprep.subr.mxu0 0.0
      %1609 = vmatpush1.msra.mxu0 0.0
      %1610 = vmatprep.subr.mxu0 0.0
      %1611 = vmatpush1.msra.mxu0 0.0
      %1612 = vmatprep.subr.mxu0 0.0
      %1613 = vmatpush1.msra.mxu0 0.0
      %1614 = vmatprep.subr.mxu0 0.0
      %1615 = vmatpush1.msra.mxu0 0.0
      %1616 = vmatprep.subr.mxu0 0.0
      %1617 = vmatpush1.msra.mxu0 0.0
      %1618 = vmatprep.subr.mxu0 0.0
      %1619 = vmatpush1.msra.mxu0 0.0
      %1620 = vmatprep.subr.mxu0 0.0
      %1621 = vmatpush1.msra.mxu0 0.0
      %1622 = vmatprep.subr.mxu0 0.0
      %1623 = vmatpush1.msra.mxu0 0.0
      %1624 = vmatprep.mubr.f32.mxu0 0.0
      %1625 = vmatmul.mubr.f32.gmra.mrb[0].mxu0 %v1558
      %v1626 = vpop.f32.mrb[0].mxu0
      %v1627 = vadd.f32 %v1556, %v1626
      %v1628 = vpop.f32.mrb[0].mxu0
      %1629 = vdwg.mxu0
      %v1631 = vsel %vm897, %v1627, 0
      %1633 = vmatprep.subr.mxu0 0.0
      %1634 = vmatpush1.msra.mxu0 %v1631
      %1635 = vmatprep.subr.mxu0 0.0
      %1636 = vmatpush1.msra.mxu0 0.0
      %1637 = vmatprep.subr.mxu0 0.0
      %1638 = vmatpush1.msra.mxu0 0.0
      %1639 = vmatprep.subr.mxu0 0.0
      %1640 = vmatpush1.msra.mxu0 0.0
      %1641 = vmatprep.subr.mxu0 0.0
      %1642 = vmatpush1.msra.mxu0 0.0
      %1643 = vmatprep.subr.mxu0 0.0
      %1644 = vmatpush1.msra.mxu0 0.0
      %1645 = vmatprep.subr.mxu0 0.0
      %1646 = vmatpush1.msra.mxu0 0.0
      %1647 = vmatprep.subr.mxu0 0.0
      %1648 = vmatpush1.msra.mxu0 0.0
      %1649 = vmatprep.subr.mxu0 0.0
      %1650 = vmatpush1.msra.mxu0 0.0
      %1651 = vmatprep.subr.mxu0 0.0
      %1652 = vmatpush1.msra.mxu0 0.0
      %1653 = vmatprep.subr.mxu0 0.0
      %1654 = vmatpush1.msra.mxu0 0.0
      %1655 = vmatprep.subr.mxu0 0.0
      %1656 = vmatpush1.msra.mxu0 0.0
      %1657 = vmatprep.subr.mxu0 0.0
      %1658 = vmatpush1.msra.mxu0 0.0
      %1659 = vmatprep.subr.mxu0 0.0
      %1660 = vmatpush1.msra.mxu0 0.0
      %1661 = vmatprep.subr.mxu0 0.0
      %1662 = vmatpush1.msra.mxu0 0.0
      %1663 = vmatprep.subr.mxu0 0.0
      %1664 = vmatpush1.msra.mxu0 0.0
      %1665 = vmatprep.subr.mxu0 0.0
      %1666 = vmatpush1.msra.mxu0 0.0
      %1667 = vmatprep.subr.mxu0 0.0
      %1668 = vmatpush1.msra.mxu0 0.0
      %1669 = vmatprep.subr.mxu0 0.0
      %1670 = vmatpush1.msra.mxu0 0.0
      %1671 = vmatprep.subr.mxu0 0.0
      %1672 = vmatpush1.msra.mxu0 0.0
      %1673 = vmatprep.subr.mxu0 0.0
      %1674 = vmatpush1.msra.mxu0 0.0
      %1675 = vmatprep.subr.mxu0 0.0
      %1676 = vmatpush1.msra.mxu0 0.0
      %1677 = vmatprep.subr.mxu0 0.0
      %1678 = vmatpush1.msra.mxu0 0.0
      %1679 = vmatprep.subr.mxu0 0.0
      %1680 = vmatpush1.msra.mxu0 0.0
      %1681 = vmatprep.subr.mxu0 0.0
      %1682 = vmatpush1.msra.mxu0 0.0
      %1683 = vmatprep.subr.mxu0 0.0
      %1684 = vmatpush1.msra.mxu0 0.0
      %1685 = vmatprep.subr.mxu0 0.0
      %1686 = vmatpush1.msra.mxu0 0.0
      %1687 = vmatprep.subr.mxu0 0.0
      %1688 = vmatpush1.msra.mxu0 0.0
      %1689 = vmatprep.subr.mxu0 0.0
      %1690 = vmatpush1.msra.mxu0 0.0
      %1691 = vmatprep.subr.mxu0 0.0
      %1692 = vmatpush1.msra.mxu0 0.0
      %1693 = vmatprep.subr.mxu0 0.0
      %1694 = vmatpush1.msra.mxu0 0.0
      %1695 = vmatprep.subr.mxu0 0.0
      %1696 = vmatpush1.msra.mxu0 0.0
      %1697 = vmatprep.mubr.f32.mxu0 0.0
      %1698 = vmatmul.mubr.f32.gmra.mrb[0].mxu0 %v1071
      %v1699 = vpop.f32.mrb[0].mxu0
      %v1700 = vadd.f32 0.0, %v1699
      %v1701 = vpop.f32.mrb[0].mxu0
      %1702 = vmatprep.mubr.f32.mxu0 0.0
      %1703 = vmatmul.mubr.f32.gmra.mrb[0].mxu0 %v1074
      %v1704 = vpop.f32.mrb[0].mxu0
      %v1705 = vadd.f32 0.0, %v1704
      %v1706 = vpop.f32.mrb[0].mxu0
      %1707 = vdwg.mxu0
      %v1708 = vadd.f32 %v1549, %v1700
      %v1709 = vadd.f32 %v1550, %v1705
      %v1710 = vld [vmem:[%s8] sm:$0xff]
      %v1711 = vld [vmem:[%s8 + $0x8] sm:$0xff]
      %v1712 = vld [vmem:[%s8 + $0x10] sm:$0xff]
      %v1713 = vld [vmem:[%s8 + $0x18] sm:$0xff]
      %v1714 = vld [vmem:[%s8 + $0x20] sm:$0xff]
      %v1715 = vld [vmem:[%s8 + $0x28] sm:$0xff]
      %v1716 = vld [vmem:[%s8 + $0x30] sm:$0xff]
      %v1717 = vld [vmem:[%s8 + $0x38] sm:$0xff]
      %v1718 = vld [vmem:[%s9] sm:$0xff]
      %v1719 = vld [vmem:[%s16] sm:$0x1]
      %v1720 = vld [vmem:[%s17] sm:$0x1]
      %1721 = vmatprep.subr.mxu0 0.0
      %1722 = vmatpush1.msra.mxu0 %v1708
      %1723 = vmatprep.subr.mxu0 0.0
      %1724 = vmatpush1.msra.mxu0 %v1709
      %1725 = vmatprep.subr.mxu0 0.0
      %1726 = vmatpush1.msra.mxu0 0.0
      %1727 = vmatprep.subr.mxu0 0.0
      %1728 = vmatpush1.msra.mxu0 0.0
      %1729 = vmatprep.subr.mxu0 0.0
      %1730 = vmatpush1.msra.mxu0 0.0
      %1731 = vmatprep.subr.mxu0 0.0
      %1732 = vmatpush1.msra.mxu0 0.0
      %1733 = vmatprep.subr.mxu0 0.0
      %1734 = vmatpush1.msra.mxu0 0.0
      %1735 = vmatprep.subr.mxu0 0.0
      %1736 = vmatpush1.msra.mxu0 0.0
      %1737 = vmatprep.subr.mxu0 0.0
      %1738 = vmatpush1.msra.mxu0 0.0
      %1739 = vmatprep.subr.mxu0 0.0
      %1740 = vmatpush1.msra.mxu0 0.0
      %1741 = vmatprep.subr.mxu0 0.0
      %1742 = vmatpush1.msra.mxu0 0.0
      %1743 = vmatprep.subr.mxu0 0.0
      %1744 = vmatpush1.msra.mxu0 0.0
      %1745 = vmatprep.subr.mxu0 0.0
      %1746 = vmatpush1.msra.mxu0 0.0
      %1747 = vmatprep.subr.mxu0 0.0
      %1748 = vmatpush1.msra.mxu0 0.0
      %1749 = vmatprep.subr.mxu0 0.0
      %1750 = vmatpush1.msra.mxu0 0.0
      %1751 = vmatprep.subr.mxu0 0.0
      %1752 = vmatpush1.msra.mxu0 0.0
      %1753 = vmatprep.subr.mxu0 0.0
      %1754 = vmatpush1.msra.mxu0 0.0
      %1755 = vmatprep.subr.mxu0 0.0
      %1756 = vmatpush1.msra.mxu0 0.0
      %1757 = vmatprep.subr.mxu0 0.0
      %1758 = vmatpush1.msra.mxu0 0.0
      %1759 = vmatprep.subr.mxu0 0.0
      %1760 = vmatpush1.msra.mxu0 0.0
      %1761 = vmatprep.subr.mxu0 0.0
      %1762 = vmatpush1.msra.mxu0 0.0
      %1763 = vmatprep.subr.mxu0 0.0
      %1764 = vmatpush1.msra.mxu0 0.0
      %1765 = vmatprep.subr.mxu0 0.0
      %1766 = vmatpush1.msra.mxu0 0.0
      %1767 = vmatprep.subr.mxu0 0.0
      %1768 = vmatpush1.msra.mxu0 0.0
      %1769 = vmatprep.subr.mxu0 0.0
      %1770 = vmatpush1.msra.mxu0 0.0
      %1771 = vmatprep.subr.mxu0 0.0
      %1772 = vmatpush1.msra.mxu0 0.0
      %1773 = vmatprep.subr.mxu0 0.0
      %1774 = vmatpush1.msra.mxu0 0.0
      %1775 = vmatprep.subr.mxu0 0.0
      %1776 = vmatpush1.msra.mxu0 0.0
      %1777 = vmatprep.subr.mxu0 0.0
      %1778 = vmatpush1.msra.mxu0 0.0
      %1779 = vmatprep.subr.mxu0 0.0
      %1780 = vmatpush1.msra.mxu0 0.0
      %1781 = vmatprep.subr.mxu0 0.0
      %1782 = vmatpush1.msra.mxu0 0.0
      %1783 = vmatprep.subr.mxu0 0.0
      %1784 = vmatpush1.msra.mxu0 0.0
      %1785 = vmatprep.mubr.f32.mxu0 0.0
      %1786 = vmatmul.mubr.f32.gmra.mrb[0].mxu0 %v750
      %v1787 = vpop.f32.mrb[0].mxu0
      %v1788 = vadd.f32 0.0, %v1787
      %v1789 = vpop.f32.mrb[0].mxu0
      %1790 = vdwg.mxu0
      %v1791 = vmul.f32 %v1708, %v1708
      %v1792 = vmul.f32 %v1709, %v1709
      %1793 = vmatprep.subr.mxu0 0.0
      %1794 = vmatpush1.msra.mxu0 %v1791
      %1795 = vmatprep.subr.mxu0 0.0
      %1796 = vmatpush1.msra.mxu0 %v1792
      %1797 = vmatprep.subr.mxu0 0.0
      %1798 = vmatpush1.msra.mxu0 0.0
      %1799 = vmatprep.subr.mxu0 0.0
      %1800 = vmatpush1.msra.mxu0 0.0
      %1801 = vmatprep.subr.mxu0 0.0
      %1802 = vmatpush1.msra.mxu0 0.0
      %1803 = vmatprep.subr.mxu0 0.0
      %1804 = vmatpush1.msra.mxu0 0.0
      %1805 = vmatprep.subr.mxu0 0.0
      %1806 = vmatpush1.msra.mxu0 0.0
      %1807 = vmatprep.subr.mxu0 0.0
      %1808 = vmatpush1.msra.mxu0 0.0
      %1809 = vmatprep.subr.mxu0 0.0
      %1810 = vmatpush1.msra.mxu0 0.0
      %1811 = vmatprep.subr.mxu0 0.0
      %1812 = vmatpush1.msra.mxu0 0.0
      %1813 = vmatprep.subr.mxu0 0.0
      %1814 = vmatpush1.msra.mxu0 0.0
      %1815 = vmatprep.subr.mxu0 0.0
      %1816 = vmatpush1.msra.mxu0 0.0
      %1817 = vmatprep.subr.mxu0 0.0
      %1818 = vmatpush1.msra.mxu0 0.0
      %1819 = vmatprep.subr.mxu0 0.0
      %1820 = vmatpush1.msra.mxu0 0.0
      %1821 = vmatprep.subr.mxu0 0.0
      %1822 = vmatpush1.msra.mxu0 0.0
      %1823 = vmatprep.subr.mxu0 0.0
      %1824 = vmatpush1.msra.mxu0 0.0
      %1825 = vmatprep.subr.mxu0 0.0
      %1826 = vmatpush1.msra.mxu0 0.0
      %1827 = vmatprep.subr.mxu0 0.0
      %1828 = vmatpush1.msra.mxu0 0.0
      %1829 = vmatprep.subr.mxu0 0.0
      %1830 = vmatpush1.msra.mxu0 0.0
      %1831 = vmatprep.subr.mxu0 0.0
      %1832 = vmatpush1.msra.mxu0 0.0
      %1833 = vmatprep.subr.mxu0 0.0
      %1834 = vmatpush1.msra.mxu0 0.0
      %1835 = vmatprep.subr.mxu0 0.0
      %1836 = vmatpush1.msra.mxu0 0.0
      %1837 = vmatprep.subr.mxu0 0.0
      %1838 = vmatpush1.msra.mxu0 0.0
      %1839 = vmatprep.subr.mxu0 0.0
      %1840 = vmatpush1.msra.mxu0 0.0
      %1841 = vmatprep.subr.mxu0 0.0
      %1842 = vmatpush1.msra.mxu0 0.0
      %1843 = vmatprep.subr.mxu0 0.0
      %1844 = vmatpush1.msra.mxu0 0.0
      %1845 = vmatprep.subr.mxu0 0.0
      %1846 = vmatpush1.msra.mxu0 0.0
      %1847 = vmatprep.subr.mxu0 0.0
      %1848 = vmatpush1.msra.mxu0 0.0
      %1849 = vmatprep.subr.mxu0 0.0
      %1850 = vmatpush1.msra.mxu0 0.0
      %1851 = vmatprep.subr.mxu0 0.0
      %1852 = vmatpush1.msra.mxu0 0.0
      %1853 = vmatprep.subr.mxu0 0.0
      %1854 = vmatpush1.msra.mxu0 0.0
      %1855 = vmatprep.subr.mxu0 0.0
      %1856 = vmatpush1.msra.mxu0 0.0
      %1857 = vmatprep.mubr.f32.mxu0 0.0
      %1858 = vmatmul.mubr.f32.gmra.mrb[0].mxu0 %v750
      %v1859 = vpop.f32.mrb[0].mxu0
      %v1860 = vadd.f32 0.0, %v1859
      %v1861 = vpop.f32.mrb[0].mxu0
      %1862 = vdwg.mxu0
      %v1864 = vrot.slane %v1860, 7
      %v1866 = vsel %vm897, %v1788, %v1864
      %vm1867 = vcmask 523264
      %v1869 = vsel %vm1867, %v1866, 0
      %1871 = vmatprep.subr.mxu0 0.0
      %1872 = vmatpush1.msra.mxu0 %v1710
      %1873 = vmatprep.subr.mxu0 0.0
      %1874 = vmatpush1.msra.mxu0 %v1711
      %1875 = vmatprep.subr.mxu0 0.0
      %1876 = vmatpush1.msra.mxu0 %v1712
      %1877 = vmatprep.subr.mxu0 0.0
      %1878 = vmatpush1.msra.mxu0 %v1713
      %1879 = vmatprep.subr.mxu0 0.0
      %1880 = vmatpush1.msra.mxu0 %v1714
      %1881 = vmatprep.subr.mxu0 0.0
      %1882 = vmatpush1.msra.mxu0 %v1715
      %1883 = vmatprep.subr.mxu0 0.0
      %1884 = vmatpush1.msra.mxu0 %v1716
      %1885 = vmatprep.subr.mxu0 0.0
      %1886 = vmatpush1.msra.mxu0 %v1717
      %1887 = vmatprep.subr.mxu0 0.0
      %1888 = vmatpush1.msra.mxu0 0.0
      %1889 = vmatprep.subr.mxu0 0.0
      %1890 = vmatpush1.msra.mxu0 0.0
      %1891 = vmatprep.subr.mxu0 0.0
      %1892 = vmatpush1.msra.mxu0 0.0
      %1893 = vmatprep.subr.mxu0 0.0
      %1894 = vmatpush1.msra.mxu0 0.0
      %1895 = vmatprep.subr.mxu0 0.0
      %1896 = vmatpush1.msra.mxu0 0.0
      %1897 = vmatprep.subr.mxu0 0.0
      %1898 = vmatpush1.msra.mxu0 0.0
      %1899 = vmatprep.subr.mxu0 0.0
      %1900 = vmatpush1.msra.mxu0 0.0
      %1901 = vmatprep.subr.mxu0 0.0
      %1902 = vmatpush1.msra.mxu0 0.0
      %1903 = vmatprep.subr.mxu0 0.0
      %1904 = vmatpush1.msra.mxu0 0.0
      %1905 = vmatprep.subr.mxu0 0.0
      %1906 = vmatpush1.msra.mxu0 0.0
      %1907 = vmatprep.subr.mxu0 0.0
      %1908 = vmatpush1.msra.mxu0 0.0
      %1909 = vmatprep.subr.mxu0 0.0
      %1910 = vmatpush1.msra.mxu0 0.0
      %1911 = vmatprep.subr.mxu0 0.0
      %1912 = vmatpush1.msra.mxu0 0.0
      %1913 = vmatprep.subr.mxu0 0.0
      %1914 = vmatpush1.msra.mxu0 0.0
      %1915 = vmatprep.subr.mxu0 0.0
      %1916 = vmatpush1.msra.mxu0 0.0
      %1917 = vmatprep.subr.mxu0 0.0
      %1918 = vmatpush1.msra.mxu0 0.0
      %1919 = vmatprep.subr.mxu0 0.0
      %1920 = vmatpush1.msra.mxu0 0.0
      %1921 = vmatprep.subr.mxu0 0.0
      %1922 = vmatpush1.msra.mxu0 0.0
      %1923 = vmatprep.subr.mxu0 0.0
      %1924 = vmatpush1.msra.mxu0 0.0
      %1925 = vmatprep.subr.mxu0 0.0
      %1926 = vmatpush1.msra.mxu0 0.0
      %1927 = vmatprep.subr.mxu0 0.0
      %1928 = vmatpush1.msra.mxu0 0.0
      %1929 = vmatprep.subr.mxu0 0.0
      %1930 = vmatpush1.msra.mxu0 0.0
      %1931 = vmatprep.subr.mxu0 0.0
      %1932 = vmatpush1.msra.mxu0 0.0
      %1933 = vmatprep.subr.mxu0 0.0
      %1934 = vmatpush1.msra.mxu0 0.0
      %1935 = vmatprep.mubr.f32.mxu0 0.0
      %1936 = vmatmul.mubr.f32.gmra.mrb[0].mxu0 %v1869
      %v1937 = vpop.f32.mrb[0].mxu0
      %v1938 = vadd.f32 0.0, %v1937
      %v1939 = vpop.f32.mrb[0].mxu0
      %1940 = vdwg.mxu0
      %v1941 = vrcp.pop 128.0
      %v1942 = vmul.f32 %v1938, %v1941
      %v1944 = vsel %vm975, %v1942, 0
      %1946 = vmatprep.subr.mxu0 0.0
      %1947 = vmatpush1.msra.mxu0 %v1718
      %1948 = vmatprep.subr.mxu0 0.0
      %1949 = vmatpush1.msra.mxu0 0.0
      %1950 = vmatprep.subr.mxu0 0.0
      %1951 = vmatpush1.msra.mxu0 0.0
      %1952 = vmatprep.subr.mxu0 0.0
      %1953 = vmatpush1.msra.mxu0 0.0
      %1954 = vmatprep.subr.mxu0 0.0
      %1955 = vmatpush1.msra.mxu0 0.0
      %1956 = vmatprep.subr.mxu0 0.0
      %1957 = vmatpush1.msra.mxu0 0.0
      %1958 = vmatprep.subr.mxu0 0.0
      %1959 = vmatpush1.msra.mxu0 0.0
      %1960 = vmatprep.subr.mxu0 0.0
      %1961 = vmatpush1.msra.mxu0 0.0
      %1962 = vmatprep.subr.mxu0 0.0
      %1963 = vmatpush1.msra.mxu0 0.0
      %1964 = vmatprep.subr.mxu0 0.0
      %1965 = vmatpush1.msra.mxu0 0.0
      %1966 = vmatprep.subr.mxu0 0.0
      %1967 = vmatpush1.msra.mxu0 0.0
      %1968 = vmatprep.subr.mxu0 0.0
      %1969 = vmatpush1.msra.mxu0 0.0
      %1970 = vmatprep.subr.mxu0 0.0
      %1971 = vmatpush1.msra.mxu0 0.0
      %1972 = vmatprep.subr.mxu0 0.0
      %1973 = vmatpush1.msra.mxu0 0.0
      %1974 = vmatprep.subr.mxu0 0.0
      %1975 = vmatpush1.msra.mxu0 0.0
      %1976 = vmatprep.subr.mxu0 0.0
      %1977 = vmatpush1.msra.mxu0 0.0
      %1978 = vmatprep.subr.mxu0 0.0
      %1979 = vmatpush1.msra.mxu0 0.0
      %1980 = vmatprep.subr.mxu0 0.0
      %1981 = vmatpush1.msra.mxu0 0.0
      %1982 = vmatprep.subr.mxu0 0.0
      %1983 = vmatpush1.msra.mxu0 0.0
      %1984 = vmatprep.subr.mxu0 0.0
      %1985 = vmatpush1.msra.mxu0 0.0
      %1986 = vmatprep.subr.mxu0 0.0
      %1987 = vmatpush1.msra.mxu0 0.0
      %1988 = vmatprep.subr.mxu0 0.0
      %1989 = vmatpush1.msra.mxu0 0.0
      %1990 = vmatprep.subr.mxu0 0.0
      %1991 = vmatpush1.msra.mxu0 0.0
      %1992 = vmatprep.subr.mxu0 0.0
      %1993 = vmatpush1.msra.mxu0 0.0
      %1994 = vmatprep.subr.mxu0 0.0
      %1995 = vmatpush1.msra.mxu0 0.0
      %1996 = vmatprep.subr.mxu0 0.0
      %1997 = vmatpush1.msra.mxu0 0.0
      %1998 = vmatprep.subr.mxu0 0.0
      %1999 = vmatpush1.msra.mxu0 0.0
      %2000 = vmatprep.subr.mxu0 0.0
      %2001 = vmatpush1.msra.mxu0 0.0
      %2002 = vmatprep.subr.mxu0 0.0
      %2003 = vmatpush1.msra.mxu0 0.0
      %2004 = vmatprep.subr.mxu0 0.0
      %2005 = vmatpush1.msra.mxu0 0.0
      %2006 = vmatprep.subr.mxu0 0.0
      %2007 = vmatpush1.msra.mxu0 0.0
      %2008 = vmatprep.subr.mxu0 0.0
      %2009 = vmatpush1.msra.mxu0 0.0
      %2010 = vmatprep.mubr.f32.mxu0 0.0
      %2011 = vmatmul.mubr.f32.gmra.mrb[0].mxu0 %v1944
      %v2012 = vpop.f32.mrb[0].mxu0
      %v2013 = vadd.f32 0.0, %v2012
      %v2014 = vpop.f32.mrb[0].mxu0
      %2015 = vdwg.mxu0
      %v2016 = vmul.f32 %v2013, %v2013
      %v2018 = vrot.slane %v2016, 7
      %v2020 = vsub.f32 %v2013, %v2018
      %v2021 = vmax.f32 %v2020, 0.0
      %v2022 = vadd.f32 %v2021, 1e-05
      %v2023 = vrsqrt.pop %v2022
      %v2025 = vlaneseq
      %v2026 = vshrl.u32 %v2025, 7
      %v2027 = vsub.s32 0, %v2026
      %v2028 = vrot.slane %v1719, %v2027
      %v2030 = vmul.f32 %v2023, %v2028
      %v2032 = vrot.slane %v2030, 1
      %v2034 = vmul.f32 %v2013, %v2032
      %v2035 = vsub.f32 %v1720, %v2034
      %v2036 = vsel %vm897, %v2032, 0
      %2038 = vmatprep.subr.mxu0 0.0
      %2039 = vmatpush1.msra.mxu0 %v2036
      %2040 = vmatprep.subr.mxu0 0.0
      %2041 = vmatpush1.msra.mxu0 0.0
      %2042 = vmatprep.subr.mxu0 0.0
      %2043 = vmatpush1.msra.mxu0 0.0
      %2044 = vmatprep.subr.mxu0 0.0
      %2045 = vmatpush1.msra.mxu0 0.0
      %2046 = vmatprep.subr.mxu0 0.0
      %2047 = vmatpush1.msra.mxu0 0.0
      %2048 = vmatprep.subr.mxu0 0.0
      %2049 = vmatpush1.msra.mxu0 0.0
      %2050 = vmatprep.subr.mxu0 0.0
      %2051 = vmatpush1.msra.mxu0 0.0
      %2052 = vmatprep.subr.mxu0 0.0
      %2053 = vmatpush1.msra.mxu0 0.0
      %2054 = vmatprep.subr.mxu0 0.0
      %2055 = vmatpush1.msra.mxu0 0.0
      %2056 = vmatprep.subr.mxu0 0.0
      %2057 = vmatpush1.msra.mxu0 0.0
      %2058 = vmatprep.subr.mxu0 0.0
      %2059 = vmatpush1.msra.mxu0 0.0
      %2060 = vmatprep.subr.mxu0 0.0
      %2061 = vmatpush1.msra.mxu0 0.0
      %2062 = vmatprep.subr.mxu0 0.0
      %2063 = vmatpush1.msra.mxu0 0.0
      %2064 = vmatprep.subr.mxu0 0.0
      %2065 = vmatpush1.msra.mxu0 0.0
      %2066 = vmatprep.subr.mxu0 0.0
      %2067 = vmatpush1.msra.mxu0 0.0
      %2068 = vmatprep.subr.mxu0 0.0
      %2069 = vmatpush1.msra.mxu0 0.0
      %2070 = vmatprep.subr.mxu0 0.0
      %2071 = vmatpush1.msra.mxu0 0.0
      %2072 = vmatprep.subr.mxu0 0.0
      %2073 = vmatpush1.msra.mxu0 0.0
      %2074 = vmatprep.subr.mxu0 0.0
      %2075 = vmatpush1.msra.mxu0 0.0
      %2076 = vmatprep.subr.mxu0 0.0
      %2077 = vmatpush1.msra.mxu0 0.0
      %2078 = vmatprep.subr.mxu0 0.0
      %2079 = vmatpush1.msra.mxu0 0.0
      %2080 = vmatprep.subr.mxu0 0.0
      %2081 = vmatpush1.msra.mxu0 0.0
      %2082 = vmatprep.subr.mxu0 0.0
      %2083 = vmatpush1.msra.mxu0 0.0
      %2084 = vmatprep.subr.mxu0 0.0
      %2085 = vmatpush1.msra.mxu0 0.0
      %2086 = vmatprep.subr.mxu0 0.0
      %2087 = vmatpush1.msra.mxu0 0.0
      %2088 = vmatprep.subr.mxu0 0.0
      %2089 = vmatpush1.msra.mxu0 0.0
      %2090 = vmatprep.subr.mxu0 0.0
      %2091 = vmatpush1.msra.mxu0 0.0
      %2092 = vmatprep.subr.mxu0 0.0
      %2093 = vmatpush1.msra.mxu0 0.0
      %2094 = vmatprep.subr.mxu0 0.0
      %2095 = vmatpush1.msra.mxu0 0.0
      %2096 = vmatprep.subr.mxu0 0.0
      %2097 = vmatpush1.msra.mxu0 0.0
      %2098 = vmatprep.subr.mxu0 0.0
      %2099 = vmatpush1.msra.mxu0 0.0
      %2100 = vmatprep.subr.mxu0 0.0
      %2101 = vmatpush1.msra.mxu0 0.0
      %2102 = vmatprep.mubr.f32.mxu0 0.0
      %2103 = vmatmul.mubr.f32.gmra.mrb[0].mxu0 %v1071
      %v2104 = vpop.f32.mrb[0].mxu0
      %v2105 = vadd.f32 0.0, %v2104
      %v2106 = vpop.f32.mrb[0].mxu0
      %2107 = vmatprep.mubr.f32.mxu0 0.0
      %2108 = vmatmul.mubr.f32.gmra.mrb[0].mxu0 %v1074
      %v2109 = vpop.f32.mrb[0].mxu0
      %v2110 = vadd.f32 0.0, %v2109
      %v2111 = vpop.f32.mrb[0].mxu0
      %2112 = vdwg.mxu0
      %v2114 = vsel %vm897, %v2035, 0
      %2116 = vmatprep.subr.mxu0 0.0
      %2117 = vmatpush1.msra.mxu0 %v2114
      %2118 = vmatprep.subr.mxu0 0.0
      %2119 = vmatpush1.msra.mxu0 0.0
      %2120 = vmatprep.subr.mxu0 0.0
      %2121 = vmatpush1.msra.mxu0 0.0
      %2122 = vmatprep.subr.mxu0 0.0
      %2123 = vmatpush1.msra.mxu0 0.0
      %2124 = vmatprep.subr.mxu0 0.0
      %2125 = vmatpush1.msra.mxu0 0.0
      %2126 = vmatprep.subr.mxu0 0.0
      %2127 = vmatpush1.msra.mxu0 0.0
      %2128 = vmatprep.subr.mxu0 0.0
      %2129 = vmatpush1.msra.mxu0 0.0
      %2130 = vmatprep.subr.mxu0 0.0
      %2131 = vmatpush1.msra.mxu0 0.0
      %2132 = vmatprep.subr.mxu0 0.0
      %2133 = vmatpush1.msra.mxu0 0.0
      %2134 = vmatprep.subr.mxu0 0.0
      %2135 = vmatpush1.msra.mxu0 0.0
      %2136 = vmatprep.subr.mxu0 0.0
      %2137 = vmatpush1.msra.mxu0 0.0
      %2138 = vmatprep.subr.mxu0 0.0
      %2139 = vmatpush1.msra.mxu0 0.0
      %2140 = vmatprep.subr.mxu0 0.0
      %2141 = vmatpush1.msra.mxu0 0.0
      %2142 = vmatprep.subr.mxu0 0.0
      %2143 = vmatpush1.msra.mxu0 0.0
      %2144 = vmatprep.subr.mxu0 0.0
      %2145 = vmatpush1.msra.mxu0 0.0
      %2146 = vmatprep.subr.mxu0 0.0
      %2147 = vmatpush1.msra.mxu0 0.0
      %2148 = vmatprep.subr.mxu0 0.0
      %2149 = vmatpush1.msra.mxu0 0.0
      %2150 = vmatprep.subr.mxu0 0.0
      %2151 = vmatpush1.msra.mxu0 0.0
      %2152 = vmatprep.subr.mxu0 0.0
      %2153 = vmatpush1.msra.mxu0 0.0
      %2154 = vmatprep.subr.mxu0 0.0
      %2155 = vmatpush1.msra.mxu0 0.0
      %2156 = vmatprep.subr.mxu0 0.0
      %2157 = vmatpush1.msra.mxu0 0.0
      %2158 = vmatprep.subr.mxu0 0.0
      %2159 = vmatpush1.msra.mxu0 0.0
      %2160 = vmatprep.subr.mxu0 0.0
      %2161 = vmatpush1.msra.mxu0 0.0
      %2162 = vmatprep.subr.mxu0 0.0
      %2163 = vmatpush1.msra.mxu0 0.0
      %2164 = vmatprep.subr.mxu0 0.0
      %2165 = vmatpush1.msra.mxu0 0.0
      %2166 = vmatprep.subr.mxu0 0.0
      %2167 = vmatpush1.msra.mxu0 0.0
      %2168 = vmatprep.subr.mxu0 0.0
      %2169 = vmatpush1.msra.mxu0 0.0
      %2170 = vmatprep.subr.mxu0 0.0
      %2171 = vmatpush1.msra.mxu0 0.0
      %2172 = vmatprep.subr.mxu0 0.0
      %2173 = vmatpush1.msra.mxu0 0.0
      %2174 = vmatprep.subr.mxu0 0.0
      %2175 = vmatpush1.msra.mxu0 0.0
      %2176 = vmatprep.subr.mxu0 0.0
      %2177 = vmatpush1.msra.mxu0 0.0
      %2178 = vmatprep.subr.mxu0 0.0
      %2179 = vmatpush1.msra.mxu0 0.0
      %2180 = vmatprep.mubr.f32.mxu0 0.0
      %2181 = vmatmul.mubr.f32.gmra.mrb[0].mxu0 %v1071
      %v2182 = vpop.f32.mrb[0].mxu0
      %v2183 = vadd.f32 0.0, %v2182
      %v2184 = vpop.f32.mrb[0].mxu0
      %2185 = vmatprep.mubr.f32.mxu0 0.0
      %2186 = vmatmul.mubr.f32.gmra.mrb[0].mxu0 %v1074
      %v2187 = vpop.f32.mrb[0].mxu0
      %v2188 = vadd.f32 0.0, %v2187
      %v2189 = vpop.f32.mrb[0].mxu0
      %2190 = vdwg.mxu0
      %v2191 = vmul.f32 %v1708, %v2105
      %v2192 = vmul.f32 %v1709, %v2110
      %v2193 = vadd.f32 %v2191, %v2183
      %v2194 = vadd.f32 %v2192, %v2188
      %v2195 = vsub.f32 0.0, %v2193
      %v2196 = vsub.f32 0.0, %v2194
      %v2197 = vmul.f32 %v2195, 1.442695
      %v2198 = vpow.pop %v2197
      %v2199 = vmul.f32 %v2196, 1.442695
      %v2200 = vpow.pop %v2199
      %v2201 = vadd.f32 %v2198, 1.0
      %v2202 = vadd.f32 %v2200, 1.0
      %v2203 = vrcp.pop %v2201
      %v2204 = vmul.f32 1.0, %v2203
      %v2205 = vrcp.pop %v2202
      %v2206 = vmul.f32 1.0, %v2205
      %v2207 = vmul.f32 %v2193, %v2204
      %v2208 = vmul.f32 %v2194, %v2206
      %v2209 = vld [vmem:[%s19] sm:$0x1]
      %v2210 = vrot.slane %v2207, 7
      %v2211 = vrot.slane %v2208, 7
      %v2212 = vsel %vm1254, %v2210, %v2211
      %v2213 = vsel %vm1254, %v2211, %v2210
      %v2214 = vmul.f32 %v2213, %v1260
      %v2215 = vmul.f32 %v2212, %v1265
      %v2216 = vrot.slane %v2207, 1
      %v2217 = vrot.slane %v2208, 1
      %v2218 = vsel %vm1271, %v2216, %v2217
      %v2219 = vsel %vm1271, %v2217, %v2216
      %v2220 = vmul.f32 %v2218, %v1277
      %v2221 = vmul.f32 %v2219, %v1282
      %v2222 = vld [vmem:[%s18] sm:$0xff]
      %v2223 = vld [vmem:[%s18 + $0x8] sm:$0xff]
      %v2224 = vld [vmem:[%s18 + $0x10] sm:$0xff]
      %v2225 = vld [vmem:[%s18 + $0x18] sm:$0xff]
      %v2226 = vld [vmem:[%s18 + $0x20] sm:$0xff]
      %v2227 = vld [vmem:[%s18 + $0x28] sm:$0xff]
      %v2228 = vld [vmem:[%s18 + $0x30] sm:$0xff]
      %v2229 = vld [vmem:[%s18 + $0x38] sm:$0xff]
      %v2230 = vld [vmem:[%s18 + $0x40] sm:$0xff]
      %v2231 = vld [vmem:[%s18 + $0x48] sm:$0xff]
      %v2232 = vld [vmem:[%s18 + $0x50] sm:$0xff]
      %v2233 = vld [vmem:[%s18 + $0x58] sm:$0xff]
      %v2234 = vld [vmem:[%s18 + $0x60] sm:$0xff]
      %v2235 = vld [vmem:[%s18 + $0x68] sm:$0xff]
      %v2236 = vld [vmem:[%s18 + $0x70] sm:$0xff]
      %v2237 = vld [vmem:[%s18 + $0x78] sm:$0xff]
      %v2239 = vsel %vm1867, %v2207, 0
      %v2242 = vsel %vm1867, %v2208, 0
      %2244 = vmatprep.subr.mxu0 0.0
      %2245 = vmatpush1.msra.mxu0 %v2230
      %2246 = vmatprep.subr.mxu0 0.0
      %2247 = vmatpush1.msra.mxu0 %v2231
      %2248 = vmatprep.subr.mxu0 0.0
      %2249 = vmatpush1.msra.mxu0 %v2232
      %2250 = vmatprep.subr.mxu0 0.0
      %2251 = vmatpush1.msra.mxu0 %v2233
      %2252 = vmatprep.subr.mxu0 0.0
      %2253 = vmatpush1.msra.mxu0 %v2234
      %2254 = vmatprep.subr.mxu0 0.0
      %2255 = vmatpush1.msra.mxu0 %v2235
      %2256 = vmatprep.subr.mxu0 0.0
      %2257 = vmatpush1.msra.mxu0 %v2236
      %2258 = vmatprep.subr.mxu0 0.0
      %2259 = vmatpush1.msra.mxu0 %v2237
      %2260 = vmatprep.subr.mxu0 0.0
      %2261 = vmatpush1.msra.mxu0 0.0
      %2262 = vmatprep.subr.mxu0 0.0
      %2263 = vmatpush1.msra.mxu0 0.0
      %2264 = vmatprep.subr.mxu0 0.0
      %2265 = vmatpush1.msra.mxu0 0.0
      %2266 = vmatprep.subr.mxu0 0.0
      %2267 = vmatpush1.msra.mxu0 0.0
      %2268 = vmatprep.subr.mxu0 0.0
      %2269 = vmatpush1.msra.mxu0 0.0
      %2270 = vmatprep.subr.mxu0 0.0
      %2271 = vmatpush1.msra.mxu0 0.0
      %2272 = vmatprep.subr.mxu0 0.0
      %2273 = vmatpush1.msra.mxu0 0.0
      %2274 = vmatprep.subr.mxu0 0.0
      %2275 = vmatpush1.msra.mxu0 0.0
      %2276 = vmatprep.subr.mxu0 0.0
      %2277 = vmatpush1.msra.mxu0 0.0
      %2278 = vmatprep.subr.mxu0 0.0
      %2279 = vmatpush1.msra.mxu0 0.0
      %2280 = vmatprep.subr.mxu0 0.0
      %2281 = vmatpush1.msra.mxu0 0.0
      %2282 = vmatprep.subr.mxu0 0.0
      %2283 = vmatpush1.msra.mxu0 0.0
      %2284 = vmatprep.subr.mxu0 0.0
      %2285 = vmatpush1.msra.mxu0 0.0
      %2286 = vmatprep.subr.mxu0 0.0
      %2287 = vmatpush1.msra.mxu0 0.0
      %2288 = vmatprep.subr.mxu0 0.0
      %2289 = vmatpush1.msra.mxu0 0.0
      %2290 = vmatprep.subr.mxu0 0.0
      %2291 = vmatpush1.msra.mxu0 0.0
      %2292 = vmatprep.subr.mxu0 0.0
      %2293 = vmatpush1.msra.mxu0 0.0
      %2294 = vmatprep.subr.mxu0 0.0
      %2295 = vmatpush1.msra.mxu0 0.0
      %2296 = vmatprep.subr.mxu0 0.0
      %2297 = vmatpush1.msra.mxu0 0.0
      %2298 = vmatprep.subr.mxu0 0.0
      %2299 = vmatpush1.msra.mxu0 0.0
      %2300 = vmatprep.subr.mxu0 0.0
      %2301 = vmatpush1.msra.mxu0 0.0
      %2302 = vmatprep.subr.mxu0 0.0
      %2303 = vmatpush1.msra.mxu0 0.0
      %2304 = vmatprep.subr.mxu0 0.0
      %2305 = vmatpush1.msra.mxu0 0.0
      %2306 = vmatprep.subr.mxu0 0.0
      %2307 = vmatpush1.msra.mxu0 0.0
      %2308 = vmatprep.mubr.f32.mxu0 0.0
      %2309 = vmatmul.mubr.f32.gmra.mrb[0].mxu0 %v2239
      %v2310 = vpop.f32.mrb[0].mxu0
      %v2311 = vadd.f32 0.0, %v2310
      %v2312 = vpop.f32.mrb[0].mxu0
      %2313 = vmatprep.mubr.f32.mxu0 0.0
      %2314 = vmatmul.mubr.f32.gmra.mrb[0].mxu0 %v2242
      %v2315 = vpop.f32.mrb[0].mxu0
      %v2316 = vadd.f32 0.0, %v2315
      %v2317 = vpop.f32.mrb[0].mxu0
      %2318 = vdwg.mxu0
      %v2320 = vsel %vm1867, %v2214, 0
      %v2323 = vsel %vm1867, %v2215, 0
      %2325 = vmatprep.subr.mxu0 0.0
      %2326 = vmatpush1.msra.mxu0 %v2222
      %2327 = vmatprep.subr.mxu0 0.0
      %2328 = vmatpush1.msra.mxu0 %v2223
      %2329 = vmatprep.subr.mxu0 0.0
      %2330 = vmatpush1.msra.mxu0 %v2224
      %2331 = vmatprep.subr.mxu0 0.0
      %2332 = vmatpush1.msra.mxu0 %v2225
      %2333 = vmatprep.subr.mxu0 0.0
      %2334 = vmatpush1.msra.mxu0 %v2226
      %2335 = vmatprep.subr.mxu0 0.0
      %2336 = vmatpush1.msra.mxu0 %v2227
      %2337 = vmatprep.subr.mxu0 0.0
      %2338 = vmatpush1.msra.mxu0 %v2228
      %2339 = vmatprep.subr.mxu0 0.0
      %2340 = vmatpush1.msra.mxu0 %v2229
      %2341 = vmatprep.subr.mxu0 0.0
      %2342 = vmatpush1.msra.mxu0 0.0
      %2343 = vmatprep.subr.mxu0 0.0
      %2344 = vmatpush1.msra.mxu0 0.0
      %2345 = vmatprep.subr.mxu0 0.0
      %2346 = vmatpush1.msra.mxu0 0.0
      %2347 = vmatprep.subr.mxu0 0.0
      %2348 = vmatpush1.msra.mxu0 0.0
      %2349 = vmatprep.subr.mxu0 0.0
      %2350 = vmatpush1.msra.mxu0 0.0
      %2351 = vmatprep.subr.mxu0 0.0
      %2352 = vmatpush1.msra.mxu0 0.0
      %2353 = vmatprep.subr.mxu0 0.0
      %2354 = vmatpush1.msra.mxu0 0.0
      %2355 = vmatprep.subr.mxu0 0.0
      %2356 = vmatpush1.msra.mxu0 0.0
      %2357 = vmatprep.subr.mxu0 0.0
      %2358 = vmatpush1.msra.mxu0 0.0
      %2359 = vmatprep.subr.mxu0 0.0
      %2360 = vmatpush1.msra.mxu0 0.0
      %2361 = vmatprep.subr.mxu0 0.0
      %2362 = vmatpush1.msra.mxu0 0.0
      %2363 = vmatprep.subr.mxu0 0.0
      %2364 = vmatpush1.msra.mxu0 0.0
      %2365 = vmatprep.subr.mxu0 0.0
      %2366 = vmatpush1.msra.mxu0 0.0
      %2367 = vmatprep.subr.mxu0 0.0
      %2368 = vmatpush1.msra.mxu0 0.0
      %2369 = vmatprep.subr.mxu0 0.0
      %2370 = vmatpush1.msra.mxu0 0.0
      %2371 = vmatprep.subr.mxu0 0.0
      %2372 = vmatpush1.msra.mxu0 0.0
      %2373 = vmatprep.subr.mxu0 0.0
      %2374 = vmatpush1.msra.mxu0 0.0
      %2375 = vmatprep.subr.mxu0 0.0
      %2376 = vmatpush1.msra.mxu0 0.0
      %2377 = vmatprep.subr.mxu0 0.0
      %2378 = vmatpush1.msra.mxu0 0.0
      %2379 = vmatprep.subr.mxu0 0.0
      %2380 = vmatpush1.msra.mxu0 0.0
      %2381 = vmatprep.subr.mxu0 0.0
      %2382 = vmatpush1.msra.mxu0 0.0
      %2383 = vmatprep.subr.mxu0 0.0
      %2384 = vmatpush1.msra.mxu0 0.0
      %2385 = vmatprep.subr.mxu0 0.0
      %2386 = vmatpush1.msra.mxu0 0.0
      %2387 = vmatprep.subr.mxu0 0.0
      %2388 = vmatpush1.msra.mxu0 0.0
      %2389 = vmatprep.mubr.f32.mxu0 0.0
      %2390 = vmatmul.mubr.f32.gmra.mrb[0].mxu0 %v2320
      %v2391 = vpop.f32.mrb[0].mxu0
      %v2392 = vadd.f32 %v2311, %v2391
      %v2393 = vpop.f32.mrb[0].mxu0
      %2394 = vmatprep.mubr.f32.mxu0 0.0
      %2395 = vmatmul.mubr.f32.gmra.mrb[0].mxu0 %v2323
      %v2396 = vpop.f32.mrb[0].mxu0
      %v2397 = vadd.f32 %v2316, %v2396
      %v2398 = vpop.f32.mrb[0].mxu0
      %2399 = vdwg.mxu0
      %v2400 = vld [vmem:[%s18 + $0x80] sm:$0xff]
      %v2401 = vld [vmem:[%s18 + $0x88] sm:$0xff]
      %v2402 = vld [vmem:[%s18 + $0x90] sm:$0xff]
      %v2403 = vld [vmem:[%s18 + $0x98] sm:$0xff]
      %v2404 = vld [vmem:[%s18 + $0xa0] sm:$0xff]
      %v2405 = vld [vmem:[%s18 + $0xa8] sm:$0xff]
      %v2406 = vld [vmem:[%s18 + $0xb0] sm:$0xff]
      %v2407 = vld [vmem:[%s18 + $0xb8] sm:$0xff]
      %v2409 = vsel %vm1867, %v2220, 0
      %v2412 = vsel %vm1867, %v2221, 0
      %2414 = vmatprep.subr.mxu0 0.0
      %2415 = vmatpush1.msra.mxu0 %v2400
      %2416 = vmatprep.subr.mxu0 0.0
      %2417 = vmatpush1.msra.mxu0 %v2401
      %2418 = vmatprep.subr.mxu0 0.0
      %2419 = vmatpush1.msra.mxu0 %v2402
      %2420 = vmatprep.subr.mxu0 0.0
      %2421 = vmatpush1.msra.mxu0 %v2403
      %2422 = vmatprep.subr.mxu0 0.0
      %2423 = vmatpush1.msra.mxu0 %v2404
      %2424 = vmatprep.subr.mxu0 0.0
      %2425 = vmatpush1.msra.mxu0 %v2405
      %2426 = vmatprep.subr.mxu0 0.0
      %2427 = vmatpush1.msra.mxu0 %v2406
      %2428 = vmatprep.subr.mxu0 0.0
      %2429 = vmatpush1.msra.mxu0 %v2407
      %2430 = vmatprep.subr.mxu0 0.0
      %2431 = vmatpush1.msra.mxu0 0.0
      %2432 = vmatprep.subr.mxu0 0.0
      %2433 = vmatpush1.msra.mxu0 0.0
      %2434 = vmatprep.subr.mxu0 0.0
      %2435 = vmatpush1.msra.mxu0 0.0
      %2436 = vmatprep.subr.mxu0 0.0
      %2437 = vmatpush1.msra.mxu0 0.0
      %2438 = vmatprep.subr.mxu0 0.0
      %2439 = vmatpush1.msra.mxu0 0.0
      %2440 = vmatprep.subr.mxu0 0.0
      %2441 = vmatpush1.msra.mxu0 0.0
      %2442 = vmatprep.subr.mxu0 0.0
      %2443 = vmatpush1.msra.mxu0 0.0
      %2444 = vmatprep.subr.mxu0 0.0
      %2445 = vmatpush1.msra.mxu0 0.0
      %2446 = vmatprep.subr.mxu0 0.0
      %2447 = vmatpush1.msra.mxu0 0.0
      %2448 = vmatprep.subr.mxu0 0.0
      %2449 = vmatpush1.msra.mxu0 0.0
      %2450 = vmatprep.subr.mxu0 0.0
      %2451 = vmatpush1.msra.mxu0 0.0
      %2452 = vmatprep.subr.mxu0 0.0
      %2453 = vmatpush1.msra.mxu0 0.0
      %2454 = vmatprep.subr.mxu0 0.0
      %2455 = vmatpush1.msra.mxu0 0.0
      %2456 = vmatprep.subr.mxu0 0.0
      %2457 = vmatpush1.msra.mxu0 0.0
      %2458 = vmatprep.subr.mxu0 0.0
      %2459 = vmatpush1.msra.mxu0 0.0
      %2460 = vmatprep.subr.mxu0 0.0
      %2461 = vmatpush1.msra.mxu0 0.0
      %2462 = vmatprep.subr.mxu0 0.0
      %2463 = vmatpush1.msra.mxu0 0.0
      %2464 = vmatprep.subr.mxu0 0.0
      %2465 = vmatpush1.msra.mxu0 0.0
      %2466 = vmatprep.subr.mxu0 0.0
      %2467 = vmatpush1.msra.mxu0 0.0
      %2468 = vmatprep.subr.mxu0 0.0
      %2469 = vmatpush1.msra.mxu0 0.0
      %2470 = vmatprep.subr.mxu0 0.0
      %2471 = vmatpush1.msra.mxu0 0.0
      %2472 = vmatprep.subr.mxu0 0.0
      %2473 = vmatpush1.msra.mxu0 0.0
      %2474 = vmatprep.subr.mxu0 0.0
      %2475 = vmatpush1.msra.mxu0 0.0
      %2476 = vmatprep.subr.mxu0 0.0
      %2477 = vmatpush1.msra.mxu0 0.0
      %2478 = vmatprep.mubr.f32.mxu0 0.0
      %2479 = vmatmul.mubr.f32.gmra.mrb[0].mxu0 %v2409
      %v2480 = vpop.f32.mrb[0].mxu0
      %v2481 = vadd.f32 0.0, %v2480
      %v2482 = vpop.f32.mrb[0].mxu0
      %2483 = vmatprep.mubr.f32.mxu0 0.0
      %2484 = vmatmul.mubr.f32.gmra.mrb[0].mxu0 %v2412
      %v2485 = vpop.f32.mrb[0].mxu0
      %v2486 = vadd.f32 0.0, %v2485
      %v2487 = vpop.f32.mrb[0].mxu0
      %2488 = vdwg.mxu0
      %v2489 = vadd.f32 %v2392, %v2481
      %v2490 = vadd.f32 %v2397, %v2486
      %v2492 = vlaneseq
      %v2493 = vshrl.u32 %v2492, 7
      %v2494 = vsub.s32 0, %v2493
      %v2495 = vrot.slane %v2209, %v2494
      %v2497 = vadd.f32 %v2489, %v2495
      %v2498 = vadd.f32 %v2490, %v2495
      %v2499 = vld [vmem:[%s20] sm:$0xff]
      %v2500 = vld [vmem:[%s20 + $0x8] sm:$0xff]
      %v2501 = vld [vmem:[%s20 + $0x10] sm:$0xff]
      %v2502 = vld [vmem:[%s20 + $0x18] sm:$0xff]
      %v2504 = vsel %vm899, %v725, 0
      %v2507 = vsel %vm899, %v726, 0
      %2509 = vmatprep.subr.mxu0 0.0
      %2510 = vmatpush1.msra.mxu0 %v2499
      %2511 = vmatprep.subr.mxu0 0.0
      %2512 = vmatpush1.msra.mxu0 %v2500
      %2513 = vmatprep.subr.mxu0 0.0
      %2514 = vmatpush1.msra.mxu0 %v2501
      %2515 = vmatprep.subr.mxu0 0.0
      %2516 = vmatpush1.msra.mxu0 %v2502
      %2517 = vmatprep.subr.mxu0 0.0
      %2518 = vmatpush1.msra.mxu0 0.0
      %2519 = vmatprep.subr.mxu0 0.0
      %2520 = vmatpush1.msra.mxu0 0.0
      %2521 = vmatprep.subr.mxu0 0.0
      %2522 = vmatpush1.msra.mxu0 0.0
      %2523 = vmatprep.subr.mxu0 0.0
      %2524 = vmatpush1.msra.mxu0 0.0
      %2525 = vmatprep.subr.mxu0 0.0
      %2526 = vmatpush1.msra.mxu0 0.0
      %2527 = vmatprep.subr.mxu0 0.0
      %2528 = vmatpush1.msra.mxu0 0.0
      %2529 = vmatprep.subr.mxu0 0.0
      %2530 = vmatpush1.msra.mxu0 0.0
      %2531 = vmatprep.subr.mxu0 0.0
      %2532 = vmatpush1.msra.mxu0 0.0
      %2533 = vmatprep.subr.mxu0 0.0
      %2534 = vmatpush1.msra.mxu0 0.0
      %2535 = vmatprep.subr.mxu0 0.0
      %2536 = vmatpush1.msra.mxu0 0.0
      %2537 = vmatprep.subr.mxu0 0.0
      %2538 = vmatpush1.msra.mxu0 0.0
      %2539 = vmatprep.subr.mxu0 0.0
      %2540 = vmatpush1.msra.mxu0 0.0
      %2541 = vmatprep.subr.mxu0 0.0
      %2542 = vmatpush1.msra.mxu0 0.0
      %2543 = vmatprep.subr.mxu0 0.0
      %2544 = vmatpush1.msra.mxu0 0.0
      %2545 = vmatprep.subr.mxu0 0.0
      %2546 = vmatpush1.msra.mxu0 0.0
      %2547 = vmatprep.subr.mxu0 0.0
      %2548 = vmatpush1.msra.mxu0 0.0
      %2549 = vmatprep.subr.mxu0 0.0
      %2550 = vmatpush1.msra.mxu0 0.0
      %2551 = vmatprep.subr.mxu0 0.0
      %2552 = vmatpush1.msra.mxu0 0.0
      %2553 = vmatprep.subr.mxu0 0.0
      %2554 = vmatpush1.msra.mxu0 0.0
      %2555 = vmatprep.subr.mxu0 0.0
      %2556 = vmatpush1.msra.mxu0 0.0
      %2557 = vmatprep.subr.mxu0 0.0
      %2558 = vmatpush1.msra.mxu0 0.0
      %2559 = vmatprep.subr.mxu0 0.0
      %2560 = vmatpush1.msra.mxu0 0.0
      %2561 = vmatprep.subr.mxu0 0.0
      %2562 = vmatpush1.msra.mxu0 0.0
      %2563 = vmatprep.subr.mxu0 0.0
      %2564 = vmatpush1.msra.mxu0 0.0
      %2565 = vmatprep.subr.mxu0 0.0
      %2566 = vmatpush1.msra.mxu0 0.0
      %2567 = vmatprep.subr.mxu0 0.0
      %2568 = vmatpush1.msra.mxu0 0.0
      %2569 = vmatprep.subr.mxu0 0.0
      %2570 = vmatpush1.msra.mxu0 0.0
      %2571 = vmatprep.subr.mxu0 0.0
      %2572 = vmatpush1.msra.mxu0 0.0
      %2573 = vmatprep.mubr.f32.mxu0 0.0
      %2574 = vmatmul.mubr.f32.gmra.mrb[0].mxu0 %v2504
      %v2575 = vpop.f32.mrb[0].mxu0
      %v2576 = vadd.f32 0.0, %v2575
      %v2577 = vpop.f32.mrb[0].mxu0
      %2578 = vmatprep.mubr.f32.mxu0 0.0
      %2579 = vmatmul.mubr.f32.gmra.mrb[0].mxu0 %v2507
      %v2580 = vpop.f32.mrb[0].mxu0
      %v2581 = vadd.f32 0.0, %v2580
      %v2582 = vpop.f32.mrb[0].mxu0
      %2583 = vdwg.mxu0
      %v2584 = vadd.f32 %v2497, %v2576
      %v2585 = vadd.f32 %v2498, %v2581
      %v2586 = vld [vmem:[%s21] sm:$0x1]
      %v2588 = vlaneseq
      %v2589 = vshrl.u32 %v2588, 7
      %v2590 = vsub.s32 0, %v2589
      %v2591 = vrot.slane %v2586, %v2590
      %v2593 = vadd.f32 %v2584, %v2591
      %v2594 = vadd.f32 %v2585, %v2591
      %2595 = vxpose.xlu0.b32.start [1/16] %v2593, 128
      %2596 = vxpose.xlu0.b32.cont [2/16] %v2594, 128
      %2597 = vxpose.xlu0.b32.cont [3/16] 0.0, 128
      %2598 = vxpose.xlu0.b32.cont [4/16] 0.0, 128
      %2599 = vxpose.xlu0.b32.cont [5/16] 0.0, 128
      %2600 = vxpose.xlu0.b32.cont [6/16] 0.0, 128
      %2601 = vxpose.xlu0.b32.cont [7/16] 0.0, 128
      %2602 = vxpose.xlu0.b32.cont [8/16] 0.0, 128
      %2603 = vxpose.xlu0.b32.cont [9/16] 0.0, 128
      %2604 = vxpose.xlu0.b32.cont [10/16] 0.0, 128
      %2605 = vxpose.xlu0.b32.cont [11/16] 0.0, 128
      %2606 = vxpose.xlu0.b32.cont [12/16] 0.0, 128
      %2607 = vxpose.xlu0.b32.cont [13/16] 0.0, 128
      %2608 = vxpose.xlu0.b32.cont [14/16] 0.0, 128
      %2609 = vxpose.xlu0.b32.cont [15/16] 0.0, 128
      %2610 = vxpose.xlu0.b32.end [16/16] 0.0, 128
      %v2611 = vpop.trf.xlu0
      %v2612 = vpop.trf.xlu0
      %v2613 = vpop.trf.xlu0
      %v2614 = vpop.trf.xlu0
      %v2615 = vpop.trf.xlu0
      %v2616 = vpop.trf.xlu0
      %v2617 = vpop.trf.xlu0
      %v2618 = vpop.trf.xlu0
      %v2619 = vpop.trf.xlu0
      %v2620 = vpop.trf.xlu0
      %v2621 = vpop.trf.xlu0
      %v2622 = vpop.trf.xlu0
      %v2623 = vpop.trf.xlu0
      %v2624 = vpop.trf.xlu0
      %v2625 = vpop.trf.xlu0
      %v2626 = vpop.trf.xlu0
      %2627 = vst.msk [vmem:[%s697] sm:$0xff] %vm748, %v2611
      %2628 = vst.msk [vmem:[%s697 + $0x8] sm:$0xff] %vm748, %v2612
      %2629 = vst.msk [vmem:[%s697 + $0x10] sm:$0xff] %vm748, %v2613
      %2630 = vst.msk [vmem:[%s697 + $0x18] sm:$0xff] %vm748, %v2614
      %2631 = vst.msk [vmem:[%s697 + $0x20] sm:$0xff] %vm748, %v2615
      %2632 = vst.msk [vmem:[%s697 + $0x28] sm:$0xff] %vm748, %v2616
      %2633 = vst.msk [vmem:[%s697 + $0x30] sm:$0xff] %vm748, %v2617
      %2634 = vst.msk [vmem:[%s697 + $0x38] sm:$0xff] %vm748, %v2618
      %p2635 = scmp.lt.s32.totalorder %s33, 1
      %s2636 = scalar_select %p2635, %s33, 1
      %s2637 = smul.addr %s2636, 8
      %s2638 = smul.addr %s2637, 8
      %s2639 = scalar_lea.vmem %s22, %s2638
      // Predicated region
      $region109: #{tpu_custom_call.1} parent=107 // pred_check
        %p2640 = pneg %p523
      $region110: #{tpu_custom_call.1} parent=107 // pred_check_branch
        %2642 = sbr.rel (%p2640) target = $region112
      $region111: #{tpu_custom_call.1} parent=107 // pred_region
        _
      $region112: #{tpu_custom_call.1} parent=107 // pred_fallthru
        _
    $region108: #{tpu_custom_call.1} parent=5 // pred_fallthru
      _
    %p2643 = scmp.le.s32.totalorder 2, %s28
    // Predicated region
    $region113: #{tpu_custom_call.1} parent=5 // pred_check
      %p2644 = pneg %p2643
    $region114: #{tpu_custom_call.1} parent=5 // pred_check_branch
      %2646 = sbr.rel (%p2644) target = $region116
    $region115: #{tpu_custom_call.1} parent=5 // pred_region
      %s2647 = ssub.s32 %s28, 2
      // Predicated region
      $region117: #{tpu_custom_call.1} parent=115 // pred_check
        %p2648 = pneg %p529
      $region118: #{tpu_custom_call.1} parent=115 // pred_check_branch
        %2650 = sbr.rel (%p2648) target = $region120
      $region119: #{tpu_custom_call.1} parent=115 // pred_region
        %p2651 = scmp.lt.s32.totalorder %s34, 1
        %s2652 = scalar_select %p2651, %s34, 1
        %s2653 = smul.addr %s2652, 8
        %s2654 = smul.addr %s2653, 8
        %s2655 = scalar_lea.vmem %s22, %s2654
      $region120: #{tpu_custom_call.1} parent=115 // pred_fallthru
        _
    $region116: #{tpu_custom_call.1} parent=5 // pred_fallthru
      _
  $region6: #{tpu_custom_call.1} parent=0 // loop_footer
    %s32 = sadd.s32 1, %s28
  $region7: #{tpu_custom_call.1} parent=0 // loop_footer_branch
    %27 = sbr.rel target = $region3
  $region8: #{tpu_custom_call.1} parent=0 // loop_exit
    _

</llo_original>
